<compile_context>
chip_gen: v7x
topology: tpu7x:2x2x1
jax: 0.10.0
libtpu: 0.0.40
codegen_flags: <defaults>
</compile_context>

<pallas_src>
import functools

import jax
import jax.numpy as jnp
from jax.experimental import pallas as pl
from jax.experimental.pallas import tpu as pltpu

# Layer dimensions from the PyTorch module __init__.
DIMS = [784, 400, 256, 100, 256, 400, 784, 10]
# Lane widths used inside the kernel, padded to multiples of 128.
PAD = [896, 512, 256, 128, 256, 512, 896, 128]
N_LAYERS = 7
N_CLASSES = 10
BIAS_ROWS = 8               # 7 biases, padded to 8 sublanes
BIAS_COLS = max(PAD[1:])    # 896
ROW_ALIGN = 16              # bf16 sublane packing: batch tiles multiple of 16


def _round_up(x, m):
    return (x + m - 1) // m * m


def _default_tile_b():
    """Generation-aware default batch tile (rows per grid step)."""
    try:
        kind = jax.devices()[0].device_kind.lower()
    except Exception:
        return 256
    if "v5" in kind:
        return 128      # 128-row MXU, 16 MiB scoped VMEM default
    if "7" in kind:
        return 512      # v7x: 256-row MXU, ample VMEM -> fewer grid steps
    return 256          # v6e and unknown: 256-row MXU


def autoencoder_kernel(x_ref, w1, w2, w3, w4, w5, w6, w7, b_ref, out_ref):
    """One batch tile: 7 MXU matmuls (bf16 in, f32 acc), bias+ReLU in f32,
    bf16 carry between layers, masked log_softmax over the first N_CLASSES
    lanes of the 128-wide padded head."""
    ws = (w1, w2, w3, w4, w5, w6, w7)
    h = x_ref[...]                                   # (TILE_B, 896) bf16
    for i in range(N_LAYERS):
        out_d = PAD[i + 1]
        b = b_ref[pl.ds(i, 1), pl.ds(0, out_d)]      # (1, out_d) f32, static slice
        y = jnp.dot(h, ws[i][...], preferred_element_type=jnp.float32) + b
        if i < N_LAYERS - 1:
            h = jax.nn.relu(y).astype(jnp.bfloat16)  # bf16 carry between layers
        else:
            h = y                                    # final logits stay f32

    # log_softmax over the first N_CLASSES lanes; lanes >= N_CLASSES are padding.
    col = jax.lax.broadcasted_iota(jnp.int32, h.shape, 1)
    valid = col < N_CLASSES
    logits = jnp.where(valid, h, jnp.float32(-1e30))
    m = jnp.max(logits, axis=-1, keepdims=True)
    z = logits - m
    lse = jnp.log(jnp.sum(jnp.where(valid, jnp.exp(z), 0.0),
                          axis=-1, keepdims=True))
    out_ref[...] = (z - lse).astype(out_ref.dtype)


def prepare_params(params):
    """Pad/transpose params for the kernel.

    params: list of (W, b) with W shaped (in, out) f32 (already transposed
    from PyTorch's (out, in) so the kernel computes x @ W + b).
    Returns (list of bf16 lane-padded weights, packed f32 bias array (8, 896)).
    """
    weights = []
    bias_pack = jnp.zeros((BIAS_ROWS, BIAS_COLS), jnp.float32)
    for i, (w, b) in enumerate(params):
        d_in, d_out = PAD[i], PAD[i + 1]
        w_p = jnp.zeros((d_in, d_out), jnp.float32)
        w_p = w_p.at[: w.shape[0], : w.shape[1]].set(w)
        weights.append(w_p.astype(jnp.bfloat16))
        bias_pack = bias_pack.at[i, : b.shape[0]].set(b)
    return weights, bias_pack


@functools.partial(jax.jit, static_argnames=("tile_b",))
def autoencoder_forward(x, weights, bias_pack, *, tile_b=None):
    """x: (B, 784) f32. weights/bias_pack from prepare_params.

    tile_b: max batch tile size; None -> per-generation default
    (v5: 128, v6e: 256, v7x: 512).
    """
    b = x.shape[0]
    if tile_b is None:
        tile_b = _default_tile_b()

    # Pick (n_tiles, tile_b) so that: tiles are ROW_ALIGN-multiples, there are
    # >= 2 grid steps whenever the batch allows (lets the "parallel" axis shard
    # across both v7x TensorCores), and padded batch stays close to b.
    b_al = _round_up(b, ROW_ALIGN)
    min_tiles = 2 if b_al >= 2 * ROW_ALIGN else 1
    n_tiles = max(pl.cdiv(b_al, tile_b), min_tiles)
    tile_b = _round_up(pl.cdiv(b_al, n_tiles), ROW_ALIGN)
    b_pad = tile_b * n_tiles

    # Pad features 784 -> 896 (zero lanes), pad batch, cast to bf16 once here
    # so the kernel's only recurring HBM traffic is already half-width.
    x = jnp.pad(x, ((0, b_pad - b), (0, PAD[0] - DIMS[0]))).astype(jnp.bfloat16)

    # Weights & biases: constant block index -> DMA'd once, VMEM-resident
    # across all batch tiles.
    w_specs = [pl.BlockSpec(w.shape, lambda i: (0, 0)) for w in weights]
    b_spec = pl.BlockSpec((BIAS_ROWS, BIAS_COLS), lambda i: (0, 0))

    out = pl.pallas_call(
        autoencoder_kernel,
        out_shape=jax.ShapeDtypeStruct((b_pad, PAD[-1]), jnp.float32),
        grid=(n_tiles,),
        in_specs=[pl.BlockSpec((tile_b, PAD[0]), lambda i: (i, 0))]
                 + w_specs + [b_spec],
        out_specs=pl.BlockSpec((tile_b, PAD[-1]), lambda i: (i, 0)),
        compiler_params=pltpu.CompilerParams(
            dimension_semantics=("parallel",)),
    )(x, *weights, bias_pack)

    return out[:b, :N_CLASSES]


def init_params(key):
    """Deterministic init mimicking torch.nn.Linear uniform(-1/sqrt(in), 1/sqrt(in))."""
    params = []
    for i in range(len(DIMS) - 1):
        fan_in, fan_out = DIMS[i], DIMS[i + 1]
        key, kw, kb = jax.random.split(key, 3)
        bound = 1.0 / (fan_in ** 0.5)
        w = jax.random.uniform(kw, (fan_in, fan_out), jnp.float32, -bound, bound)
        b = jax.random.uniform(kb, (fan_out,), jnp.float32, -bound, bound)
        params.append((w, b))
    return params


def reference_forward(x, params, *, cast_bf16=False):
    """Pure-JAX reference. cast_bf16=True mimics the kernel's bf16 dot inputs
    and bf16 activation carry (f32 accumulation / bias / relu)."""
    h = x
    for i, (w, b) in enumerate(params):
        last = i == len(params) - 1
        if cast_bf16:
            y = jnp.dot(h.astype(jnp.bfloat16), w.astype(jnp.bfloat16),
                        preferred_element_type=jnp.float32) + b
            h = y if last else jax.nn.relu(y).astype(jnp.bfloat16)
        else:
            y = h @ w + b
            h = y if last else jax.nn.relu(y)
    return jax.nn.log_softmax(h.astype(jnp.float32), axis=-1)


if __name__ == "__main__":
    key = jax.random.PRNGKey(0)
    key, kx = jax.random.split(key)

    batch = 16
    x = jax.random.normal(kx, (batch, DIMS[0]), jnp.float32)
    params = init_params(key)
    weights, bias_pack = prepare_params(params)

    out = autoencoder_forward(x, weights, bias_pack)
    out = jax.block_until_ready(out)
    assert out.shape == (batch, N_CLASSES)

    # Tight check vs. a reference with the same bf16-input / bf16-carry /
    # f32-accum math.
    ref_bf16 = reference_forward(x, params, cast_bf16=True)
    assert jnp.allclose(out, ref_bf16, atol=2e-2, rtol=2e-2), \
        "mismatch vs bf16 reference"

    # Loose sanity check vs. the full-f32 reference (bf16 quantization error).
    ref_f32 = reference_forward(x, params, cast_bf16=False)
    max_err = float(jnp.max(jnp.abs(out - ref_f32)))
    assert max_err < 0.5, f"f32 reference deviation too large: {max_err}"

    print("KERNEL_OK")
</pallas_src>

<mosaic_0001>
module attributes {stable_mosaic.version = 11 : i64} {
  func.func @autoencoder_kernel(%arg0: i32, %arg1: memref<16x896xbf16, #tpu.memory_space<vmem>>, %arg2: memref<896x512xbf16, #tpu.memory_space<vmem>>, %arg3: memref<512x256xbf16, #tpu.memory_space<vmem>>, %arg4: memref<256x128xbf16, #tpu.memory_space<vmem>>, %arg5: memref<128x256xbf16, #tpu.memory_space<vmem>>, %arg6: memref<256x512xbf16, #tpu.memory_space<vmem>>, %arg7: memref<512x896xbf16, #tpu.memory_space<vmem>>, %arg8: memref<896x128xbf16, #tpu.memory_space<vmem>>, %arg9: memref<8x896xf32, #tpu.memory_space<vmem>>, %arg10: memref<16x128xf32, #tpu.memory_space<vmem>>) attributes {dimension_semantics = [#tpu.dimension_semantics<parallel>], iteration_bounds = array<i64: 1>, scalar_prefetch = 0 : i64, scratch_operands = 0 : i64, tpu.core_type = #tpu.core_type<tc>, window_params = [{transform_indices = @transform_0, window_bounds = array<i64: 16, 896>}, {pipeline_mode = #tpu.pipeline_mode<synchronous>, transform_indices = @transform_1, window_bounds = array<i64: 896, 512>}, {pipeline_mode = #tpu.pipeline_mode<synchronous>, transform_indices = @transform_2, window_bounds = array<i64: 512, 256>}, {pipeline_mode = #tpu.pipeline_mode<synchronous>, transform_indices = @transform_3, window_bounds = array<i64: 256, 128>}, {pipeline_mode = #tpu.pipeline_mode<synchronous>, transform_indices = @transform_4, window_bounds = array<i64: 128, 256>}, {pipeline_mode = #tpu.pipeline_mode<synchronous>, transform_indices = @transform_5, window_bounds = array<i64: 256, 512>}, {pipeline_mode = #tpu.pipeline_mode<synchronous>, transform_indices = @transform_6, window_bounds = array<i64: 512, 896>}, {pipeline_mode = #tpu.pipeline_mode<synchronous>, transform_indices = @transform_7, window_bounds = array<i64: 896, 128>}, {pipeline_mode = #tpu.pipeline_mode<synchronous>, transform_indices = @transform_8, window_bounds = array<i64: 8, 896>}, {transform_indices = @transform_9, window_bounds = array<i64: 16, 128>}]} {
    %c0 = arith.constant 0 : index
    %c0_0 = arith.constant 0 : index
    %0 = vector.load %arg1[%c0, %c0_0] : memref<16x896xbf16, #tpu.memory_space<vmem>>, vector<16x896xbf16>
    %c0_1 = arith.constant 0 : index
    %c0_2 = arith.constant 0 : index
    %1 = vector.load %arg9[%c0_1, %c0_2] : memref<8x896xf32, #tpu.memory_space<vmem>>, vector<1x512xf32>
    %c0_3 = arith.constant 0 : index
    %c0_4 = arith.constant 0 : index
    %2 = vector.load %arg2[%c0_3, %c0_4] : memref<896x512xbf16, #tpu.memory_space<vmem>>, vector<896x512xbf16>
    %cst = arith.constant dense<0.000000e+00> : vector<16x512xf32>
    %3 = tpu.matmul %0, %2, %cst {dimension_numbers = #tpu.dot_dimension_numbers<[1], [0], [0], [1], [0, 0, 1, 1], [], []>} : vector<16x896xbf16>, vector<896x512xbf16>, vector<16x512xf32> -> vector<16x512xf32>
    %4 = vector.broadcast %1 : vector<1x512xf32> to vector<16x512xf32>
    %5 = arith.addf %3, %4 : vector<16x512xf32>
    %cst_5 = arith.constant 0.000000e+00 : f32
    %6 = vector.broadcast %cst_5 : f32 to vector<16x512xf32>
    %7 = arith.maximumf %5, %6 : vector<16x512xf32>
    %8 = arith.truncf %7 : vector<16x512xf32> to vector<16x512xbf16>
    %c1 = arith.constant 1 : index
    %c0_6 = arith.constant 0 : index
    %9 = vector.load %arg9[%c1, %c0_6] : memref<8x896xf32, #tpu.memory_space<vmem>>, vector<1x256xf32>
    %c0_7 = arith.constant 0 : index
    %c0_8 = arith.constant 0 : index
    %10 = vector.load %arg3[%c0_7, %c0_8] : memref<512x256xbf16, #tpu.memory_space<vmem>>, vector<512x256xbf16>
    %cst_9 = arith.constant dense<0.000000e+00> : vector<16x256xf32>
    %11 = tpu.matmul %8, %10, %cst_9 {dimension_numbers = #tpu.dot_dimension_numbers<[1], [0], [0], [1], [0, 0, 1, 1], [], []>} : vector<16x512xbf16>, vector<512x256xbf16>, vector<16x256xf32> -> vector<16x256xf32>
    %12 = vector.broadcast %9 : vector<1x256xf32> to vector<16x256xf32>
    %13 = arith.addf %11, %12 : vector<16x256xf32>
    %cst_10 = arith.constant 0.000000e+00 : f32
    %14 = vector.broadcast %cst_10 : f32 to vector<16x256xf32>
    %15 = arith.maximumf %13, %14 : vector<16x256xf32>
    %16 = arith.truncf %15 : vector<16x256xf32> to vector<16x256xbf16>
    %c2 = arith.constant 2 : index
    %c0_11 = arith.constant 0 : index
    %17 = vector.load %arg9[%c2, %c0_11] : memref<8x896xf32, #tpu.memory_space<vmem>>, vector<1x128xf32>
    %c0_12 = arith.constant 0 : index
    %c0_13 = arith.constant 0 : index
    %18 = vector.load %arg4[%c0_12, %c0_13] : memref<256x128xbf16, #tpu.memory_space<vmem>>, vector<256x128xbf16>
    %cst_14 = arith.constant dense<0.000000e+00> : vector<16x128xf32>
    %19 = tpu.matmul %16, %18, %cst_14 {dimension_numbers = #tpu.dot_dimension_numbers<[1], [0], [0], [1], [0, 0, 1, 1], [], []>} : vector<16x256xbf16>, vector<256x128xbf16>, vector<16x128xf32> -> vector<16x128xf32>
    %20 = vector.broadcast %17 : vector<1x128xf32> to vector<16x128xf32>
    %21 = arith.addf %19, %20 : vector<16x128xf32>
    %cst_15 = arith.constant 0.000000e+00 : f32
    %22 = vector.broadcast %cst_15 : f32 to vector<16x128xf32>
    %23 = arith.maximumf %21, %22 : vector<16x128xf32>
    %24 = arith.truncf %23 : vector<16x128xf32> to vector<16x128xbf16>
    %c3 = arith.constant 3 : index
    %c0_16 = arith.constant 0 : index
    %25 = vector.load %arg9[%c3, %c0_16] : memref<8x896xf32, #tpu.memory_space<vmem>>, vector<1x256xf32>
    %c0_17 = arith.constant 0 : index
    %c0_18 = arith.constant 0 : index
    %26 = vector.load %arg5[%c0_17, %c0_18] : memref<128x256xbf16, #tpu.memory_space<vmem>>, vector<128x256xbf16>
    %cst_19 = arith.constant dense<0.000000e+00> : vector<16x256xf32>
    %27 = tpu.matmul %24, %26, %cst_19 {dimension_numbers = #tpu.dot_dimension_numbers<[1], [0], [0], [1], [0, 0, 1, 1], [], []>} : vector<16x128xbf16>, vector<128x256xbf16>, vector<16x256xf32> -> vector<16x256xf32>
    %28 = vector.broadcast %25 : vector<1x256xf32> to vector<16x256xf32>
    %29 = arith.addf %27, %28 : vector<16x256xf32>
    %cst_20 = arith.constant 0.000000e+00 : f32
    %30 = vector.broadcast %cst_20 : f32 to vector<16x256xf32>
    %31 = arith.maximumf %29, %30 : vector<16x256xf32>
    %32 = arith.truncf %31 : vector<16x256xf32> to vector<16x256xbf16>
    %c4 = arith.constant 4 : index
    %c0_21 = arith.constant 0 : index
    %33 = vector.load %arg9[%c4, %c0_21] : memref<8x896xf32, #tpu.memory_space<vmem>>, vector<1x512xf32>
    %c0_22 = arith.constant 0 : index
    %c0_23 = arith.constant 0 : index
    %34 = vector.load %arg6[%c0_22, %c0_23] : memref<256x512xbf16, #tpu.memory_space<vmem>>, vector<256x512xbf16>
    %cst_24 = arith.constant dense<0.000000e+00> : vector<16x512xf32>
    %35 = tpu.matmul %32, %34, %cst_24 {dimension_numbers = #tpu.dot_dimension_numbers<[1], [0], [0], [1], [0, 0, 1, 1], [], []>} : vector<16x256xbf16>, vector<256x512xbf16>, vector<16x512xf32> -> vector<16x512xf32>
    %36 = vector.broadcast %33 : vector<1x512xf32> to vector<16x512xf32>
    %37 = arith.addf %35, %36 : vector<16x512xf32>
    %cst_25 = arith.constant 0.000000e+00 : f32
    %38 = vector.broadcast %cst_25 : f32 to vector<16x512xf32>
    %39 = arith.maximumf %37, %38 : vector<16x512xf32>
    %40 = arith.truncf %39 : vector<16x512xf32> to vector<16x512xbf16>
    %c5 = arith.constant 5 : index
    %c0_26 = arith.constant 0 : index
    %41 = vector.load %arg9[%c5, %c0_26] : memref<8x896xf32, #tpu.memory_space<vmem>>, vector<1x896xf32>
    %c0_27 = arith.constant 0 : index
    %c0_28 = arith.constant 0 : index
    %42 = vector.load %arg7[%c0_27, %c0_28] : memref<512x896xbf16, #tpu.memory_space<vmem>>, vector<512x896xbf16>
    %cst_29 = arith.constant dense<0.000000e+00> : vector<16x896xf32>
    %43 = tpu.matmul %40, %42, %cst_29 {dimension_numbers = #tpu.dot_dimension_numbers<[1], [0], [0], [1], [0, 0, 1, 1], [], []>} : vector<16x512xbf16>, vector<512x896xbf16>, vector<16x896xf32> -> vector<16x896xf32>
    %44 = vector.broadcast %41 : vector<1x896xf32> to vector<16x896xf32>
    %45 = arith.addf %43, %44 : vector<16x896xf32>
    %cst_30 = arith.constant 0.000000e+00 : f32
    %46 = vector.broadcast %cst_30 : f32 to vector<16x896xf32>
    %47 = arith.maximumf %45, %46 : vector<16x896xf32>
    %48 = arith.truncf %47 : vector<16x896xf32> to vector<16x896xbf16>
    %c6 = arith.constant 6 : index
    %c0_31 = arith.constant 0 : index
    %49 = vector.load %arg9[%c6, %c0_31] : memref<8x896xf32, #tpu.memory_space<vmem>>, vector<1x128xf32>
    %c0_32 = arith.constant 0 : index
    %c0_33 = arith.constant 0 : index
    %50 = vector.load %arg8[%c0_32, %c0_33] : memref<896x128xbf16, #tpu.memory_space<vmem>>, vector<896x128xbf16>
    %cst_34 = arith.constant dense<0.000000e+00> : vector<16x128xf32>
    %51 = tpu.matmul %48, %50, %cst_34 {dimension_numbers = #tpu.dot_dimension_numbers<[1], [0], [0], [1], [0, 0, 1, 1], [], []>} : vector<16x896xbf16>, vector<896x128xbf16>, vector<16x128xf32> -> vector<16x128xf32>
    %52 = vector.broadcast %49 : vector<1x128xf32> to vector<16x128xf32>
    %53 = arith.addf %51, %52 : vector<16x128xf32>
    %54 = tpu.iota {dimensions = array<i32: 1>} : vector<16x128xi32>
    %c10_i32 = arith.constant 10 : i32
    %55 = vector.broadcast %c10_i32 : i32 to vector<16x128xi32>
    %56 = arith.cmpi slt, %54, %55 : vector<16x128xi32>
    %cst_35 = arith.constant -1.000000e+30 : f32
    %57 = vector.broadcast %cst_35 : f32 to vector<16x128xf32>
    %58 = arith.select %56, %53, %57 : vector<16x128xi1>, vector<16x128xf32>
    %cst_36 = arith.constant dense<0xFF800000> : vector<16xf32>
    %59 = vector.multi_reduction <maximumf>, %58, %cst_36 [1] : vector<16x128xf32> to vector<16xf32>
    %60 = vector.shape_cast %59 : vector<16xf32> to vector<16x1xf32>
    %61 = vector.broadcast %60 : vector<16x1xf32> to vector<16x128xf32>
    %62 = arith.subf %58, %61 : vector<16x128xf32>
    %63 = math.exp %62 : vector<16x128xf32>
    %cst_37 = arith.constant 0.000000e+00 : f32
    %64 = vector.broadcast %cst_37 : f32 to vector<16x128xf32>
    %65 = arith.select %56, %63, %64 : vector<16x128xi1>, vector<16x128xf32>
    %cst_38 = arith.constant dense<0.000000e+00> : vector<16xf32>
    %66 = vector.multi_reduction <add>, %65, %cst_38 [1] : vector<16x128xf32> to vector<16xf32>
    %67 = vector.shape_cast %66 : vector<16xf32> to vector<16x1xf32>
    %68 = math.log %67 : vector<16x1xf32>
    %69 = vector.broadcast %68 : vector<16x1xf32> to vector<16x128xf32>
    %70 = arith.subf %62, %69 : vector<16x128xf32>
    %c0_39 = arith.constant 0 : index
    %c0_40 = arith.constant 0 : index
    %71 = vector.load %arg10[%c0_39, %c0_40] : memref<16x128xf32, #tpu.memory_space<vmem>>, vector<16x128xf32>
    tpu.vector_store %arg10[%c0_39, %c0_40], %70 {strides = array<i32>} : memref<16x128xf32, #tpu.memory_space<vmem>>, vector<16x128xf32>,
    return
  }
  func.func @transform_0(%arg0: i32) -> (i32, i32) {
    %c0_i32 = arith.constant 0 : i32
    %c0_i32_0 = arith.constant 0 : i32
    return %arg0, %c0_i32 : i32, i32
  }
  func.func @transform_1(%arg0: i32) -> (i32, i32) {
    %c0_i32 = arith.constant 0 : i32
    %c0_i32_0 = arith.constant 0 : i32
    %c0_i32_1 = arith.constant 0 : i32
    return %c0_i32, %c0_i32_0 : i32, i32
  }
  func.func @transform_2(%arg0: i32) -> (i32, i32) {
    %c0_i32 = arith.constant 0 : i32
    %c0_i32_0 = arith.constant 0 : i32
    %c0_i32_1 = arith.constant 0 : i32
    return %c0_i32, %c0_i32_0 : i32, i32
  }
  func.func @transform_3(%arg0: i32) -> (i32, i32) {
    %c0_i32 = arith.constant 0 : i32
    %c0_i32_0 = arith.constant 0 : i32
    %c0_i32_1 = arith.constant 0 : i32
    return %c0_i32, %c0_i32_0 : i32, i32
  }
  func.func @transform_4(%arg0: i32) -> (i32, i32) {
    %c0_i32 = arith.constant 0 : i32
    %c0_i32_0 = arith.constant 0 : i32
    %c0_i32_1 = arith.constant 0 : i32
    return %c0_i32, %c0_i32_0 : i32, i32
  }
  func.func @transform_5(%arg0: i32) -> (i32, i32) {
    %c0_i32 = arith.constant 0 : i32
    %c0_i32_0 = arith.constant 0 : i32
    %c0_i32_1 = arith.constant 0 : i32
    return %c0_i32, %c0_i32_0 : i32, i32
  }
  func.func @transform_6(%arg0: i32) -> (i32, i32) {
    %c0_i32 = arith.constant 0 : i32
    %c0_i32_0 = arith.constant 0 : i32
    %c0_i32_1 = arith.constant 0 : i32
    return %c0_i32, %c0_i32_0 : i32, i32
  }
  func.func @transform_7(%arg0: i32) -> (i32, i32) {
    %c0_i32 = arith.constant 0 : i32
    %c0_i32_0 = arith.constant 0 : i32
    %c0_i32_1 = arith.constant 0 : i32
    return %c0_i32, %c0_i32_0 : i32, i32
  }
  func.func @transform_8(%arg0: i32) -> (i32, i32) {
    %c0_i32 = arith.constant 0 : i32
    %c0_i32_0 = arith.constant 0 : i32
    %c0_i32_1 = arith.constant 0 : i32
    return %c0_i32, %c0_i32_0 : i32, i32
  }
  func.func @transform_9(%arg0: i32) -> (i32, i32) {
    %c0_i32 = arith.constant 0 : i32
    %c0_i32_0 = arith.constant 0 : i32
    return %arg0, %c0_i32 : i32, i32
  }
}

</mosaic_0001>

<llo_original>
// kernel: autoencoder_forward.1
$region0: #{autoencoder_forward.1}
  #allocation0 [shape = 'u32[]', space=smem, size = 0x4, offset = 0x4, fixed_abs, tag = 'smem constant byte address 0x4 - core index']
  #allocation1 [shape = 'u32[144,128]{1,0:T(1,128)}', space=vmem, size = 0x12000, scoped, tag = 'internal scratch']
  %s0 = inlined_call_operand.vmem [shape: bf16[16,896], index: 0, kind: input, shape index: {}]
  %s1 = inlined_call_operand.hbm [shape: bf16[896,512], index: 1, kind: input, shape index: {}]
  %s2 = inlined_call_operand.hbm [shape: bf16[512,256], index: 2, kind: input, shape index: {}]
  %s3 = inlined_call_operand.vmem [shape: bf16[256,128], index: 3, kind: input, shape index: {}]
  %s4 = inlined_call_operand.vmem [shape: bf16[128,256], index: 4, kind: input, shape index: {}]
  %s5 = inlined_call_operand.hbm [shape: bf16[256,512], index: 5, kind: input, shape index: {}]
  %s6 = inlined_call_operand.hbm [shape: bf16[512,896], index: 6, kind: input, shape index: {}]
  %s7 = inlined_call_operand.hbm [shape: bf16[896,128], index: 7, kind: input, shape index: {}]
  %s8 = inlined_call_operand.hbm [shape: f32[8,896], index: 8, kind: input, shape index: {}]
  %s9 = inlined_call_operand.hbm [shape: f32[16,128], index: 9, kind: output, shape index: {}]
  %s10 = sld [smem:[#allocation0]]
  $region70: #{autoencoder_forward.1} parent=0
    _
  %s12 = ssub.s32 1, %s10
  %s13 = scalar_select 0, %s12, %s10
  $region1: #{autoencoder_forward.1} parent=0
    #allocation2 [shape = 'u8[917504]{0}', space=vmem, size = 0xe0000, scoped, tag = 'input window, operand 1, single buffered']
    #allocation3 [shape = 's32[1]{0}', space=sflag, size = 0x4, scoped, tag = 'scoped memory for autoencoder_forward.1']
    #allocation4 [shape = 's32[1]{0}', space=sflag, size = 0x4, scoped, tag = 'scoped memory for autoencoder_forward.1']
    #allocation5 [shape = 'u8[262144]{0}', space=vmem, size = 0x40000, scoped, tag = 'input window, operand 2, single buffered']
    #allocation6 [shape = 's32[1]{0}', space=sflag, size = 0x4, scoped, tag = 'scoped memory for autoencoder_forward.1']
    #allocation7 [shape = 'u8[262144]{0}', space=vmem, size = 0x40000, scoped, tag = 'input window, operand 5, single buffered']
    #allocation8 [shape = 'u8[917504]{0}', space=vmem, size = 0xe0000, scoped, tag = 'input window, operand 6, single buffered']
    #allocation9 [shape = 's32[1]{0}', space=sflag, size = 0x4, scoped, tag = 'scoped memory for autoencoder_forward.1']
    #allocation10 [shape = 'u8[229376]{0}', space=vmem, size = 0x38000, scoped, tag = 'input window, operand 7, single buffered']
    #allocation11 [shape = 'u8[28672]{0}', space=vmem, size = 0x7000, scoped, tag = 'input window, operand 8, single buffered']
    #allocation12 [shape = 's32[1]{0}', space=sflag, size = 0x4, scoped, tag = 'scoped memory for autoencoder_forward.1']
    #allocation13 [shape = 'u8[8192]{0}', space=vmem, size = 0x2000, scoped, tag = 'output window, operand 0, single buffered']
    %14 = vsyncpa [#allocation3], 0
    %15 = vsyncpa [#allocation6], 0
    %16 = vsyncpa [#allocation9], 0
    %17 = vsyncpa [#allocation12], 0
    %18 = vsyncpa [#allocation4], 0
    // Predicated region
    $region2: #{autoencoder_forward.1} parent=1 // pred_check
      _
    $region3: #{autoencoder_forward.1} parent=1 // pred_check_branch
      %20 = sbr.rel (0) target = $region5
    $region4: #{autoencoder_forward.1} parent=1 // pred_region
      _
    $region5: #{autoencoder_forward.1} parent=1 // pred_fallthru
      _
    // Predicated region
    $region6: #{autoencoder_forward.1} parent=1 // pred_check
      _
    $region7: #{autoencoder_forward.1} parent=1 // pred_check_branch
      %22 = sbr.rel (0) target = $region9
    $region8: #{autoencoder_forward.1} parent=1 // pred_region
      %s24 = ssub.s32 28672, 28672
      %25 = vsyncadd [#allocation3], %s24
      %s26 = sshll.u32 [#allocation2], 4
      %s27 = int_to_ptr.vmem [resolvable:$true] %s26
      %32 = dma.hbm_to_vmem [thread:$0]  %s1, 28672, %s27, [#allocation3], 256, 256, 16
    $region9: #{autoencoder_forward.1} parent=1 // pred_fallthru
      _
    // Predicated region
    $region10: #{autoencoder_forward.1} parent=1 // pred_check
      _
    $region11: #{autoencoder_forward.1} parent=1 // pred_check_branch
      %34 = sbr.rel (0) target = $region13
    $region12: #{autoencoder_forward.1} parent=1 // pred_region
      %s36 = ssub.s32 8192, 8192
      %37 = vsyncadd [#allocation6], %s36
      %s38 = sshll.u32 [#allocation5], 4
      %s39 = int_to_ptr.vmem [resolvable:$true] %s38
      %44 = dma.hbm_to_vmem [thread:$0]  %s2, 8192, %s39, [#allocation6], 128, 128, 8
    $region13: #{autoencoder_forward.1} parent=1 // pred_fallthru
      _
    // Predicated region
    $region14: #{autoencoder_forward.1} parent=1 // pred_check
      _
    $region15: #{autoencoder_forward.1} parent=1 // pred_check_branch
      %46 = sbr.rel (0) target = $region17
    $region16: #{autoencoder_forward.1} parent=1 // pred_region
      _
    $region17: #{autoencoder_forward.1} parent=1 // pred_fallthru
      _
    // Predicated region
    $region18: #{autoencoder_forward.1} parent=1 // pred_check
      _
    $region19: #{autoencoder_forward.1} parent=1 // pred_check_branch
      %48 = sbr.rel (0) target = $region21
    $region20: #{autoencoder_forward.1} parent=1 // pred_region
      _
    $region21: #{autoencoder_forward.1} parent=1 // pred_fallthru
      _
    // Predicated region
    $region22: #{autoencoder_forward.1} parent=1 // pred_check
      _
    $region23: #{autoencoder_forward.1} parent=1 // pred_check_branch
      %50 = sbr.rel (0) target = $region25
    $region24: #{autoencoder_forward.1} parent=1 // pred_region
      %s52 = ssub.s32 8192, 8192
      %53 = vsyncadd [#allocation6], %s52
      %s54 = sshll.u32 [#allocation7], 4
      %s55 = int_to_ptr.vmem [resolvable:$true] %s54
      %60 = dma.hbm_to_vmem [thread:$0]  %s5, 8192, %s55, [#allocation6], 256, 256, 16
    $region25: #{autoencoder_forward.1} parent=1 // pred_fallthru
      _
    // Predicated region
    $region26: #{autoencoder_forward.1} parent=1 // pred_check
      _
    $region27: #{autoencoder_forward.1} parent=1 // pred_check_branch
      %62 = sbr.rel (0) target = $region29
    $region28: #{autoencoder_forward.1} parent=1 // pred_region
      %s64 = ssub.s32 28672, 28672
      %65 = vsyncadd [#allocation9], %s64
      %s66 = sshll.u32 [#allocation8], 4
      %s67 = int_to_ptr.vmem [resolvable:$true] %s66
      %72 = dma.hbm_to_vmem [thread:$0]  %s6, 28672, %s67, [#allocation9], 448, 448, 28
    $region29: #{autoencoder_forward.1} parent=1 // pred_fallthru
      _
    // Predicated region
    $region30: #{autoencoder_forward.1} parent=1 // pred_check
      _
    $region31: #{autoencoder_forward.1} parent=1 // pred_check_branch
      %74 = sbr.rel (0) target = $region33
    $region32: #{autoencoder_forward.1} parent=1 // pred_region
      %s76 = ssub.s32 7168, 7168
      %77 = vsyncadd [#allocation9], %s76
      %s78 = sshll.u32 [#allocation10], 4
      %s79 = int_to_ptr.vmem [resolvable:$true] %s78
      %84 = dma.hbm_to_vmem [thread:$0]  %s7, 7168, %s79, [#allocation9], 64, 64, 4
    $region33: #{autoencoder_forward.1} parent=1 // pred_fallthru
      _
    // Predicated region
    $region34: #{autoencoder_forward.1} parent=1 // pred_check
      _
    $region35: #{autoencoder_forward.1} parent=1 // pred_check_branch
      %86 = sbr.rel (0) target = $region37
    $region36: #{autoencoder_forward.1} parent=1 // pred_region
      %s88 = ssub.s32 896, 896
      %89 = vsyncadd [#allocation12], %s88
      %s91 = sshll.u32 [#allocation11], 4
      %s92 = int_to_ptr.vmem [resolvable:$true] %s91
      %94 = dma.hbm_to_vmem [thread:$0]  %s8, 896, %s92, [#allocation12]
    $region37: #{autoencoder_forward.1} parent=1 // pred_fallthru
      _
    // Predicated region
    $region38: #{autoencoder_forward.1} parent=1 // pred_check
      _
    $region39: #{autoencoder_forward.1} parent=1 // pred_check_branch
      %96 = sbr.rel (0) target = $region41
    $region40: #{autoencoder_forward.1} parent=1 // pred_region
      %97 = dma.done [#allocation3], 28672
    $region41: #{autoencoder_forward.1} parent=1 // pred_fallthru
      _
    // Predicated region
    $region42: #{autoencoder_forward.1} parent=1 // pred_check
      _
    $region43: #{autoencoder_forward.1} parent=1 // pred_check_branch
      %99 = sbr.rel (0) target = $region45
    $region44: #{autoencoder_forward.1} parent=1 // pred_region
      %100 = dma.done [#allocation6], 8192
    $region45: #{autoencoder_forward.1} parent=1 // pred_fallthru
      _
    // Predicated region
    $region46: #{autoencoder_forward.1} parent=1 // pred_check
      _
    $region47: #{autoencoder_forward.1} parent=1 // pred_check_branch
      %102 = sbr.rel (0) target = $region49
    $region48: #{autoencoder_forward.1} parent=1 // pred_region
      %103 = dma.done [#allocation6], 8192
    $region49: #{autoencoder_forward.1} parent=1 // pred_fallthru
      _
    // Predicated region
    $region50: #{autoencoder_forward.1} parent=1 // pred_check
      _
    $region51: #{autoencoder_forward.1} parent=1 // pred_check_branch
      %105 = sbr.rel (0) target = $region53
    $region52: #{autoencoder_forward.1} parent=1 // pred_region
      %106 = dma.done [#allocation9], 28672
    $region53: #{autoencoder_forward.1} parent=1 // pred_fallthru
      _
    // Predicated region
    $region54: #{autoencoder_forward.1} parent=1 // pred_check
      _
    $region55: #{autoencoder_forward.1} parent=1 // pred_check_branch
      %108 = sbr.rel (0) target = $region57
    $region56: #{autoencoder_forward.1} parent=1 // pred_region
      %109 = dma.done [#allocation9], 7168
    $region57: #{autoencoder_forward.1} parent=1 // pred_fallthru
      _
    // Predicated region
    $region58: #{autoencoder_forward.1} parent=1 // pred_check
      _
    $region59: #{autoencoder_forward.1} parent=1 // pred_check_branch
      %111 = sbr.rel (0) target = $region61
    $region60: #{autoencoder_forward.1} parent=1 // pred_region
      %112 = dma.done [#allocation12], 896
    $region61: #{autoencoder_forward.1} parent=1 // pred_fallthru
      _
    %v114 = vld [vmem:[%s0] sm:$0xff]
    %v115 = vld [vmem:[%s0 + $0x8] sm:$0xff]
    %v116 = vld [vmem:[%s0 + $0x10] sm:$0xff]
    %v117 = vld [vmem:[%s0 + $0x18] sm:$0xf]
    %v118 = vld [vmem:[%s0 + $0x1c] sm:$0xff]
    %v119 = vld [vmem:[%s0 + $0x24] sm:$0xff]
    %v120 = vld [vmem:[%s0 + $0x2c] sm:$0xff]
    %v121 = vld [vmem:[%s0 + $0x34] sm:$0xf]
    %v122 = vld [vmem:[#allocation11] ss:$8 sm:$0xf]
    %v123 = vld [vmem:[#allocation2] sm:$0xff]
    %v124 = vld [vmem:[#allocation2 + $0x8] sm:$0xff]
    %v125 = vld [vmem:[#allocation2 + $0x10] sm:$0xff]
    %v126 = vld [vmem:[#allocation2 + $0x18] sm:$0xff]
    %v127 = vld [vmem:[#allocation2 + $0x20] sm:$0xff]
    %v128 = vld [vmem:[#allocation2 + $0x28] sm:$0xff]
    %v129 = vld [vmem:[#allocation2 + $0x30] sm:$0xff]
    %v130 = vld [vmem:[#allocation2 + $0x38] sm:$0xff]
    %v131 = vld [vmem:[#allocation2 + $0x40] sm:$0xff]
    %v132 = vld [vmem:[#allocation2 + $0x48] sm:$0xff]
    %v133 = vld [vmem:[#allocation2 + $0x50] sm:$0xff]
    %v134 = vld [vmem:[#allocation2 + $0x58] sm:$0xff]
    %v135 = vld [vmem:[#allocation2 + $0x60] sm:$0xff]
    %v136 = vld [vmem:[#allocation2 + $0x68] sm:$0xff]
    %v137 = vld [vmem:[#allocation2 + $0x70] sm:$0xff]
    %v138 = vld [vmem:[#allocation2 + $0x78] sm:$0xff]
    %v139 = vld [vmem:[#allocation2 + $0x80] sm:$0xff]
    %v140 = vld [vmem:[#allocation2 + $0x88] sm:$0xff]
    %v141 = vld [vmem:[#allocation2 + $0x90] sm:$0xff]
    %v142 = vld [vmem:[#allocation2 + $0x98] sm:$0xff]
    %v143 = vld [vmem:[#allocation2 + $0xa0] sm:$0xff]
    %v144 = vld [vmem:[#allocation2 + $0xa8] sm:$0xff]
    %v145 = vld [vmem:[#allocation2 + $0xb0] sm:$0xff]
    %v146 = vld [vmem:[#allocation2 + $0xb8] sm:$0xff]
    %v147 = vld [vmem:[#allocation2 + $0xc0] sm:$0xff]
    %v148 = vld [vmem:[#allocation2 + $0xc8] sm:$0xff]
    %v149 = vld [vmem:[#allocation2 + $0xd0] sm:$0xff]
    %v150 = vld [vmem:[#allocation2 + $0xd8] sm:$0xff]
    %v151 = vld [vmem:[#allocation2 + $0xe0] sm:$0xff]
    %v152 = vld [vmem:[#allocation2 + $0xe8] sm:$0xff]
    %v153 = vld [vmem:[#allocation2 + $0xf0] sm:$0xff]
    %v154 = vld [vmem:[#allocation2 + $0xf8] sm:$0xff]
    %v155 = vld [vmem:[#allocation2 + $0x100] sm:$0xff]
    %v156 = vld [vmem:[#allocation2 + $0x108] sm:$0xff]
    %v157 = vld [vmem:[#allocation2 + $0x110] sm:$0xff]
    %v158 = vld [vmem:[#allocation2 + $0x118] sm:$0xff]
    %v159 = vld [vmem:[#allocation2 + $0x120] sm:$0xff]
    %v160 = vld [vmem:[#allocation2 + $0x128] sm:$0xff]
    %v161 = vld [vmem:[#allocation2 + $0x130] sm:$0xff]
    %v162 = vld [vmem:[#allocation2 + $0x138] sm:$0xff]
    %v163 = vld [vmem:[#allocation2 + $0x140] sm:$0xff]
    %v164 = vld [vmem:[#allocation2 + $0x148] sm:$0xff]
    %v165 = vld [vmem:[#allocation2 + $0x150] sm:$0xff]
    %v166 = vld [vmem:[#allocation2 + $0x158] sm:$0xff]
    %v167 = vld [vmem:[#allocation2 + $0x160] sm:$0xff]
    %v168 = vld [vmem:[#allocation2 + $0x168] sm:$0xff]
    %v169 = vld [vmem:[#allocation2 + $0x170] sm:$0xff]
    %v170 = vld [vmem:[#allocation2 + $0x178] sm:$0xff]
    %v171 = vld [vmem:[#allocation2 + $0x180] sm:$0xff]
    %v172 = vld [vmem:[#allocation2 + $0x188] sm:$0xff]
    %v173 = vld [vmem:[#allocation2 + $0x190] sm:$0xff]
    %v174 = vld [vmem:[#allocation2 + $0x198] sm:$0xff]
    %v175 = vld [vmem:[#allocation2 + $0x1a0] sm:$0xff]
    %v176 = vld [vmem:[#allocation2 + $0x1a8] sm:$0xff]
    %v177 = vld [vmem:[#allocation2 + $0x1b0] sm:$0xff]
    %v178 = vld [vmem:[#allocation2 + $0x1b8] sm:$0xff]
    %v179 = vld [vmem:[#allocation2 + $0x1c0] sm:$0xff]
    %v180 = vld [vmem:[#allocation2 + $0x1c8] sm:$0xff]
    %v181 = vld [vmem:[#allocation2 + $0x1d0] sm:$0xff]
    %v182 = vld [vmem:[#allocation2 + $0x1d8] sm:$0xff]
    %v183 = vld [vmem:[#allocation2 + $0x1e0] sm:$0xff]
    %v184 = vld [vmem:[#allocation2 + $0x1e8] sm:$0xff]
    %v185 = vld [vmem:[#allocation2 + $0x1f0] sm:$0xff]
    %v186 = vld [vmem:[#allocation2 + $0x1f8] sm:$0xff]
    %v187 = vld [vmem:[#allocation2 + $0x200] sm:$0xff]
    %v188 = vld [vmem:[#allocation2 + $0x208] sm:$0xff]
    %v189 = vld [vmem:[#allocation2 + $0x210] sm:$0xff]
    %v190 = vld [vmem:[#allocation2 + $0x218] sm:$0xff]
    %v191 = vld [vmem:[#allocation2 + $0x220] sm:$0xff]
    %v192 = vld [vmem:[#allocation2 + $0x228] sm:$0xff]
    %v193 = vld [vmem:[#allocation2 + $0x230] sm:$0xff]
    %v194 = vld [vmem:[#allocation2 + $0x238] sm:$0xff]
    %v195 = vld [vmem:[#allocation2 + $0x240] sm:$0xff]
    %v196 = vld [vmem:[#allocation2 + $0x248] sm:$0xff]
    %v197 = vld [vmem:[#allocation2 + $0x250] sm:$0xff]
    %v198 = vld [vmem:[#allocation2 + $0x258] sm:$0xff]
    %v199 = vld [vmem:[#allocation2 + $0x260] sm:$0xff]
    %v200 = vld [vmem:[#allocation2 + $0x268] sm:$0xff]
    %v201 = vld [vmem:[#allocation2 + $0x270] sm:$0xff]
    %v202 = vld [vmem:[#allocation2 + $0x278] sm:$0xff]
    %v203 = vld [vmem:[#allocation2 + $0x280] sm:$0xff]
    %v204 = vld [vmem:[#allocation2 + $0x288] sm:$0xff]
    %v205 = vld [vmem:[#allocation2 + $0x290] sm:$0xff]
    %v206 = vld [vmem:[#allocation2 + $0x298] sm:$0xff]
    %v207 = vld [vmem:[#allocation2 + $0x2a0] sm:$0xff]
    %v208 = vld [vmem:[#allocation2 + $0x2a8] sm:$0xff]
    %v209 = vld [vmem:[#allocation2 + $0x2b0] sm:$0xff]
    %v210 = vld [vmem:[#allocation2 + $0x2b8] sm:$0xff]
    %v211 = vld [vmem:[#allocation2 + $0x2c0] sm:$0xff]
    %v212 = vld [vmem:[#allocation2 + $0x2c8] sm:$0xff]
    %v213 = vld [vmem:[#allocation2 + $0x2d0] sm:$0xff]
    %v214 = vld [vmem:[#allocation2 + $0x2d8] sm:$0xff]
    %v215 = vld [vmem:[#allocation2 + $0x2e0] sm:$0xff]
    %v216 = vld [vmem:[#allocation2 + $0x2e8] sm:$0xff]
    %v217 = vld [vmem:[#allocation2 + $0x2f0] sm:$0xff]
    %v218 = vld [vmem:[#allocation2 + $0x2f8] sm:$0xff]
    %v219 = vld [vmem:[#allocation2 + $0x300] sm:$0xff]
    %v220 = vld [vmem:[#allocation2 + $0x308] sm:$0xff]
    %v221 = vld [vmem:[#allocation2 + $0x310] sm:$0xff]
    %v222 = vld [vmem:[#allocation2 + $0x318] sm:$0xff]
    %v223 = vld [vmem:[#allocation2 + $0x320] sm:$0xff]
    %v224 = vld [vmem:[#allocation2 + $0x328] sm:$0xff]
    %v225 = vld [vmem:[#allocation2 + $0x330] sm:$0xff]
    %v226 = vld [vmem:[#allocation2 + $0x338] sm:$0xff]
    %v227 = vld [vmem:[#allocation2 + $0x340] sm:$0xff]
    %v228 = vld [vmem:[#allocation2 + $0x348] sm:$0xff]
    %v229 = vld [vmem:[#allocation2 + $0x350] sm:$0xff]
    %v230 = vld [vmem:[#allocation2 + $0x358] sm:$0xff]
    %v231 = vld [vmem:[#allocation2 + $0x360] sm:$0xff]
    %v232 = vld [vmem:[#allocation2 + $0x368] sm:$0xff]
    %v233 = vld [vmem:[#allocation2 + $0x370] sm:$0xff]
    %v234 = vld [vmem:[#allocation2 + $0x378] sm:$0xff]
    %v235 = vld [vmem:[#allocation2 + $0x380] sm:$0xff]
    %v236 = vld [vmem:[#allocation2 + $0x388] sm:$0xff]
    %v237 = vld [vmem:[#allocation2 + $0x390] sm:$0xff]
    %v238 = vld [vmem:[#allocation2 + $0x398] sm:$0xff]
    %v239 = vld [vmem:[#allocation2 + $0x3a0] sm:$0xff]
    %v240 = vld [vmem:[#allocation2 + $0x3a8] sm:$0xff]
    %v241 = vld [vmem:[#allocation2 + $0x3b0] sm:$0xff]
    %v242 = vld [vmem:[#allocation2 + $0x3b8] sm:$0xff]
    %v243 = vld [vmem:[#allocation2 + $0x3c0] sm:$0xff]
    %v244 = vld [vmem:[#allocation2 + $0x3c8] sm:$0xff]
    %v245 = vld [vmem:[#allocation2 + $0x3d0] sm:$0xff]
    %v246 = vld [vmem:[#allocation2 + $0x3d8] sm:$0xff]
    %v247 = vld [vmem:[#allocation2 + $0x3e0] sm:$0xff]
    %v248 = vld [vmem:[#allocation2 + $0x3e8] sm:$0xff]
    %v249 = vld [vmem:[#allocation2 + $0x3f0] sm:$0xff]
    %v250 = vld [vmem:[#allocation2 + $0x3f8] sm:$0xff]
    %v251 = vld [vmem:[#allocation2 + $0x400] sm:$0xff]
    %v252 = vld [vmem:[#allocation2 + $0x408] sm:$0xff]
    %v253 = vld [vmem:[#allocation2 + $0x410] sm:$0xff]
    %v254 = vld [vmem:[#allocation2 + $0x418] sm:$0xff]
    %v255 = vld [vmem:[#allocation2 + $0x420] sm:$0xff]
    %v256 = vld [vmem:[#allocation2 + $0x428] sm:$0xff]
    %v257 = vld [vmem:[#allocation2 + $0x430] sm:$0xff]
    %v258 = vld [vmem:[#allocation2 + $0x438] sm:$0xff]
    %v259 = vld [vmem:[#allocation2 + $0x440] sm:$0xff]
    %v260 = vld [vmem:[#allocation2 + $0x448] sm:$0xff]
    %v261 = vld [vmem:[#allocation2 + $0x450] sm:$0xff]
    %v262 = vld [vmem:[#allocation2 + $0x458] sm:$0xff]
    %v263 = vld [vmem:[#allocation2 + $0x460] sm:$0xff]
    %v264 = vld [vmem:[#allocation2 + $0x468] sm:$0xff]
    %v265 = vld [vmem:[#allocation2 + $0x470] sm:$0xff]
    %v266 = vld [vmem:[#allocation2 + $0x478] sm:$0xff]
    %v267 = vld [vmem:[#allocation2 + $0x480] sm:$0xff]
    %v268 = vld [vmem:[#allocation2 + $0x488] sm:$0xff]
    %v269 = vld [vmem:[#allocation2 + $0x490] sm:$0xff]
    %v270 = vld [vmem:[#allocation2 + $0x498] sm:$0xff]
    %v271 = vld [vmem:[#allocation2 + $0x4a0] sm:$0xff]
    %v272 = vld [vmem:[#allocation2 + $0x4a8] sm:$0xff]
    %v273 = vld [vmem:[#allocation2 + $0x4b0] sm:$0xff]
    %v274 = vld [vmem:[#allocation2 + $0x4b8] sm:$0xff]
    %v275 = vld [vmem:[#allocation2 + $0x4c0] sm:$0xff]
    %v276 = vld [vmem:[#allocation2 + $0x4c8] sm:$0xff]
    %v277 = vld [vmem:[#allocation2 + $0x4d0] sm:$0xff]
    %v278 = vld [vmem:[#allocation2 + $0x4d8] sm:$0xff]
    %v279 = vld [vmem:[#allocation2 + $0x4e0] sm:$0xff]
    %v280 = vld [vmem:[#allocation2 + $0x4e8] sm:$0xff]
    %v281 = vld [vmem:[#allocation2 + $0x4f0] sm:$0xff]
    %v282 = vld [vmem:[#allocation2 + $0x4f8] sm:$0xff]
    %v283 = vld [vmem:[#allocation2 + $0x500] sm:$0xff]
    %v284 = vld [vmem:[#allocation2 + $0x508] sm:$0xff]
    %v285 = vld [vmem:[#allocation2 + $0x510] sm:$0xff]
    %v286 = vld [vmem:[#allocation2 + $0x518] sm:$0xff]
    %v287 = vld [vmem:[#allocation2 + $0x520] sm:$0xff]
    %v288 = vld [vmem:[#allocation2 + $0x528] sm:$0xff]
    %v289 = vld [vmem:[#allocation2 + $0x530] sm:$0xff]
    %v290 = vld [vmem:[#allocation2 + $0x538] sm:$0xff]
    %v291 = vld [vmem:[#allocation2 + $0x540] sm:$0xff]
    %v292 = vld [vmem:[#allocation2 + $0x548] sm:$0xff]
    %v293 = vld [vmem:[#allocation2 + $0x550] sm:$0xff]
    %v294 = vld [vmem:[#allocation2 + $0x558] sm:$0xff]
    %v295 = vld [vmem:[#allocation2 + $0x560] sm:$0xff]
    %v296 = vld [vmem:[#allocation2 + $0x568] sm:$0xff]
    %v297 = vld [vmem:[#allocation2 + $0x570] sm:$0xff]
    %v298 = vld [vmem:[#allocation2 + $0x578] sm:$0xff]
    %v299 = vld [vmem:[#allocation2 + $0x580] sm:$0xff]
    %v300 = vld [vmem:[#allocation2 + $0x588] sm:$0xff]
    %v301 = vld [vmem:[#allocation2 + $0x590] sm:$0xff]
    %v302 = vld [vmem:[#allocation2 + $0x598] sm:$0xff]
    %v303 = vld [vmem:[#allocation2 + $0x5a0] sm:$0xff]
    %v304 = vld [vmem:[#allocation2 + $0x5a8] sm:$0xff]
    %v305 = vld [vmem:[#allocation2 + $0x5b0] sm:$0xff]
    %v306 = vld [vmem:[#allocation2 + $0x5b8] sm:$0xff]
    %v307 = vld [vmem:[#allocation2 + $0x5c0] sm:$0xff]
    %v308 = vld [vmem:[#allocation2 + $0x5c8] sm:$0xff]
    %v309 = vld [vmem:[#allocation2 + $0x5d0] sm:$0xff]
    %v310 = vld [vmem:[#allocation2 + $0x5d8] sm:$0xff]
    %v311 = vld [vmem:[#allocation2 + $0x5e0] sm:$0xff]
    %v312 = vld [vmem:[#allocation2 + $0x5e8] sm:$0xff]
    %v313 = vld [vmem:[#allocation2 + $0x5f0] sm:$0xff]
    %v314 = vld [vmem:[#allocation2 + $0x5f8] sm:$0xff]
    %v315 = vld [vmem:[#allocation2 + $0x600] sm:$0xff]
    %v316 = vld [vmem:[#allocation2 + $0x608] sm:$0xff]
    %v317 = vld [vmem:[#allocation2 + $0x610] sm:$0xff]
    %v318 = vld [vmem:[#allocation2 + $0x618] sm:$0xff]
    %v319 = vld [vmem:[#allocation2 + $0x620] sm:$0xff]
    %v320 = vld [vmem:[#allocation2 + $0x628] sm:$0xff]
    %v321 = vld [vmem:[#allocation2 + $0x630] sm:$0xff]
    %v322 = vld [vmem:[#allocation2 + $0x638] sm:$0xff]
    %v323 = vld [vmem:[#allocation2 + $0x640] sm:$0xff]
    %v324 = vld [vmem:[#allocation2 + $0x648] sm:$0xff]
    %v325 = vld [vmem:[#allocation2 + $0x650] sm:$0xff]
    %v326 = vld [vmem:[#allocation2 + $0x658] sm:$0xff]
    %v327 = vld [vmem:[#allocation2 + $0x660] sm:$0xff]
    %v328 = vld [vmem:[#allocation2 + $0x668] sm:$0xff]
    %v329 = vld [vmem:[#allocation2 + $0x670] sm:$0xff]
    %v330 = vld [vmem:[#allocation2 + $0x678] sm:$0xff]
    %v331 = vld [vmem:[#allocation2 + $0x680] sm:$0xff]
    %v332 = vld [vmem:[#allocation2 + $0x688] sm:$0xff]
    %v333 = vld [vmem:[#allocation2 + $0x690] sm:$0xff]
    %v334 = vld [vmem:[#allocation2 + $0x698] sm:$0xff]
    %v335 = vld [vmem:[#allocation2 + $0x6a0] sm:$0xff]
    %v336 = vld [vmem:[#allocation2 + $0x6a8] sm:$0xff]
    %v337 = vld [vmem:[#allocation2 + $0x6b0] sm:$0xff]
    %v338 = vld [vmem:[#allocation2 + $0x6b8] sm:$0xff]
    %v339 = vld [vmem:[#allocation2 + $0x6c0] sm:$0xff]
    %v340 = vld [vmem:[#allocation2 + $0x6c8] sm:$0xff]
    %v341 = vld [vmem:[#allocation2 + $0x6d0] sm:$0xff]
    %v342 = vld [vmem:[#allocation2 + $0x6d8] sm:$0xff]
    %v343 = vld [vmem:[#allocation2 + $0x6e0] sm:$0xff]
    %v344 = vld [vmem:[#allocation2 + $0x6e8] sm:$0xff]
    %v345 = vld [vmem:[#allocation2 + $0x6f0] sm:$0xff]
    %v346 = vld [vmem:[#allocation2 + $0x6f8] sm:$0xff]
    %v348 = vlaneseq
    %v349 = vshrl.u32 %v348, 7
    %v350 = vsub.s32 0, %v349
    %v351 = vrot.slane %v122, %v350
    %v352 = vlaneseq
    %v353 = vshrl.u32 %v352, 7
    %v354 = vsub.s32 1, %v353
    %v355 = vrot.slane %v122, %v354
    %v356 = vlaneseq
    %v357 = vshrl.u32 %v356, 7
    %v358 = vsub.s32 2, %v357
    %v359 = vrot.slane %v122, %v358
    %v360 = vlaneseq
    %v361 = vshrl.u32 %v360, 7
    %v362 = vsub.s32 3, %v361
    %v363 = vrot.slane %v122, %v362
    %v376 = vunpack.c.l.b16 %v114
    %v377 = vunpack.c.h.b16 %v114
    %v378 = vunpack.c.l.b16 %v115
    %v379 = vunpack.c.h.b16 %v115
    %v380 = vunpack.c.l.b16 %v116
    %v381 = vunpack.c.h.b16 %v116
    %v382 = vunpack.c.l.b16 %v117
    %v383 = vunpack.c.l.b16 %v118
    %v384 = vunpack.c.h.b16 %v118
    %v385 = vunpack.c.l.b16 %v119
    %v386 = vunpack.c.h.b16 %v119
    %v387 = vunpack.c.l.b16 %v120
    %v388 = vunpack.c.h.b16 %v120
    %v389 = vunpack.c.l.b16 %v121
    %v390 = vpack.c.b16 %v383, %v376
    %v391 = vpack.c.b16 %v384, %v377
    %v392 = vpack.c.b16 %v385, %v378
    %v393 = vpack.c.b16 %v386, %v379
    %v394 = vpack.c.b16 %v387, %v380
    %v395 = vpack.c.b16 %v388, %v381
    %v396 = vpack.c.b16 %v389, %v382
    %v628 = vunpack.c.l.b16 %v123
    %v629 = vunpack.c.h.b16 %v123
    %v630 = vunpack.c.l.b16 %v124
    %v631 = vunpack.c.h.b16 %v124
    %v632 = vunpack.c.l.b16 %v125
    %v633 = vunpack.c.h.b16 %v125
    %v634 = vunpack.c.l.b16 %v126
    %v635 = vunpack.c.h.b16 %v126
    %v636 = vunpack.c.l.b16 %v127
    %v637 = vunpack.c.h.b16 %v127
    %v638 = vunpack.c.l.b16 %v128
    %v639 = vunpack.c.h.b16 %v128
    %v640 = vunpack.c.l.b16 %v129
    %v641 = vunpack.c.h.b16 %v129
    %v642 = vunpack.c.l.b16 %v130
    %v643 = vunpack.c.h.b16 %v130
    %v644 = vunpack.c.l.b16 %v131
    %v645 = vunpack.c.h.b16 %v131
    %v646 = vunpack.c.l.b16 %v132
    %v647 = vunpack.c.h.b16 %v132
    %v648 = vunpack.c.l.b16 %v133
    %v649 = vunpack.c.h.b16 %v133
    %v650 = vunpack.c.l.b16 %v134
    %v651 = vunpack.c.h.b16 %v134
    %v652 = vunpack.c.l.b16 %v135
    %v653 = vunpack.c.h.b16 %v135
    %v654 = vunpack.c.l.b16 %v136
    %v655 = vunpack.c.h.b16 %v136
    %v656 = vunpack.c.l.b16 %v137
    %v657 = vunpack.c.h.b16 %v137
    %v658 = vunpack.c.l.b16 %v138
    %v659 = vunpack.c.h.b16 %v138
    %v660 = vunpack.c.l.b16 %v139
    %v661 = vunpack.c.h.b16 %v139
    %v662 = vunpack.c.l.b16 %v140
    %v663 = vunpack.c.h.b16 %v140
    %v664 = vunpack.c.l.b16 %v141
    %v665 = vunpack.c.h.b16 %v141
    %v666 = vunpack.c.l.b16 %v142
    %v667 = vunpack.c.h.b16 %v142
    %v668 = vunpack.c.l.b16 %v143
    %v669 = vunpack.c.h.b16 %v143
    %v670 = vunpack.c.l.b16 %v144
    %v671 = vunpack.c.h.b16 %v144
    %v672 = vunpack.c.l.b16 %v145
    %v673 = vunpack.c.h.b16 %v145
    %v674 = vunpack.c.l.b16 %v146
    %v675 = vunpack.c.h.b16 %v146
    %v676 = vunpack.c.l.b16 %v147
    %v677 = vunpack.c.h.b16 %v147
    %v678 = vunpack.c.l.b16 %v148
    %v679 = vunpack.c.h.b16 %v148
    %v680 = vunpack.c.l.b16 %v149
    %v681 = vunpack.c.h.b16 %v149
    %v682 = vunpack.c.l.b16 %v150
    %v683 = vunpack.c.h.b16 %v150
    %v684 = vunpack.c.l.b16 %v151
    %v685 = vunpack.c.h.b16 %v151
    %v686 = vunpack.c.l.b16 %v152
    %v687 = vunpack.c.h.b16 %v152
    %v688 = vunpack.c.l.b16 %v153
    %v689 = vunpack.c.h.b16 %v153
    %v690 = vunpack.c.l.b16 %v154
    %v691 = vunpack.c.h.b16 %v154
    %v692 = vunpack.c.l.b16 %v155
    %v693 = vunpack.c.h.b16 %v155
    %v694 = vunpack.c.l.b16 %v156
    %v695 = vunpack.c.h.b16 %v156
    %v696 = vunpack.c.l.b16 %v157
    %v697 = vunpack.c.h.b16 %v157
    %v698 = vunpack.c.l.b16 %v158
    %v699 = vunpack.c.h.b16 %v158
    %v700 = vunpack.c.l.b16 %v159
    %v701 = vunpack.c.h.b16 %v159
    %v702 = vunpack.c.l.b16 %v160
    %v703 = vunpack.c.h.b16 %v160
    %v704 = vunpack.c.l.b16 %v161
    %v705 = vunpack.c.h.b16 %v161
    %v706 = vunpack.c.l.b16 %v162
    %v707 = vunpack.c.h.b16 %v162
    %v708 = vunpack.c.l.b16 %v163
    %v709 = vunpack.c.h.b16 %v163
    %v710 = vunpack.c.l.b16 %v164
    %v711 = vunpack.c.h.b16 %v164
    %v712 = vunpack.c.l.b16 %v165
    %v713 = vunpack.c.h.b16 %v165
    %v714 = vunpack.c.l.b16 %v166
    %v715 = vunpack.c.h.b16 %v166
    %v716 = vunpack.c.l.b16 %v167
    %v717 = vunpack.c.h.b16 %v167
    %v718 = vunpack.c.l.b16 %v168
    %v719 = vunpack.c.h.b16 %v168
    %v720 = vunpack.c.l.b16 %v169
    %v721 = vunpack.c.h.b16 %v169
    %v722 = vunpack.c.l.b16 %v170
    %v723 = vunpack.c.h.b16 %v170
    %v724 = vunpack.c.l.b16 %v171
    %v725 = vunpack.c.h.b16 %v171
    %v726 = vunpack.c.l.b16 %v172
    %v727 = vunpack.c.h.b16 %v172
    %v728 = vunpack.c.l.b16 %v173
    %v729 = vunpack.c.h.b16 %v173
    %v730 = vunpack.c.l.b16 %v174
    %v731 = vunpack.c.h.b16 %v174
    %v732 = vunpack.c.l.b16 %v175
    %v733 = vunpack.c.h.b16 %v175
    %v734 = vunpack.c.l.b16 %v176
    %v735 = vunpack.c.h.b16 %v176
    %v736 = vunpack.c.l.b16 %v177
    %v737 = vunpack.c.h.b16 %v177
    %v738 = vunpack.c.l.b16 %v178
    %v739 = vunpack.c.h.b16 %v178
    %v740 = vunpack.c.l.b16 %v179
    %v741 = vunpack.c.h.b16 %v179
    %v742 = vunpack.c.l.b16 %v180
    %v743 = vunpack.c.h.b16 %v180
    %v744 = vunpack.c.l.b16 %v181
    %v745 = vunpack.c.h.b16 %v181
    %v746 = vunpack.c.l.b16 %v182
    %v747 = vunpack.c.h.b16 %v182
    %v748 = vunpack.c.l.b16 %v183
    %v749 = vunpack.c.h.b16 %v183
    %v750 = vunpack.c.l.b16 %v184
    %v751 = vunpack.c.h.b16 %v184
    %v752 = vunpack.c.l.b16 %v185
    %v753 = vunpack.c.h.b16 %v185
    %v754 = vunpack.c.l.b16 %v186
    %v755 = vunpack.c.h.b16 %v186
    %v756 = vunpack.c.l.b16 %v187
    %v757 = vunpack.c.h.b16 %v187
    %v758 = vunpack.c.l.b16 %v188
    %v759 = vunpack.c.h.b16 %v188
    %v760 = vunpack.c.l.b16 %v189
    %v761 = vunpack.c.h.b16 %v189
    %v762 = vunpack.c.l.b16 %v190
    %v763 = vunpack.c.h.b16 %v190
    %v764 = vunpack.c.l.b16 %v191
    %v765 = vunpack.c.h.b16 %v191
    %v766 = vunpack.c.l.b16 %v192
    %v767 = vunpack.c.h.b16 %v192
    %v768 = vunpack.c.l.b16 %v193
    %v769 = vunpack.c.h.b16 %v193
    %v770 = vunpack.c.l.b16 %v194
    %v771 = vunpack.c.h.b16 %v194
    %v772 = vunpack.c.l.b16 %v195
    %v773 = vunpack.c.h.b16 %v195
    %v774 = vunpack.c.l.b16 %v196
    %v775 = vunpack.c.h.b16 %v196
    %v776 = vunpack.c.l.b16 %v197
    %v777 = vunpack.c.h.b16 %v197
    %v778 = vunpack.c.l.b16 %v198
    %v779 = vunpack.c.h.b16 %v198
    %v780 = vunpack.c.l.b16 %v199
    %v781 = vunpack.c.h.b16 %v199
    %v782 = vunpack.c.l.b16 %v200
    %v783 = vunpack.c.h.b16 %v200
    %v784 = vunpack.c.l.b16 %v201
    %v785 = vunpack.c.h.b16 %v201
    %v786 = vunpack.c.l.b16 %v202
    %v787 = vunpack.c.h.b16 %v202
    %v788 = vunpack.c.l.b16 %v203
    %v789 = vunpack.c.h.b16 %v203
    %v790 = vunpack.c.l.b16 %v204
    %v791 = vunpack.c.h.b16 %v204
    %v792 = vunpack.c.l.b16 %v205
    %v793 = vunpack.c.h.b16 %v205
    %v794 = vunpack.c.l.b16 %v206
    %v795 = vunpack.c.h.b16 %v206
    %v796 = vunpack.c.l.b16 %v207
    %v797 = vunpack.c.h.b16 %v207
    %v798 = vunpack.c.l.b16 %v208
    %v799 = vunpack.c.h.b16 %v208
    %v800 = vunpack.c.l.b16 %v209
    %v801 = vunpack.c.h.b16 %v209
    %v802 = vunpack.c.l.b16 %v210
    %v803 = vunpack.c.h.b16 %v210
    %v804 = vunpack.c.l.b16 %v211
    %v805 = vunpack.c.h.b16 %v211
    %v806 = vunpack.c.l.b16 %v212
    %v807 = vunpack.c.h.b16 %v212
    %v808 = vunpack.c.l.b16 %v213
    %v809 = vunpack.c.h.b16 %v213
    %v810 = vunpack.c.l.b16 %v214
    %v811 = vunpack.c.h.b16 %v214
    %v812 = vunpack.c.l.b16 %v215
    %v813 = vunpack.c.h.b16 %v215
    %v814 = vunpack.c.l.b16 %v216
    %v815 = vunpack.c.h.b16 %v216
    %v816 = vunpack.c.l.b16 %v217
    %v817 = vunpack.c.h.b16 %v217
    %v818 = vunpack.c.l.b16 %v218
    %v819 = vunpack.c.h.b16 %v218
    %v820 = vunpack.c.l.b16 %v219
    %v821 = vunpack.c.h.b16 %v219
    %v822 = vunpack.c.l.b16 %v220
    %v823 = vunpack.c.h.b16 %v220
    %v824 = vunpack.c.l.b16 %v221
    %v825 = vunpack.c.h.b16 %v221
    %v826 = vunpack.c.l.b16 %v222
    %v827 = vunpack.c.h.b16 %v222
    %v828 = vunpack.c.l.b16 %v223
    %v829 = vunpack.c.h.b16 %v223
    %v830 = vunpack.c.l.b16 %v224
    %v831 = vunpack.c.h.b16 %v224
    %v832 = vunpack.c.l.b16 %v225
    %v833 = vunpack.c.h.b16 %v225
    %v834 = vunpack.c.l.b16 %v226
    %v835 = vunpack.c.h.b16 %v226
    %v836 = vunpack.c.l.b16 %v227
    %v837 = vunpack.c.h.b16 %v227
    %v838 = vunpack.c.l.b16 %v228
    %v839 = vunpack.c.h.b16 %v228
    %v840 = vunpack.c.l.b16 %v229
    %v841 = vunpack.c.h.b16 %v229
    %v842 = vunpack.c.l.b16 %v230
    %v843 = vunpack.c.h.b16 %v230
    %v844 = vunpack.c.l.b16 %v231
    %v845 = vunpack.c.h.b16 %v231
    %v846 = vunpack.c.l.b16 %v232
    %v847 = vunpack.c.h.b16 %v232
    %v848 = vunpack.c.l.b16 %v233
    %v849 = vunpack.c.h.b16 %v233
    %v850 = vunpack.c.l.b16 %v234
    %v851 = vunpack.c.h.b16 %v234
    %v852 = vunpack.c.l.b16 %v235
    %v853 = vunpack.c.h.b16 %v235
    %v854 = vunpack.c.l.b16 %v236
    %v855 = vunpack.c.h.b16 %v236
    %v856 = vunpack.c.l.b16 %v237
    %v857 = vunpack.c.h.b16 %v237
    %v858 = vunpack.c.l.b16 %v238
    %v859 = vunpack.c.h.b16 %v238
    %v860 = vunpack.c.l.b16 %v239
    %v861 = vunpack.c.h.b16 %v239
    %v862 = vunpack.c.l.b16 %v240
    %v863 = vunpack.c.h.b16 %v240
    %v864 = vunpack.c.l.b16 %v241
    %v865 = vunpack.c.h.b16 %v241
    %v866 = vunpack.c.l.b16 %v242
    %v867 = vunpack.c.h.b16 %v242
    %v868 = vunpack.c.l.b16 %v243
    %v869 = vunpack.c.h.b16 %v243
    %v870 = vunpack.c.l.b16 %v244
    %v871 = vunpack.c.h.b16 %v244
    %v872 = vunpack.c.l.b16 %v245
    %v873 = vunpack.c.h.b16 %v245
    %v874 = vunpack.c.l.b16 %v246
    %v875 = vunpack.c.h.b16 %v246
    %v876 = vunpack.c.l.b16 %v247
    %v877 = vunpack.c.h.b16 %v247
    %v878 = vunpack.c.l.b16 %v248
    %v879 = vunpack.c.h.b16 %v248
    %v880 = vunpack.c.l.b16 %v249
    %v881 = vunpack.c.h.b16 %v249
    %v882 = vunpack.c.l.b16 %v250
    %v883 = vunpack.c.h.b16 %v250
    %v884 = vunpack.c.l.b16 %v251
    %v885 = vunpack.c.h.b16 %v251
    %v886 = vunpack.c.l.b16 %v252
    %v887 = vunpack.c.h.b16 %v252
    %v888 = vunpack.c.l.b16 %v253
    %v889 = vunpack.c.h.b16 %v253
    %v890 = vunpack.c.l.b16 %v254
    %v891 = vunpack.c.h.b16 %v254
    %v892 = vunpack.c.l.b16 %v255
    %v893 = vunpack.c.h.b16 %v255
    %v894 = vunpack.c.l.b16 %v256
    %v895 = vunpack.c.h.b16 %v256
    %v896 = vunpack.c.l.b16 %v257
    %v897 = vunpack.c.h.b16 %v257
    %v898 = vunpack.c.l.b16 %v258
    %v899 = vunpack.c.h.b16 %v258
    %v900 = vunpack.c.l.b16 %v259
    %v901 = vunpack.c.h.b16 %v259
    %v902 = vunpack.c.l.b16 %v260
    %v903 = vunpack.c.h.b16 %v260
    %v904 = vunpack.c.l.b16 %v261
    %v905 = vunpack.c.h.b16 %v261
    %v906 = vunpack.c.l.b16 %v262
    %v907 = vunpack.c.h.b16 %v262
    %v908 = vunpack.c.l.b16 %v263
    %v909 = vunpack.c.h.b16 %v263
    %v910 = vunpack.c.l.b16 %v264
    %v911 = vunpack.c.h.b16 %v264
    %v912 = vunpack.c.l.b16 %v265
    %v913 = vunpack.c.h.b16 %v265
    %v914 = vunpack.c.l.b16 %v266
    %v915 = vunpack.c.h.b16 %v266
    %v916 = vunpack.c.l.b16 %v267
    %v917 = vunpack.c.h.b16 %v267
    %v918 = vunpack.c.l.b16 %v268
    %v919 = vunpack.c.h.b16 %v268
    %v920 = vunpack.c.l.b16 %v269
    %v921 = vunpack.c.h.b16 %v269
    %v922 = vunpack.c.l.b16 %v270
    %v923 = vunpack.c.h.b16 %v270
    %v924 = vunpack.c.l.b16 %v271
    %v925 = vunpack.c.h.b16 %v271
    %v926 = vunpack.c.l.b16 %v272
    %v927 = vunpack.c.h.b16 %v272
    %v928 = vunpack.c.l.b16 %v273
    %v929 = vunpack.c.h.b16 %v273
    %v930 = vunpack.c.l.b16 %v274
    %v931 = vunpack.c.h.b16 %v274
    %v932 = vunpack.c.l.b16 %v275
    %v933 = vunpack.c.h.b16 %v275
    %v934 = vunpack.c.l.b16 %v276
    %v935 = vunpack.c.h.b16 %v276
    %v936 = vunpack.c.l.b16 %v277
    %v937 = vunpack.c.h.b16 %v277
    %v938 = vunpack.c.l.b16 %v278
    %v939 = vunpack.c.h.b16 %v278
    %v940 = vunpack.c.l.b16 %v279
    %v941 = vunpack.c.h.b16 %v279
    %v942 = vunpack.c.l.b16 %v280
    %v943 = vunpack.c.h.b16 %v280
    %v944 = vunpack.c.l.b16 %v281
    %v945 = vunpack.c.h.b16 %v281
    %v946 = vunpack.c.l.b16 %v282
    %v947 = vunpack.c.h.b16 %v282
    %v948 = vunpack.c.l.b16 %v283
    %v949 = vunpack.c.h.b16 %v283
    %v950 = vunpack.c.l.b16 %v284
    %v951 = vunpack.c.h.b16 %v284
    %v952 = vunpack.c.l.b16 %v285
    %v953 = vunpack.c.h.b16 %v285
    %v954 = vunpack.c.l.b16 %v286
    %v955 = vunpack.c.h.b16 %v286
    %v956 = vunpack.c.l.b16 %v287
    %v957 = vunpack.c.h.b16 %v287
    %v958 = vunpack.c.l.b16 %v288
    %v959 = vunpack.c.h.b16 %v288
    %v960 = vunpack.c.l.b16 %v289
    %v961 = vunpack.c.h.b16 %v289
    %v962 = vunpack.c.l.b16 %v290
    %v963 = vunpack.c.h.b16 %v290
    %v964 = vunpack.c.l.b16 %v291
    %v965 = vunpack.c.h.b16 %v291
    %v966 = vunpack.c.l.b16 %v292
    %v967 = vunpack.c.h.b16 %v292
    %v968 = vunpack.c.l.b16 %v293
    %v969 = vunpack.c.h.b16 %v293
    %v970 = vunpack.c.l.b16 %v294
    %v971 = vunpack.c.h.b16 %v294
    %v972 = vunpack.c.l.b16 %v295
    %v973 = vunpack.c.h.b16 %v295
    %v974 = vunpack.c.l.b16 %v296
    %v975 = vunpack.c.h.b16 %v296
    %v976 = vunpack.c.l.b16 %v297
    %v977 = vunpack.c.h.b16 %v297
    %v978 = vunpack.c.l.b16 %v298
    %v979 = vunpack.c.h.b16 %v298
    %v980 = vunpack.c.l.b16 %v299
    %v981 = vunpack.c.h.b16 %v299
    %v982 = vunpack.c.l.b16 %v300
    %v983 = vunpack.c.h.b16 %v300
    %v984 = vunpack.c.l.b16 %v301
    %v985 = vunpack.c.h.b16 %v301
    %v986 = vunpack.c.l.b16 %v302
    %v987 = vunpack.c.h.b16 %v302
    %v988 = vunpack.c.l.b16 %v303
    %v989 = vunpack.c.h.b16 %v303
    %v990 = vunpack.c.l.b16 %v304
    %v991 = vunpack.c.h.b16 %v304
    %v992 = vunpack.c.l.b16 %v305
    %v993 = vunpack.c.h.b16 %v305
    %v994 = vunpack.c.l.b16 %v306
    %v995 = vunpack.c.h.b16 %v306
    %v996 = vunpack.c.l.b16 %v307
    %v997 = vunpack.c.h.b16 %v307
    %v998 = vunpack.c.l.b16 %v308
    %v999 = vunpack.c.h.b16 %v308
    %v1000 = vunpack.c.l.b16 %v309
    %v1001 = vunpack.c.h.b16 %v309
    %v1002 = vunpack.c.l.b16 %v310
    %v1003 = vunpack.c.h.b16 %v310
    %v1004 = vunpack.c.l.b16 %v311
    %v1005 = vunpack.c.h.b16 %v311
    %v1006 = vunpack.c.l.b16 %v312
    %v1007 = vunpack.c.h.b16 %v312
    %v1008 = vunpack.c.l.b16 %v313
    %v1009 = vunpack.c.h.b16 %v313
    %v1010 = vunpack.c.l.b16 %v314
    %v1011 = vunpack.c.h.b16 %v314
    %v1012 = vunpack.c.l.b16 %v315
    %v1013 = vunpack.c.h.b16 %v315
    %v1014 = vunpack.c.l.b16 %v316
    %v1015 = vunpack.c.h.b16 %v316
    %v1016 = vunpack.c.l.b16 %v317
    %v1017 = vunpack.c.h.b16 %v317
    %v1018 = vunpack.c.l.b16 %v318
    %v1019 = vunpack.c.h.b16 %v318
    %v1020 = vunpack.c.l.b16 %v319
    %v1021 = vunpack.c.h.b16 %v319
    %v1022 = vunpack.c.l.b16 %v320
    %v1023 = vunpack.c.h.b16 %v320
    %v1024 = vunpack.c.l.b16 %v321
    %v1025 = vunpack.c.h.b16 %v321
    %v1026 = vunpack.c.l.b16 %v322
    %v1027 = vunpack.c.h.b16 %v322
    %v1028 = vunpack.c.l.b16 %v323
    %v1029 = vunpack.c.h.b16 %v323
    %v1030 = vunpack.c.l.b16 %v324
    %v1031 = vunpack.c.h.b16 %v324
    %v1032 = vunpack.c.l.b16 %v325
    %v1033 = vunpack.c.h.b16 %v325
    %v1034 = vunpack.c.l.b16 %v326
    %v1035 = vunpack.c.h.b16 %v326
    %v1036 = vunpack.c.l.b16 %v327
    %v1037 = vunpack.c.h.b16 %v327
    %v1038 = vunpack.c.l.b16 %v328
    %v1039 = vunpack.c.h.b16 %v328
    %v1040 = vunpack.c.l.b16 %v329
    %v1041 = vunpack.c.h.b16 %v329
    %v1042 = vunpack.c.l.b16 %v330
    %v1043 = vunpack.c.h.b16 %v330
    %v1044 = vunpack.c.l.b16 %v331
    %v1045 = vunpack.c.h.b16 %v331
    %v1046 = vunpack.c.l.b16 %v332
    %v1047 = vunpack.c.h.b16 %v332
    %v1048 = vunpack.c.l.b16 %v333
    %v1049 = vunpack.c.h.b16 %v333
    %v1050 = vunpack.c.l.b16 %v334
    %v1051 = vunpack.c.h.b16 %v334
    %v1052 = vunpack.c.l.b16 %v335
    %v1053 = vunpack.c.h.b16 %v335
    %v1054 = vunpack.c.l.b16 %v336
    %v1055 = vunpack.c.h.b16 %v336
    %v1056 = vunpack.c.l.b16 %v337
    %v1057 = vunpack.c.h.b16 %v337
    %v1058 = vunpack.c.l.b16 %v338
    %v1059 = vunpack.c.h.b16 %v338
    %v1060 = vunpack.c.l.b16 %v339
    %v1061 = vunpack.c.h.b16 %v339
    %v1062 = vunpack.c.l.b16 %v340
    %v1063 = vunpack.c.h.b16 %v340
    %v1064 = vunpack.c.l.b16 %v341
    %v1065 = vunpack.c.h.b16 %v341
    %v1066 = vunpack.c.l.b16 %v342
    %v1067 = vunpack.c.h.b16 %v342
    %v1068 = vunpack.c.l.b16 %v343
    %v1069 = vunpack.c.h.b16 %v343
    %v1070 = vunpack.c.l.b16 %v344
    %v1071 = vunpack.c.h.b16 %v344
    %v1072 = vunpack.c.l.b16 %v345
    %v1073 = vunpack.c.h.b16 %v345
    %v1074 = vunpack.c.l.b16 %v346
    %v1075 = vunpack.c.h.b16 %v346
    %v1076 = vpack.c.b16 %v632, %v628
    %v1077 = vpack.c.b16 %v633, %v629
    %v1078 = vpack.c.b16 %v634, %v630
    %v1079 = vpack.c.b16 %v635, %v631
    %v1080 = vpack.c.b16 %v640, %v636
    %v1081 = vpack.c.b16 %v641, %v637
    %v1082 = vpack.c.b16 %v642, %v638
    %v1083 = vpack.c.b16 %v643, %v639
    %v1084 = vpack.c.b16 %v648, %v644
    %v1085 = vpack.c.b16 %v649, %v645
    %v1086 = vpack.c.b16 %v650, %v646
    %v1087 = vpack.c.b16 %v651, %v647
    %v1088 = vpack.c.b16 %v656, %v652
    %v1089 = vpack.c.b16 %v657, %v653
    %v1090 = vpack.c.b16 %v658, %v654
    %v1091 = vpack.c.b16 %v659, %v655
    %v1092 = vpack.c.b16 %v664, %v660
    %v1093 = vpack.c.b16 %v665, %v661
    %v1094 = vpack.c.b16 %v666, %v662
    %v1095 = vpack.c.b16 %v667, %v663
    %v1096 = vpack.c.b16 %v672, %v668
    %v1097 = vpack.c.b16 %v673, %v669
    %v1098 = vpack.c.b16 %v674, %v670
    %v1099 = vpack.c.b16 %v675, %v671
    %v1100 = vpack.c.b16 %v680, %v676
    %v1101 = vpack.c.b16 %v681, %v677
    %v1102 = vpack.c.b16 %v682, %v678
    %v1103 = vpack.c.b16 %v683, %v679
    %v1104 = vpack.c.b16 %v688, %v684
    %v1105 = vpack.c.b16 %v689, %v685
    %v1106 = vpack.c.b16 %v690, %v686
    %v1107 = vpack.c.b16 %v691, %v687
    %v1108 = vpack.c.b16 %v696, %v692
    %v1109 = vpack.c.b16 %v697, %v693
    %v1110 = vpack.c.b16 %v698, %v694
    %v1111 = vpack.c.b16 %v699, %v695
    %v1112 = vpack.c.b16 %v704, %v700
    %v1113 = vpack.c.b16 %v705, %v701
    %v1114 = vpack.c.b16 %v706, %v702
    %v1115 = vpack.c.b16 %v707, %v703
    %v1116 = vpack.c.b16 %v712, %v708
    %v1117 = vpack.c.b16 %v713, %v709
    %v1118 = vpack.c.b16 %v714, %v710
    %v1119 = vpack.c.b16 %v715, %v711
    %v1120 = vpack.c.b16 %v720, %v716
    %v1121 = vpack.c.b16 %v721, %v717
    %v1122 = vpack.c.b16 %v722, %v718
    %v1123 = vpack.c.b16 %v723, %v719
    %v1124 = vpack.c.b16 %v728, %v724
    %v1125 = vpack.c.b16 %v729, %v725
    %v1126 = vpack.c.b16 %v730, %v726
    %v1127 = vpack.c.b16 %v731, %v727
    %v1128 = vpack.c.b16 %v736, %v732
    %v1129 = vpack.c.b16 %v737, %v733
    %v1130 = vpack.c.b16 %v738, %v734
    %v1131 = vpack.c.b16 %v739, %v735
    %v1132 = vpack.c.b16 %v744, %v740
    %v1133 = vpack.c.b16 %v745, %v741
    %v1134 = vpack.c.b16 %v746, %v742
    %v1135 = vpack.c.b16 %v747, %v743
    %v1136 = vpack.c.b16 %v752, %v748
    %v1137 = vpack.c.b16 %v753, %v749
    %v1138 = vpack.c.b16 %v754, %v750
    %v1139 = vpack.c.b16 %v755, %v751
    %v1140 = vpack.c.b16 %v760, %v756
    %v1141 = vpack.c.b16 %v761, %v757
    %v1142 = vpack.c.b16 %v762, %v758
    %v1143 = vpack.c.b16 %v763, %v759
    %v1144 = vpack.c.b16 %v768, %v764
    %v1145 = vpack.c.b16 %v769, %v765
    %v1146 = vpack.c.b16 %v770, %v766
    %v1147 = vpack.c.b16 %v771, %v767
    %v1148 = vpack.c.b16 %v776, %v772
    %v1149 = vpack.c.b16 %v777, %v773
    %v1150 = vpack.c.b16 %v778, %v774
    %v1151 = vpack.c.b16 %v779, %v775
    %v1152 = vpack.c.b16 %v784, %v780
    %v1153 = vpack.c.b16 %v785, %v781
    %v1154 = vpack.c.b16 %v786, %v782
    %v1155 = vpack.c.b16 %v787, %v783
    %v1156 = vpack.c.b16 %v792, %v788
    %v1157 = vpack.c.b16 %v793, %v789
    %v1158 = vpack.c.b16 %v794, %v790
    %v1159 = vpack.c.b16 %v795, %v791
    %v1160 = vpack.c.b16 %v800, %v796
    %v1161 = vpack.c.b16 %v801, %v797
    %v1162 = vpack.c.b16 %v802, %v798
    %v1163 = vpack.c.b16 %v803, %v799
    %v1164 = vpack.c.b16 %v808, %v804
    %v1165 = vpack.c.b16 %v809, %v805
    %v1166 = vpack.c.b16 %v810, %v806
    %v1167 = vpack.c.b16 %v811, %v807
    %v1168 = vpack.c.b16 %v816, %v812
    %v1169 = vpack.c.b16 %v817, %v813
    %v1170 = vpack.c.b16 %v818, %v814
    %v1171 = vpack.c.b16 %v819, %v815
    %v1172 = vpack.c.b16 %v824, %v820
    %v1173 = vpack.c.b16 %v825, %v821
    %v1174 = vpack.c.b16 %v826, %v822
    %v1175 = vpack.c.b16 %v827, %v823
    %v1176 = vpack.c.b16 %v832, %v828
    %v1177 = vpack.c.b16 %v833, %v829
    %v1178 = vpack.c.b16 %v834, %v830
    %v1179 = vpack.c.b16 %v835, %v831
    %v1180 = vpack.c.b16 %v840, %v836
    %v1181 = vpack.c.b16 %v841, %v837
    %v1182 = vpack.c.b16 %v842, %v838
    %v1183 = vpack.c.b16 %v843, %v839
    %v1184 = vpack.c.b16 %v848, %v844
    %v1185 = vpack.c.b16 %v849, %v845
    %v1186 = vpack.c.b16 %v850, %v846
    %v1187 = vpack.c.b16 %v851, %v847
    %v1188 = vpack.c.b16 %v856, %v852
    %v1189 = vpack.c.b16 %v857, %v853
    %v1190 = vpack.c.b16 %v858, %v854
    %v1191 = vpack.c.b16 %v859, %v855
    %v1192 = vpack.c.b16 %v864, %v860
    %v1193 = vpack.c.b16 %v865, %v861
    %v1194 = vpack.c.b16 %v866, %v862
    %v1195 = vpack.c.b16 %v867, %v863
    %v1196 = vpack.c.b16 %v872, %v868
    %v1197 = vpack.c.b16 %v873, %v869
    %v1198 = vpack.c.b16 %v874, %v870
    %v1199 = vpack.c.b16 %v875, %v871
    %v1200 = vpack.c.b16 %v880, %v876
    %v1201 = vpack.c.b16 %v881, %v877
    %v1202 = vpack.c.b16 %v882, %v878
    %v1203 = vpack.c.b16 %v883, %v879
    %v1204 = vpack.c.b16 %v888, %v884
    %v1205 = vpack.c.b16 %v889, %v885
    %v1206 = vpack.c.b16 %v890, %v886
    %v1207 = vpack.c.b16 %v891, %v887
    %v1208 = vpack.c.b16 %v896, %v892
    %v1209 = vpack.c.b16 %v897, %v893
    %v1210 = vpack.c.b16 %v898, %v894
    %v1211 = vpack.c.b16 %v899, %v895
    %v1212 = vpack.c.b16 %v904, %v900
    %v1213 = vpack.c.b16 %v905, %v901
    %v1214 = vpack.c.b16 %v906, %v902
    %v1215 = vpack.c.b16 %v907, %v903
    %v1216 = vpack.c.b16 %v912, %v908
    %v1217 = vpack.c.b16 %v913, %v909
    %v1218 = vpack.c.b16 %v914, %v910
    %v1219 = vpack.c.b16 %v915, %v911
    %v1220 = vpack.c.b16 %v920, %v916
    %v1221 = vpack.c.b16 %v921, %v917
    %v1222 = vpack.c.b16 %v922, %v918
    %v1223 = vpack.c.b16 %v923, %v919
    %v1224 = vpack.c.b16 %v928, %v924
    %v1225 = vpack.c.b16 %v929, %v925
    %v1226 = vpack.c.b16 %v930, %v926
    %v1227 = vpack.c.b16 %v931, %v927
    %v1228 = vpack.c.b16 %v936, %v932
    %v1229 = vpack.c.b16 %v937, %v933
    %v1230 = vpack.c.b16 %v938, %v934
    %v1231 = vpack.c.b16 %v939, %v935
    %v1232 = vpack.c.b16 %v944, %v940
    %v1233 = vpack.c.b16 %v945, %v941
    %v1234 = vpack.c.b16 %v946, %v942
    %v1235 = vpack.c.b16 %v947, %v943
    %v1236 = vpack.c.b16 %v952, %v948
    %v1237 = vpack.c.b16 %v953, %v949
    %v1238 = vpack.c.b16 %v954, %v950
    %v1239 = vpack.c.b16 %v955, %v951
    %v1240 = vpack.c.b16 %v960, %v956
    %v1241 = vpack.c.b16 %v961, %v957
    %v1242 = vpack.c.b16 %v962, %v958
    %v1243 = vpack.c.b16 %v963, %v959
    %v1244 = vpack.c.b16 %v968, %v964
    %v1245 = vpack.c.b16 %v969, %v965
    %v1246 = vpack.c.b16 %v970, %v966
    %v1247 = vpack.c.b16 %v971, %v967
    %v1248 = vpack.c.b16 %v976, %v972
    %v1249 = vpack.c.b16 %v977, %v973
    %v1250 = vpack.c.b16 %v978, %v974
    %v1251 = vpack.c.b16 %v979, %v975
    %v1252 = vpack.c.b16 %v984, %v980
    %v1253 = vpack.c.b16 %v985, %v981
    %v1254 = vpack.c.b16 %v986, %v982
    %v1255 = vpack.c.b16 %v987, %v983
    %v1256 = vpack.c.b16 %v992, %v988
    %v1257 = vpack.c.b16 %v993, %v989
    %v1258 = vpack.c.b16 %v994, %v990
    %v1259 = vpack.c.b16 %v995, %v991
    %v1260 = vpack.c.b16 %v1000, %v996
    %v1261 = vpack.c.b16 %v1001, %v997
    %v1262 = vpack.c.b16 %v1002, %v998
    %v1263 = vpack.c.b16 %v1003, %v999
    %v1264 = vpack.c.b16 %v1008, %v1004
    %v1265 = vpack.c.b16 %v1009, %v1005
    %v1266 = vpack.c.b16 %v1010, %v1006
    %v1267 = vpack.c.b16 %v1011, %v1007
    %v1268 = vpack.c.b16 %v1016, %v1012
    %v1269 = vpack.c.b16 %v1017, %v1013
    %v1270 = vpack.c.b16 %v1018, %v1014
    %v1271 = vpack.c.b16 %v1019, %v1015
    %v1272 = vpack.c.b16 %v1024, %v1020
    %v1273 = vpack.c.b16 %v1025, %v1021
    %v1274 = vpack.c.b16 %v1026, %v1022
    %v1275 = vpack.c.b16 %v1027, %v1023
    %v1276 = vpack.c.b16 %v1032, %v1028
    %v1277 = vpack.c.b16 %v1033, %v1029
    %v1278 = vpack.c.b16 %v1034, %v1030
    %v1279 = vpack.c.b16 %v1035, %v1031
    %v1280 = vpack.c.b16 %v1040, %v1036
    %v1281 = vpack.c.b16 %v1041, %v1037
    %v1282 = vpack.c.b16 %v1042, %v1038
    %v1283 = vpack.c.b16 %v1043, %v1039
    %v1284 = vpack.c.b16 %v1048, %v1044
    %v1285 = vpack.c.b16 %v1049, %v1045
    %v1286 = vpack.c.b16 %v1050, %v1046
    %v1287 = vpack.c.b16 %v1051, %v1047
    %v1288 = vpack.c.b16 %v1056, %v1052
    %v1289 = vpack.c.b16 %v1057, %v1053
    %v1290 = vpack.c.b16 %v1058, %v1054
    %v1291 = vpack.c.b16 %v1059, %v1055
    %v1292 = vpack.c.b16 %v1064, %v1060
    %v1293 = vpack.c.b16 %v1065, %v1061
    %v1294 = vpack.c.b16 %v1066, %v1062
    %v1295 = vpack.c.b16 %v1067, %v1063
    %v1296 = vpack.c.b16 %v1072, %v1068
    %v1297 = vpack.c.b16 %v1073, %v1069
    %v1298 = vpack.c.b16 %v1074, %v1070
    %v1299 = vpack.c.b16 %v1075, %v1071
    %1524 = vmatprep.subr.bf16.mxu0 %v1077
    %1525 = vmatpush1.bf16.msra.mxu0 %v1076
    %1526 = vmatprep.subr.bf16.mxu0 %v1081
    %1527 = vmatpush1.bf16.msra.mxu0 %v1080
    %1528 = vmatprep.subr.bf16.mxu0 %v1085
    %1529 = vmatpush1.bf16.msra.mxu0 %v1084
    %1530 = vmatprep.subr.bf16.mxu0 %v1089
    %1531 = vmatpush1.bf16.msra.mxu0 %v1088
    %1532 = vmatprep.subr.bf16.mxu0 %v1093
    %1533 = vmatpush1.bf16.msra.mxu0 %v1092
    %1534 = vmatprep.subr.bf16.mxu0 %v1097
    %1535 = vmatpush1.bf16.msra.mxu0 %v1096
    %1536 = vmatprep.subr.bf16.mxu0 %v1101
    %1537 = vmatpush1.bf16.msra.mxu0 %v1100
    %1538 = vmatprep.subr.bf16.mxu0 %v1105
    %1539 = vmatpush1.bf16.msra.mxu0 %v1104
    %1540 = vmatprep.subr.bf16.mxu0 %v1109
    %1541 = vmatpush1.bf16.msra.mxu0 %v1108
    %1542 = vmatprep.subr.bf16.mxu0 %v1113
    %1543 = vmatpush1.bf16.msra.mxu0 %v1112
    %1544 = vmatprep.subr.bf16.mxu0 %v1117
    %1545 = vmatpush1.bf16.msra.mxu0 %v1116
    %1546 = vmatprep.subr.bf16.mxu0 %v1121
    %1547 = vmatpush1.bf16.msra.mxu0 %v1120
    %1548 = vmatprep.subr.bf16.mxu0 %v1125
    %1549 = vmatpush1.bf16.msra.mxu0 %v1124
    %1550 = vmatprep.subr.bf16.mxu0 %v1129
    %1551 = vmatpush1.bf16.msra.mxu0 %v1128
    %1552 = vmatprep.subr.bf16.mxu0 %v1133
    %1553 = vmatpush1.bf16.msra.mxu0 %v1132
    %1554 = vmatprep.subr.bf16.mxu0 %v1137
    %1555 = vmatpush1.bf16.msra.mxu0 %v1136
    %1556 = vmatprep.mubr.bf16.mxu0 %v391
    %1557 = vmatmul.mubr.bf16.gmra.mrb[0].mxu0 %v390
    %v1558 = vpop.f32.mrb[0].mxu0
    %v1559 = vadd.f32 %v351, %v1558
    %v1560 = vpop.f32.mrb[0].mxu0
    %v1561 = vadd.f32 %v355, %v1560
    %v1562 = vpop.f32.mrb[0].mxu0
    %v1563 = vadd.f32 %v351, %v1562
    %v1564 = vpop.f32.mrb[0].mxu0
    %v1565 = vadd.f32 %v355, %v1564
    %1566 = vdwg.mxu0
    %1567 = vmatprep.subr.bf16.mxu0 %v1141
    %1568 = vmatpush1.bf16.msra.mxu0 %v1140
    %1569 = vmatprep.subr.bf16.mxu0 %v1145
    %1570 = vmatpush1.bf16.msra.mxu0 %v1144
    %1571 = vmatprep.subr.bf16.mxu0 %v1149
    %1572 = vmatpush1.bf16.msra.mxu0 %v1148
    %1573 = vmatprep.subr.bf16.mxu0 %v1153
    %1574 = vmatpush1.bf16.msra.mxu0 %v1152
    %1575 = vmatprep.subr.bf16.mxu0 %v1157
    %1576 = vmatpush1.bf16.msra.mxu0 %v1156
    %1577 = vmatprep.subr.bf16.mxu0 %v1161
    %1578 = vmatpush1.bf16.msra.mxu0 %v1160
    %1579 = vmatprep.subr.bf16.mxu0 %v1165
    %1580 = vmatpush1.bf16.msra.mxu0 %v1164
    %1581 = vmatprep.subr.bf16.mxu0 %v1169
    %1582 = vmatpush1.bf16.msra.mxu0 %v1168
    %1583 = vmatprep.subr.bf16.mxu0 %v1173
    %1584 = vmatpush1.bf16.msra.mxu0 %v1172
    %1585 = vmatprep.subr.bf16.mxu0 %v1177
    %1586 = vmatpush1.bf16.msra.mxu0 %v1176
    %1587 = vmatprep.subr.bf16.mxu0 %v1181
    %1588 = vmatpush1.bf16.msra.mxu0 %v1180
    %1589 = vmatprep.subr.bf16.mxu0 %v1185
    %1590 = vmatpush1.bf16.msra.mxu0 %v1184
    %1591 = vmatprep.subr.bf16.mxu0 %v1189
    %1592 = vmatpush1.bf16.msra.mxu0 %v1188
    %1593 = vmatprep.subr.bf16.mxu0 %v1193
    %1594 = vmatpush1.bf16.msra.mxu0 %v1192
    %1595 = vmatprep.subr.bf16.mxu0 %v1197
    %1596 = vmatpush1.bf16.msra.mxu0 %v1196
    %1597 = vmatprep.subr.bf16.mxu0 %v1201
    %1598 = vmatpush1.bf16.msra.mxu0 %v1200
    %1599 = vmatprep.mubr.bf16.mxu0 %v393
    %1600 = vmatmul.mubr.bf16.gmra.mrb[0].mxu0 %v392
    %v1601 = vpop.f32.mrb[0].mxu0
    %v1602 = vadd.f32 %v1559, %v1601
    %v1603 = vpop.f32.mrb[0].mxu0
    %v1604 = vadd.f32 %v1561, %v1603
    %v1605 = vpop.f32.mrb[0].mxu0
    %v1606 = vadd.f32 %v1563, %v1605
    %v1607 = vpop.f32.mrb[0].mxu0
    %v1608 = vadd.f32 %v1565, %v1607
    %1609 = vdwg.mxu0
    %1610 = vmatprep.subr.bf16.mxu0 %v1205
    %1611 = vmatpush1.bf16.msra.mxu0 %v1204
    %1612 = vmatprep.subr.bf16.mxu0 %v1209
    %1613 = vmatpush1.bf16.msra.mxu0 %v1208
    %1614 = vmatprep.subr.bf16.mxu0 %v1213
    %1615 = vmatpush1.bf16.msra.mxu0 %v1212
    %1616 = vmatprep.subr.bf16.mxu0 %v1217
    %1617 = vmatpush1.bf16.msra.mxu0 %v1216
    %1618 = vmatprep.subr.bf16.mxu0 %v1221
    %1619 = vmatpush1.bf16.msra.mxu0 %v1220
    %1620 = vmatprep.subr.bf16.mxu0 %v1225
    %1621 = vmatpush1.bf16.msra.mxu0 %v1224
    %1622 = vmatprep.subr.bf16.mxu0 %v1229
    %1623 = vmatpush1.bf16.msra.mxu0 %v1228
    %1624 = vmatprep.subr.bf16.mxu0 %v1233
    %1625 = vmatpush1.bf16.msra.mxu0 %v1232
    %1626 = vmatprep.subr.bf16.mxu0 %v1237
    %1627 = vmatpush1.bf16.msra.mxu0 %v1236
    %1628 = vmatprep.subr.bf16.mxu0 %v1241
    %1629 = vmatpush1.bf16.msra.mxu0 %v1240
    %1630 = vmatprep.subr.bf16.mxu0 %v1245
    %1631 = vmatpush1.bf16.msra.mxu0 %v1244
    %1632 = vmatprep.subr.bf16.mxu0 %v1249
    %1633 = vmatpush1.bf16.msra.mxu0 %v1248
    %1634 = vmatprep.subr.bf16.mxu0 %v1253
    %1635 = vmatpush1.bf16.msra.mxu0 %v1252
    %1636 = vmatprep.subr.bf16.mxu0 %v1257
    %1637 = vmatpush1.bf16.msra.mxu0 %v1256
    %1638 = vmatprep.subr.bf16.mxu0 %v1261
    %1639 = vmatpush1.bf16.msra.mxu0 %v1260
    %1640 = vmatprep.subr.bf16.mxu0 %v1265
    %1641 = vmatpush1.bf16.msra.mxu0 %v1264
    %1642 = vmatprep.mubr.bf16.mxu0 %v395
    %1643 = vmatmul.mubr.bf16.gmra.mrb[0].mxu0 %v394
    %v1644 = vpop.f32.mrb[0].mxu0
    %v1645 = vadd.f32 %v1602, %v1644
    %v1646 = vpop.f32.mrb[0].mxu0
    %v1647 = vadd.f32 %v1604, %v1646
    %v1648 = vpop.f32.mrb[0].mxu0
    %v1649 = vadd.f32 %v1606, %v1648
    %v1650 = vpop.f32.mrb[0].mxu0
    %v1651 = vadd.f32 %v1608, %v1650
    %1652 = vdwg.mxu0
    %1653 = vmatprep.subr.bf16.mxu0 %v1269
    %1654 = vmatpush1.bf16.msra.mxu0 %v1268
    %1655 = vmatprep.subr.bf16.mxu0 %v1273
    %1656 = vmatpush1.bf16.msra.mxu0 %v1272
    %1657 = vmatprep.subr.bf16.mxu0 %v1277
    %1658 = vmatpush1.bf16.msra.mxu0 %v1276
    %1659 = vmatprep.subr.bf16.mxu0 %v1281
    %1660 = vmatpush1.bf16.msra.mxu0 %v1280
    %1661 = vmatprep.subr.bf16.mxu0 %v1285
    %1662 = vmatpush1.bf16.msra.mxu0 %v1284
    %1663 = vmatprep.subr.bf16.mxu0 %v1289
    %1664 = vmatpush1.bf16.msra.mxu0 %v1288
    %1665 = vmatprep.subr.bf16.mxu0 %v1293
    %1666 = vmatpush1.bf16.msra.mxu0 %v1292
    %1667 = vmatprep.subr.bf16.mxu0 %v1297
    %1668 = vmatpush1.bf16.msra.mxu0 %v1296
    %1669 = vmatprep.subr.bf16.mxu0 0
    %1670 = vmatpush1.bf16.msra.mxu0 0
    %1671 = vmatprep.subr.bf16.mxu0 0
    %1672 = vmatpush1.bf16.msra.mxu0 0
    %1673 = vmatprep.subr.bf16.mxu0 0
    %1674 = vmatpush1.bf16.msra.mxu0 0
    %1675 = vmatprep.subr.bf16.mxu0 0
    %1676 = vmatpush1.bf16.msra.mxu0 0
    %1677 = vmatprep.subr.bf16.mxu0 0
    %1678 = vmatpush1.bf16.msra.mxu0 0
    %1679 = vmatprep.subr.bf16.mxu0 0
    %1680 = vmatpush1.bf16.msra.mxu0 0
    %1681 = vmatprep.subr.bf16.mxu0 0
    %1682 = vmatpush1.bf16.msra.mxu0 0
    %1683 = vmatprep.subr.bf16.mxu0 0
    %1684 = vmatpush1.bf16.msra.mxu0 0
    %1685 = vmatprep.mubr.bf16.mxu0 0
    %1686 = vmatmul.mubr.bf16.gmra.mrb[0].mxu0 %v396
    %v1687 = vpop.f32.mrb[0].mxu0
    %v1688 = vadd.f32 %v1645, %v1687
    %v1689 = vpop.f32.mrb[0].mxu0
    %v1690 = vadd.f32 %v1647, %v1689
    %v1691 = vpop.f32.mrb[0].mxu0
    %v1692 = vadd.f32 %v1649, %v1691
    %v1693 = vpop.f32.mrb[0].mxu0
    %v1694 = vadd.f32 %v1651, %v1693
    %1695 = vdwg.mxu0
    %1696 = vmatprep.subr.bf16.mxu0 %v1079
    %1697 = vmatpush1.bf16.msra.mxu0 %v1078
    %1698 = vmatprep.subr.bf16.mxu0 %v1083
    %1699 = vmatpush1.bf16.msra.mxu0 %v1082
    %1700 = vmatprep.subr.bf16.mxu0 %v1087
    %1701 = vmatpush1.bf16.msra.mxu0 %v1086
    %1702 = vmatprep.subr.bf16.mxu0 %v1091
    %1703 = vmatpush1.bf16.msra.mxu0 %v1090
    %1704 = vmatprep.subr.bf16.mxu0 %v1095
    %1705 = vmatpush1.bf16.msra.mxu0 %v1094
    %1706 = vmatprep.subr.bf16.mxu0 %v1099
    %1707 = vmatpush1.bf16.msra.mxu0 %v1098
    %1708 = vmatprep.subr.bf16.mxu0 %v1103
    %1709 = vmatpush1.bf16.msra.mxu0 %v1102
    %1710 = vmatprep.subr.bf16.mxu0 %v1107
    %1711 = vmatpush1.bf16.msra.mxu0 %v1106
    %1712 = vmatprep.subr.bf16.mxu0 %v1111
    %1713 = vmatpush1.bf16.msra.mxu0 %v1110
    %1714 = vmatprep.subr.bf16.mxu0 %v1115
    %1715 = vmatpush1.bf16.msra.mxu0 %v1114
    %1716 = vmatprep.subr.bf16.mxu0 %v1119
    %1717 = vmatpush1.bf16.msra.mxu0 %v1118
    %1718 = vmatprep.subr.bf16.mxu0 %v1123
    %1719 = vmatpush1.bf16.msra.mxu0 %v1122
    %1720 = vmatprep.subr.bf16.mxu0 %v1127
    %1721 = vmatpush1.bf16.msra.mxu0 %v1126
    %1722 = vmatprep.subr.bf16.mxu0 %v1131
    %1723 = vmatpush1.bf16.msra.mxu0 %v1130
    %1724 = vmatprep.subr.bf16.mxu0 %v1135
    %1725 = vmatpush1.bf16.msra.mxu0 %v1134
    %1726 = vmatprep.subr.bf16.mxu0 %v1139
    %1727 = vmatpush1.bf16.msra.mxu0 %v1138
    %1728 = vmatprep.mubr.bf16.mxu0 %v391
    %1729 = vmatmul.mubr.bf16.gmra.mrb[0].mxu0 %v390
    %v1730 = vpop.f32.mrb[0].mxu0
    %v1731 = vadd.f32 %v359, %v1730
    %v1732 = vpop.f32.mrb[0].mxu0
    %v1733 = vadd.f32 %v363, %v1732
    %v1734 = vpop.f32.mrb[0].mxu0
    %v1735 = vadd.f32 %v359, %v1734
    %v1736 = vpop.f32.mrb[0].mxu0
    %v1737 = vadd.f32 %v363, %v1736
    %1738 = vdwg.mxu0
    %1739 = vmatprep.subr.bf16.mxu0 %v1143
    %1740 = vmatpush1.bf16.msra.mxu0 %v1142
    %1741 = vmatprep.subr.bf16.mxu0 %v1147
    %1742 = vmatpush1.bf16.msra.mxu0 %v1146
    %1743 = vmatprep.subr.bf16.mxu0 %v1151
    %1744 = vmatpush1.bf16.msra.mxu0 %v1150
    %1745 = vmatprep.subr.bf16.mxu0 %v1155
    %1746 = vmatpush1.bf16.msra.mxu0 %v1154
    %1747 = vmatprep.subr.bf16.mxu0 %v1159
    %1748 = vmatpush1.bf16.msra.mxu0 %v1158
    %1749 = vmatprep.subr.bf16.mxu0 %v1163
    %1750 = vmatpush1.bf16.msra.mxu0 %v1162
    %1751 = vmatprep.subr.bf16.mxu0 %v1167
    %1752 = vmatpush1.bf16.msra.mxu0 %v1166
    %1753 = vmatprep.subr.bf16.mxu0 %v1171
    %1754 = vmatpush1.bf16.msra.mxu0 %v1170
    %1755 = vmatprep.subr.bf16.mxu0 %v1175
    %1756 = vmatpush1.bf16.msra.mxu0 %v1174
    %1757 = vmatprep.subr.bf16.mxu0 %v1179
    %1758 = vmatpush1.bf16.msra.mxu0 %v1178
    %1759 = vmatprep.subr.bf16.mxu0 %v1183
    %1760 = vmatpush1.bf16.msra.mxu0 %v1182
    %1761 = vmatprep.subr.bf16.mxu0 %v1187
    %1762 = vmatpush1.bf16.msra.mxu0 %v1186
    %1763 = vmatprep.subr.bf16.mxu0 %v1191
    %1764 = vmatpush1.bf16.msra.mxu0 %v1190
    %1765 = vmatprep.subr.bf16.mxu0 %v1195
    %1766 = vmatpush1.bf16.msra.mxu0 %v1194
    %1767 = vmatprep.subr.bf16.mxu0 %v1199
    %1768 = vmatpush1.bf16.msra.mxu0 %v1198
    %1769 = vmatprep.subr.bf16.mxu0 %v1203
    %1770 = vmatpush1.bf16.msra.mxu0 %v1202
    %1771 = vmatprep.mubr.bf16.mxu0 %v393
    %1772 = vmatmul.mubr.bf16.gmra.mrb[0].mxu0 %v392
    %v1773 = vpop.f32.mrb[0].mxu0
    %v1774 = vadd.f32 %v1731, %v1773
    %v1775 = vpop.f32.mrb[0].mxu0
    %v1776 = vadd.f32 %v1733, %v1775
    %v1777 = vpop.f32.mrb[0].mxu0
    %v1778 = vadd.f32 %v1735, %v1777
    %v1779 = vpop.f32.mrb[0].mxu0
    %v1780 = vadd.f32 %v1737, %v1779
    %1781 = vdwg.mxu0
    %1782 = vmatprep.subr.bf16.mxu0 %v1207
    %1783 = vmatpush1.bf16.msra.mxu0 %v1206
    %1784 = vmatprep.subr.bf16.mxu0 %v1211
    %1785 = vmatpush1.bf16.msra.mxu0 %v1210
    %1786 = vmatprep.subr.bf16.mxu0 %v1215
    %1787 = vmatpush1.bf16.msra.mxu0 %v1214
    %1788 = vmatprep.subr.bf16.mxu0 %v1219
    %1789 = vmatpush1.bf16.msra.mxu0 %v1218
    %1790 = vmatprep.subr.bf16.mxu0 %v1223
    %1791 = vmatpush1.bf16.msra.mxu0 %v1222
    %1792 = vmatprep.subr.bf16.mxu0 %v1227
    %1793 = vmatpush1.bf16.msra.mxu0 %v1226
    %1794 = vmatprep.subr.bf16.mxu0 %v1231
    %1795 = vmatpush1.bf16.msra.mxu0 %v1230
    %1796 = vmatprep.subr.bf16.mxu0 %v1235
    %1797 = vmatpush1.bf16.msra.mxu0 %v1234
    %1798 = vmatprep.subr.bf16.mxu0 %v1239
    %1799 = vmatpush1.bf16.msra.mxu0 %v1238
    %1800 = vmatprep.subr.bf16.mxu0 %v1243
    %1801 = vmatpush1.bf16.msra.mxu0 %v1242
    %1802 = vmatprep.subr.bf16.mxu0 %v1247
    %1803 = vmatpush1.bf16.msra.mxu0 %v1246
    %1804 = vmatprep.subr.bf16.mxu0 %v1251
    %1805 = vmatpush1.bf16.msra.mxu0 %v1250
    %1806 = vmatprep.subr.bf16.mxu0 %v1255
    %1807 = vmatpush1.bf16.msra.mxu0 %v1254
    %1808 = vmatprep.subr.bf16.mxu0 %v1259
    %1809 = vmatpush1.bf16.msra.mxu0 %v1258
    %1810 = vmatprep.subr.bf16.mxu0 %v1263
    %1811 = vmatpush1.bf16.msra.mxu0 %v1262
    %1812 = vmatprep.subr.bf16.mxu0 %v1267
    %1813 = vmatpush1.bf16.msra.mxu0 %v1266
    %1814 = vmatprep.mubr.bf16.mxu0 %v395
    %1815 = vmatmul.mubr.bf16.gmra.mrb[0].mxu0 %v394
    %v1816 = vpop.f32.mrb[0].mxu0
    %v1817 = vadd.f32 %v1774, %v1816
    %v1818 = vpop.f32.mrb[0].mxu0
    %v1819 = vadd.f32 %v1776, %v1818
    %v1820 = vpop.f32.mrb[0].mxu0
    %v1821 = vadd.f32 %v1778, %v1820
    %v1822 = vpop.f32.mrb[0].mxu0
    %v1823 = vadd.f32 %v1780, %v1822
    %1824 = vdwg.mxu0
    %1825 = vmatprep.subr.bf16.mxu0 %v1271
    %1826 = vmatpush1.bf16.msra.mxu0 %v1270
    %1827 = vmatprep.subr.bf16.mxu0 %v1275
    %1828 = vmatpush1.bf16.msra.mxu0 %v1274
    %1829 = vmatprep.subr.bf16.mxu0 %v1279
    %1830 = vmatpush1.bf16.msra.mxu0 %v1278
    %1831 = vmatprep.subr.bf16.mxu0 %v1283
    %1832 = vmatpush1.bf16.msra.mxu0 %v1282
    %1833 = vmatprep.subr.bf16.mxu0 %v1287
    %1834 = vmatpush1.bf16.msra.mxu0 %v1286
    %1835 = vmatprep.subr.bf16.mxu0 %v1291
    %1836 = vmatpush1.bf16.msra.mxu0 %v1290
    %1837 = vmatprep.subr.bf16.mxu0 %v1295
    %1838 = vmatpush1.bf16.msra.mxu0 %v1294
    %1839 = vmatprep.subr.bf16.mxu0 %v1299
    %1840 = vmatpush1.bf16.msra.mxu0 %v1298
    %1841 = vmatprep.subr.bf16.mxu0 0
    %1842 = vmatpush1.bf16.msra.mxu0 0
    %1843 = vmatprep.subr.bf16.mxu0 0
    %1844 = vmatpush1.bf16.msra.mxu0 0
    %1845 = vmatprep.subr.bf16.mxu0 0
    %1846 = vmatpush1.bf16.msra.mxu0 0
    %1847 = vmatprep.subr.bf16.mxu0 0
    %1848 = vmatpush1.bf16.msra.mxu0 0
    %1849 = vmatprep.subr.bf16.mxu0 0
    %1850 = vmatpush1.bf16.msra.mxu0 0
    %1851 = vmatprep.subr.bf16.mxu0 0
    %1852 = vmatpush1.bf16.msra.mxu0 0
    %1853 = vmatprep.subr.bf16.mxu0 0
    %1854 = vmatpush1.bf16.msra.mxu0 0
    %1855 = vmatprep.subr.bf16.mxu0 0
    %1856 = vmatpush1.bf16.msra.mxu0 0
    %1857 = vmatprep.mubr.bf16.mxu0 0
    %1858 = vmatmul.mubr.bf16.gmra.mrb[0].mxu0 %v396
    %v1859 = vpop.f32.mrb[0].mxu0
    %v1860 = vadd.f32 %v1817, %v1859
    %v1861 = vpop.f32.mrb[0].mxu0
    %v1862 = vadd.f32 %v1819, %v1861
    %v1863 = vpop.f32.mrb[0].mxu0
    %v1864 = vadd.f32 %v1821, %v1863
    %v1865 = vpop.f32.mrb[0].mxu0
    %v1866 = vadd.f32 %v1823, %v1865
    %1867 = vdwg.mxu0
    %v1868 = vmax.f32 %v1688, 0.0
    %v1869 = vmax.f32 %v1690, 0.0
    %v1870 = vmax.f32 %v1860, 0.0
    %v1871 = vmax.f32 %v1862, 0.0
    %v1872 = vmax.f32 %v1692, 0.0
    %v1873 = vmax.f32 %v1694, 0.0
    %v1874 = vmax.f32 %v1864, 0.0
    %v1875 = vmax.f32 %v1866, 0.0
    %v1876 = vpack.c.bf16 %v1872, %v1868
    %v1877 = vpack.c.bf16 %v1873, %v1869
    %v1878 = vpack.c.bf16 %v1874, %v1870
    %v1879 = vpack.c.bf16 %v1875, %v1871
    %s1880 = scalar_lea.vmem [#allocation11], 1
    %v1881 = vld [vmem:[%s1880] ss:$8 sm:$0x3]
    %v1882 = vld [vmem:[#allocation5] sm:$0xff]
    %v1883 = vld [vmem:[#allocation5 + $0x8] sm:$0xff]
    %v1884 = vld [vmem:[#allocation5 + $0x10] sm:$0xff]
    %v1885 = vld [vmem:[#allocation5 + $0x18] sm:$0xff]
    %v1886 = vld [vmem:[#allocation5 + $0x20] sm:$0xff]
    %v1887 = vld [vmem:[#allocation5 + $0x28] sm:$0xff]
    %v1888 = vld [vmem:[#allocation5 + $0x30] sm:$0xff]
    %v1889 = vld [vmem:[#allocation5 + $0x38] sm:$0xff]
    %v1890 = vld [vmem:[#allocation5 + $0x40] sm:$0xff]
    %v1891 = vld [vmem:[#allocation5 + $0x48] sm:$0xff]
    %v1892 = vld [vmem:[#allocation5 + $0x50] sm:$0xff]
    %v1893 = vld [vmem:[#allocation5 + $0x58] sm:$0xff]
    %v1894 = vld [vmem:[#allocation5 + $0x60] sm:$0xff]
    %v1895 = vld [vmem:[#allocation5 + $0x68] sm:$0xff]
    %v1896 = vld [vmem:[#allocation5 + $0x70] sm:$0xff]
    %v1897 = vld [vmem:[#allocation5 + $0x78] sm:$0xff]
    %v1898 = vld [vmem:[#allocation5 + $0x80] sm:$0xff]
    %v1899 = vld [vmem:[#allocation5 + $0x88] sm:$0xff]
    %v1900 = vld [vmem:[#allocation5 + $0x90] sm:$0xff]
    %v1901 = vld [vmem:[#allocation5 + $0x98] sm:$0xff]
    %v1902 = vld [vmem:[#allocation5 + $0xa0] sm:$0xff]
    %v1903 = vld [vmem:[#allocation5 + $0xa8] sm:$0xff]
    %v1904 = vld [vmem:[#allocation5 + $0xb0] sm:$0xff]
    %v1905 = vld [vmem:[#allocation5 + $0xb8] sm:$0xff]
    %v1906 = vld [vmem:[#allocation5 + $0xc0] sm:$0xff]
    %v1907 = vld [vmem:[#allocation5 + $0xc8] sm:$0xff]
    %v1908 = vld [vmem:[#allocation5 + $0xd0] sm:$0xff]
    %v1909 = vld [vmem:[#allocation5 + $0xd8] sm:$0xff]
    %v1910 = vld [vmem:[#allocation5 + $0xe0] sm:$0xff]
    %v1911 = vld [vmem:[#allocation5 + $0xe8] sm:$0xff]
    %v1912 = vld [vmem:[#allocation5 + $0xf0] sm:$0xff]
    %v1913 = vld [vmem:[#allocation5 + $0xf8] sm:$0xff]
    %v1914 = vld [vmem:[#allocation5 + $0x100] sm:$0xff]
    %v1915 = vld [vmem:[#allocation5 + $0x108] sm:$0xff]
    %v1916 = vld [vmem:[#allocation5 + $0x110] sm:$0xff]
    %v1917 = vld [vmem:[#allocation5 + $0x118] sm:$0xff]
    %v1918 = vld [vmem:[#allocation5 + $0x120] sm:$0xff]
    %v1919 = vld [vmem:[#allocation5 + $0x128] sm:$0xff]
    %v1920 = vld [vmem:[#allocation5 + $0x130] sm:$0xff]
    %v1921 = vld [vmem:[#allocation5 + $0x138] sm:$0xff]
    %v1922 = vld [vmem:[#allocation5 + $0x140] sm:$0xff]
    %v1923 = vld [vmem:[#allocation5 + $0x148] sm:$0xff]
    %v1924 = vld [vmem:[#allocation5 + $0x150] sm:$0xff]
    %v1925 = vld [vmem:[#allocation5 + $0x158] sm:$0xff]
    %v1926 = vld [vmem:[#allocation5 + $0x160] sm:$0xff]
    %v1927 = vld [vmem:[#allocation5 + $0x168] sm:$0xff]
    %v1928 = vld [vmem:[#allocation5 + $0x170] sm:$0xff]
    %v1929 = vld [vmem:[#allocation5 + $0x178] sm:$0xff]
    %v1930 = vld [vmem:[#allocation5 + $0x180] sm:$0xff]
    %v1931 = vld [vmem:[#allocation5 + $0x188] sm:$0xff]
    %v1932 = vld [vmem:[#allocation5 + $0x190] sm:$0xff]
    %v1933 = vld [vmem:[#allocation5 + $0x198] sm:$0xff]
    %v1934 = vld [vmem:[#allocation5 + $0x1a0] sm:$0xff]
    %v1935 = vld [vmem:[#allocation5 + $0x1a8] sm:$0xff]
    %v1936 = vld [vmem:[#allocation5 + $0x1b0] sm:$0xff]
    %v1937 = vld [vmem:[#allocation5 + $0x1b8] sm:$0xff]
    %v1938 = vld [vmem:[#allocation5 + $0x1c0] sm:$0xff]
    %v1939 = vld [vmem:[#allocation5 + $0x1c8] sm:$0xff]
    %v1940 = vld [vmem:[#allocation5 + $0x1d0] sm:$0xff]
    %v1941 = vld [vmem:[#allocation5 + $0x1d8] sm:$0xff]
    %v1942 = vld [vmem:[#allocation5 + $0x1e0] sm:$0xff]
    %v1943 = vld [vmem:[#allocation5 + $0x1e8] sm:$0xff]
    %v1944 = vld [vmem:[#allocation5 + $0x1f0] sm:$0xff]
    %v1945 = vld [vmem:[#allocation5 + $0x1f8] sm:$0xff]
    %v1947 = vlaneseq
    %v1948 = vshrl.u32 %v1947, 7
    %v1949 = vsub.s32 0, %v1948
    %v1950 = vrot.slane %v1881, %v1949
    %v1951 = vlaneseq
    %v1952 = vshrl.u32 %v1951, 7
    %v1953 = vsub.s32 1, %v1952
    %v1954 = vrot.slane %v1881, %v1953
    %v2021 = vunpack.c.l.b16 %v1882
    %v2022 = vunpack.c.h.b16 %v1882
    %v2023 = vunpack.c.l.b16 %v1883
    %v2024 = vunpack.c.h.b16 %v1883
    %v2025 = vunpack.c.l.b16 %v1884
    %v2026 = vunpack.c.h.b16 %v1884
    %v2027 = vunpack.c.l.b16 %v1885
    %v2028 = vunpack.c.h.b16 %v1885
    %v2029 = vunpack.c.l.b16 %v1886
    %v2030 = vunpack.c.h.b16 %v1886
    %v2031 = vunpack.c.l.b16 %v1887
    %v2032 = vunpack.c.h.b16 %v1887
    %v2033 = vunpack.c.l.b16 %v1888
    %v2034 = vunpack.c.h.b16 %v1888
    %v2035 = vunpack.c.l.b16 %v1889
    %v2036 = vunpack.c.h.b16 %v1889
    %v2037 = vunpack.c.l.b16 %v1890
    %v2038 = vunpack.c.h.b16 %v1890
    %v2039 = vunpack.c.l.b16 %v1891
    %v2040 = vunpack.c.h.b16 %v1891
    %v2041 = vunpack.c.l.b16 %v1892
    %v2042 = vunpack.c.h.b16 %v1892
    %v2043 = vunpack.c.l.b16 %v1893
    %v2044 = vunpack.c.h.b16 %v1893
    %v2045 = vunpack.c.l.b16 %v1894
    %v2046 = vunpack.c.h.b16 %v1894
    %v2047 = vunpack.c.l.b16 %v1895
    %v2048 = vunpack.c.h.b16 %v1895
    %v2049 = vunpack.c.l.b16 %v1896
    %v2050 = vunpack.c.h.b16 %v1896
    %v2051 = vunpack.c.l.b16 %v1897
    %v2052 = vunpack.c.h.b16 %v1897
    %v2053 = vunpack.c.l.b16 %v1898
    %v2054 = vunpack.c.h.b16 %v1898
    %v2055 = vunpack.c.l.b16 %v1899
    %v2056 = vunpack.c.h.b16 %v1899
    %v2057 = vunpack.c.l.b16 %v1900
    %v2058 = vunpack.c.h.b16 %v1900
    %v2059 = vunpack.c.l.b16 %v1901
    %v2060 = vunpack.c.h.b16 %v1901
    %v2061 = vunpack.c.l.b16 %v1902
    %v2062 = vunpack.c.h.b16 %v1902
    %v2063 = vunpack.c.l.b16 %v1903
    %v2064 = vunpack.c.h.b16 %v1903
    %v2065 = vunpack.c.l.b16 %v1904
    %v2066 = vunpack.c.h.b16 %v1904
    %v2067 = vunpack.c.l.b16 %v1905
    %v2068 = vunpack.c.h.b16 %v1905
    %v2069 = vunpack.c.l.b16 %v1906
    %v2070 = vunpack.c.h.b16 %v1906
    %v2071 = vunpack.c.l.b16 %v1907
    %v2072 = vunpack.c.h.b16 %v1907
    %v2073 = vunpack.c.l.b16 %v1908
    %v2074 = vunpack.c.h.b16 %v1908
    %v2075 = vunpack.c.l.b16 %v1909
    %v2076 = vunpack.c.h.b16 %v1909
    %v2077 = vunpack.c.l.b16 %v1910
    %v2078 = vunpack.c.h.b16 %v1910
    %v2079 = vunpack.c.l.b16 %v1911
    %v2080 = vunpack.c.h.b16 %v1911
    %v2081 = vunpack.c.l.b16 %v1912
    %v2082 = vunpack.c.h.b16 %v1912
    %v2083 = vunpack.c.l.b16 %v1913
    %v2084 = vunpack.c.h.b16 %v1913
    %v2085 = vunpack.c.l.b16 %v1914
    %v2086 = vunpack.c.h.b16 %v1914
    %v2087 = vunpack.c.l.b16 %v1915
    %v2088 = vunpack.c.h.b16 %v1915
    %v2089 = vunpack.c.l.b16 %v1916
    %v2090 = vunpack.c.h.b16 %v1916
    %v2091 = vunpack.c.l.b16 %v1917
    %v2092 = vunpack.c.h.b16 %v1917
    %v2093 = vunpack.c.l.b16 %v1918
    %v2094 = vunpack.c.h.b16 %v1918
    %v2095 = vunpack.c.l.b16 %v1919
    %v2096 = vunpack.c.h.b16 %v1919
    %v2097 = vunpack.c.l.b16 %v1920
    %v2098 = vunpack.c.h.b16 %v1920
    %v2099 = vunpack.c.l.b16 %v1921
    %v2100 = vunpack.c.h.b16 %v1921
    %v2101 = vunpack.c.l.b16 %v1922
    %v2102 = vunpack.c.h.b16 %v1922
    %v2103 = vunpack.c.l.b16 %v1923
    %v2104 = vunpack.c.h.b16 %v1923
    %v2105 = vunpack.c.l.b16 %v1924
    %v2106 = vunpack.c.h.b16 %v1924
    %v2107 = vunpack.c.l.b16 %v1925
    %v2108 = vunpack.c.h.b16 %v1925
    %v2109 = vunpack.c.l.b16 %v1926
    %v2110 = vunpack.c.h.b16 %v1926
    %v2111 = vunpack.c.l.b16 %v1927
    %v2112 = vunpack.c.h.b16 %v1927
    %v2113 = vunpack.c.l.b16 %v1928
    %v2114 = vunpack.c.h.b16 %v1928
    %v2115 = vunpack.c.l.b16 %v1929
    %v2116 = vunpack.c.h.b16 %v1929
    %v2117 = vunpack.c.l.b16 %v1930
    %v2118 = vunpack.c.h.b16 %v1930
    %v2119 = vunpack.c.l.b16 %v1931
    %v2120 = vunpack.c.h.b16 %v1931
    %v2121 = vunpack.c.l.b16 %v1932
    %v2122 = vunpack.c.h.b16 %v1932
    %v2123 = vunpack.c.l.b16 %v1933
    %v2124 = vunpack.c.h.b16 %v1933
    %v2125 = vunpack.c.l.b16 %v1934
    %v2126 = vunpack.c.h.b16 %v1934
    %v2127 = vunpack.c.l.b16 %v1935
    %v2128 = vunpack.c.h.b16 %v1935
    %v2129 = vunpack.c.l.b16 %v1936
    %v2130 = vunpack.c.h.b16 %v1936
    %v2131 = vunpack.c.l.b16 %v1937
    %v2132 = vunpack.c.h.b16 %v1937
    %v2133 = vunpack.c.l.b16 %v1938
    %v2134 = vunpack.c.h.b16 %v1938
    %v2135 = vunpack.c.l.b16 %v1939
    %v2136 = vunpack.c.h.b16 %v1939
    %v2137 = vunpack.c.l.b16 %v1940
    %v2138 = vunpack.c.h.b16 %v1940
    %v2139 = vunpack.c.l.b16 %v1941
    %v2140 = vunpack.c.h.b16 %v1941
    %v2141 = vunpack.c.l.b16 %v1942
    %v2142 = vunpack.c.h.b16 %v1942
    %v2143 = vunpack.c.l.b16 %v1943
    %v2144 = vunpack.c.h.b16 %v1943
    %v2145 = vunpack.c.l.b16 %v1944
    %v2146 = vunpack.c.h.b16 %v1944
    %v2147 = vunpack.c.l.b16 %v1945
    %v2148 = vunpack.c.h.b16 %v1945
    %v2149 = vpack.c.b16 %v2023, %v2021
    %v2150 = vpack.c.b16 %v2024, %v2022
    %v2151 = vpack.c.b16 %v2027, %v2025
    %v2152 = vpack.c.b16 %v2028, %v2026
    %v2153 = vpack.c.b16 %v2031, %v2029
    %v2154 = vpack.c.b16 %v2032, %v2030
    %v2155 = vpack.c.b16 %v2035, %v2033
    %v2156 = vpack.c.b16 %v2036, %v2034
    %v2157 = vpack.c.b16 %v2039, %v2037
    %v2158 = vpack.c.b16 %v2040, %v2038
    %v2159 = vpack.c.b16 %v2043, %v2041
    %v2160 = vpack.c.b16 %v2044, %v2042
    %v2161 = vpack.c.b16 %v2047, %v2045
    %v2162 = vpack.c.b16 %v2048, %v2046
    %v2163 = vpack.c.b16 %v2051, %v2049
    %v2164 = vpack.c.b16 %v2052, %v2050
    %v2165 = vpack.c.b16 %v2055, %v2053
    %v2166 = vpack.c.b16 %v2056, %v2054
    %v2167 = vpack.c.b16 %v2059, %v2057
    %v2168 = vpack.c.b16 %v2060, %v2058
    %v2169 = vpack.c.b16 %v2063, %v2061
    %v2170 = vpack.c.b16 %v2064, %v2062
    %v2171 = vpack.c.b16 %v2067, %v2065
    %v2172 = vpack.c.b16 %v2068, %v2066
    %v2173 = vpack.c.b16 %v2071, %v2069
    %v2174 = vpack.c.b16 %v2072, %v2070
    %v2175 = vpack.c.b16 %v2075, %v2073
    %v2176 = vpack.c.b16 %v2076, %v2074
    %v2177 = vpack.c.b16 %v2079, %v2077
    %v2178 = vpack.c.b16 %v2080, %v2078
    %v2179 = vpack.c.b16 %v2083, %v2081
    %v2180 = vpack.c.b16 %v2084, %v2082
    %v2181 = vpack.c.b16 %v2087, %v2085
    %v2182 = vpack.c.b16 %v2088, %v2086
    %v2183 = vpack.c.b16 %v2091, %v2089
    %v2184 = vpack.c.b16 %v2092, %v2090
    %v2185 = vpack.c.b16 %v2095, %v2093
    %v2186 = vpack.c.b16 %v2096, %v2094
    %v2187 = vpack.c.b16 %v2099, %v2097
    %v2188 = vpack.c.b16 %v2100, %v2098
    %v2189 = vpack.c.b16 %v2103, %v2101
    %v2190 = vpack.c.b16 %v2104, %v2102
    %v2191 = vpack.c.b16 %v2107, %v2105
    %v2192 = vpack.c.b16 %v2108, %v2106
    %v2193 = vpack.c.b16 %v2111, %v2109
    %v2194 = vpack.c.b16 %v2112, %v2110
    %v2195 = vpack.c.b16 %v2115, %v2113
    %v2196 = vpack.c.b16 %v2116, %v2114
    %v2197 = vpack.c.b16 %v2119, %v2117
    %v2198 = vpack.c.b16 %v2120, %v2118
    %v2199 = vpack.c.b16 %v2123, %v2121
    %v2200 = vpack.c.b16 %v2124, %v2122
    %v2201 = vpack.c.b16 %v2127, %v2125
    %v2202 = vpack.c.b16 %v2128, %v2126
    %v2203 = vpack.c.b16 %v2131, %v2129
    %v2204 = vpack.c.b16 %v2132, %v2130
    %v2205 = vpack.c.b16 %v2135, %v2133
    %v2206 = vpack.c.b16 %v2136, %v2134
    %v2207 = vpack.c.b16 %v2139, %v2137
    %v2208 = vpack.c.b16 %v2140, %v2138
    %v2209 = vpack.c.b16 %v2143, %v2141
    %v2210 = vpack.c.b16 %v2144, %v2142
    %v2211 = vpack.c.b16 %v2147, %v2145
    %v2212 = vpack.c.b16 %v2148, %v2146
    %2277 = vmatprep.subr.bf16.mxu0 %v2150
    %2278 = vmatpush1.bf16.msra.mxu0 %v2149
    %2279 = vmatprep.subr.bf16.mxu0 %v2152
    %2280 = vmatpush1.bf16.msra.mxu0 %v2151
    %2281 = vmatprep.subr.bf16.mxu0 %v2154
    %2282 = vmatpush1.bf16.msra.mxu0 %v2153
    %2283 = vmatprep.subr.bf16.mxu0 %v2156
    %2284 = vmatpush1.bf16.msra.mxu0 %v2155
    %2285 = vmatprep.subr.bf16.mxu0 %v2158
    %2286 = vmatpush1.bf16.msra.mxu0 %v2157
    %2287 = vmatprep.subr.bf16.mxu0 %v2160
    %2288 = vmatpush1.bf16.msra.mxu0 %v2159
    %2289 = vmatprep.subr.bf16.mxu0 %v2162
    %2290 = vmatpush1.bf16.msra.mxu0 %v2161
    %2291 = vmatprep.subr.bf16.mxu0 %v2164
    %2292 = vmatpush1.bf16.msra.mxu0 %v2163
    %2293 = vmatprep.subr.bf16.mxu0 %v2166
    %2294 = vmatpush1.bf16.msra.mxu0 %v2165
    %2295 = vmatprep.subr.bf16.mxu0 %v2168
    %2296 = vmatpush1.bf16.msra.mxu0 %v2167
    %2297 = vmatprep.subr.bf16.mxu0 %v2170
    %2298 = vmatpush1.bf16.msra.mxu0 %v2169
    %2299 = vmatprep.subr.bf16.mxu0 %v2172
    %2300 = vmatpush1.bf16.msra.mxu0 %v2171
    %2301 = vmatprep.subr.bf16.mxu0 %v2174
    %2302 = vmatpush1.bf16.msra.mxu0 %v2173
    %2303 = vmatprep.subr.bf16.mxu0 %v2176
    %2304 = vmatpush1.bf16.msra.mxu0 %v2175
    %2305 = vmatprep.subr.bf16.mxu0 %v2178
    %2306 = vmatpush1.bf16.msra.mxu0 %v2177
    %2307 = vmatprep.subr.bf16.mxu0 %v2180
    %2308 = vmatpush1.bf16.msra.mxu0 %v2179
    %2309 = vmatprep.mubr.bf16.mxu0 %v1877
    %2310 = vmatmul.mubr.bf16.gmra.mrb[0].mxu0 %v1876
    %v2311 = vpop.f32.mrb[0].mxu0
    %v2312 = vadd.f32 %v1950, %v2311
    %v2313 = vpop.f32.mrb[0].mxu0
    %v2314 = vadd.f32 %v1954, %v2313
    %v2315 = vpop.f32.mrb[0].mxu0
    %v2316 = vadd.f32 %v1950, %v2315
    %v2317 = vpop.f32.mrb[0].mxu0
    %v2318 = vadd.f32 %v1954, %v2317
    %2319 = vdwg.mxu0
    %2320 = vmatprep.subr.bf16.mxu0 %v2182
    %2321 = vmatpush1.bf16.msra.mxu0 %v2181
    %2322 = vmatprep.subr.bf16.mxu0 %v2184
    %2323 = vmatpush1.bf16.msra.mxu0 %v2183
    %2324 = vmatprep.subr.bf16.mxu0 %v2186
    %2325 = vmatpush1.bf16.msra.mxu0 %v2185
    %2326 = vmatprep.subr.bf16.mxu0 %v2188
    %2327 = vmatpush1.bf16.msra.mxu0 %v2187
    %2328 = vmatprep.subr.bf16.mxu0 %v2190
    %2329 = vmatpush1.bf16.msra.mxu0 %v2189
    %2330 = vmatprep.subr.bf16.mxu0 %v2192
    %2331 = vmatpush1.bf16.msra.mxu0 %v2191
    %2332 = vmatprep.subr.bf16.mxu0 %v2194
    %2333 = vmatpush1.bf16.msra.mxu0 %v2193
    %2334 = vmatprep.subr.bf16.mxu0 %v2196
    %2335 = vmatpush1.bf16.msra.mxu0 %v2195
    %2336 = vmatprep.subr.bf16.mxu0 %v2198
    %2337 = vmatpush1.bf16.msra.mxu0 %v2197
    %2338 = vmatprep.subr.bf16.mxu0 %v2200
    %2339 = vmatpush1.bf16.msra.mxu0 %v2199
    %2340 = vmatprep.subr.bf16.mxu0 %v2202
    %2341 = vmatpush1.bf16.msra.mxu0 %v2201
    %2342 = vmatprep.subr.bf16.mxu0 %v2204
    %2343 = vmatpush1.bf16.msra.mxu0 %v2203
    %2344 = vmatprep.subr.bf16.mxu0 %v2206
    %2345 = vmatpush1.bf16.msra.mxu0 %v2205
    %2346 = vmatprep.subr.bf16.mxu0 %v2208
    %2347 = vmatpush1.bf16.msra.mxu0 %v2207
    %2348 = vmatprep.subr.bf16.mxu0 %v2210
    %2349 = vmatpush1.bf16.msra.mxu0 %v2209
    %2350 = vmatprep.subr.bf16.mxu0 %v2212
    %2351 = vmatpush1.bf16.msra.mxu0 %v2211
    %2352 = vmatprep.mubr.bf16.mxu0 %v1879
    %2353 = vmatmul.mubr.bf16.gmra.mrb[0].mxu0 %v1878
    %v2354 = vpop.f32.mrb[0].mxu0
    %v2355 = vadd.f32 %v2312, %v2354
    %v2356 = vpop.f32.mrb[0].mxu0
    %v2357 = vadd.f32 %v2314, %v2356
    %v2358 = vpop.f32.mrb[0].mxu0
    %v2359 = vadd.f32 %v2316, %v2358
    %v2360 = vpop.f32.mrb[0].mxu0
    %v2361 = vadd.f32 %v2318, %v2360
    %2362 = vdwg.mxu0
    %v2363 = vmax.f32 %v2355, 0.0
    %v2364 = vmax.f32 %v2357, 0.0
    %v2365 = vmax.f32 %v2359, 0.0
    %v2366 = vmax.f32 %v2361, 0.0
    %v2367 = vpack.c.bf16 %v2365, %v2363
    %v2368 = vpack.c.bf16 %v2366, %v2364
    %v2369 = vld [vmem:[#allocation11 + $0x2] ss:$0 sm:$0xff]
    %v2370 = vld [vmem:[%s3] sm:$0xf]
    %v2371 = vld [vmem:[%s3 + $0x4] sm:$0xf]
    %v2372 = vld [vmem:[%s3 + $0x8] sm:$0xf]
    %v2373 = vld [vmem:[%s3 + $0xc] sm:$0xf]
    %v2374 = vld [vmem:[%s3 + $0x10] sm:$0xf]
    %v2375 = vld [vmem:[%s3 + $0x14] sm:$0xf]
    %v2376 = vld [vmem:[%s3 + $0x18] sm:$0xf]
    %v2377 = vld [vmem:[%s3 + $0x1c] sm:$0xf]
    %v2378 = vld [vmem:[%s3 + $0x20] sm:$0xf]
    %v2379 = vld [vmem:[%s3 + $0x24] sm:$0xf]
    %v2380 = vld [vmem:[%s3 + $0x28] sm:$0xf]
    %v2381 = vld [vmem:[%s3 + $0x2c] sm:$0xf]
    %v2382 = vld [vmem:[%s3 + $0x30] sm:$0xf]
    %v2383 = vld [vmem:[%s3 + $0x34] sm:$0xf]
    %v2384 = vld [vmem:[%s3 + $0x38] sm:$0xf]
    %v2385 = vld [vmem:[%s3 + $0x3c] sm:$0xf]
    %v2386 = vld [vmem:[%s3 + $0x40] sm:$0xf]
    %v2387 = vld [vmem:[%s3 + $0x44] sm:$0xf]
    %v2388 = vld [vmem:[%s3 + $0x48] sm:$0xf]
    %v2389 = vld [vmem:[%s3 + $0x4c] sm:$0xf]
    %v2390 = vld [vmem:[%s3 + $0x50] sm:$0xf]
    %v2391 = vld [vmem:[%s3 + $0x54] sm:$0xf]
    %v2392 = vld [vmem:[%s3 + $0x58] sm:$0xf]
    %v2393 = vld [vmem:[%s3 + $0x5c] sm:$0xf]
    %v2394 = vld [vmem:[%s3 + $0x60] sm:$0xf]
    %v2395 = vld [vmem:[%s3 + $0x64] sm:$0xf]
    %v2396 = vld [vmem:[%s3 + $0x68] sm:$0xf]
    %v2397 = vld [vmem:[%s3 + $0x6c] sm:$0xf]
    %v2398 = vld [vmem:[%s3 + $0x70] sm:$0xf]
    %v2399 = vld [vmem:[%s3 + $0x74] sm:$0xf]
    %v2400 = vld [vmem:[%s3 + $0x78] sm:$0xf]
    %v2401 = vld [vmem:[%s3 + $0x7c] sm:$0xf]
    %v2434 = vunpack.c.l.b16 %v2370
    %v2435 = vunpack.c.l.b16 %v2371
    %v2436 = vunpack.c.l.b16 %v2372
    %v2437 = vunpack.c.l.b16 %v2373
    %v2438 = vunpack.c.l.b16 %v2374
    %v2439 = vunpack.c.l.b16 %v2375
    %v2440 = vunpack.c.l.b16 %v2376
    %v2441 = vunpack.c.l.b16 %v2377
    %v2442 = vunpack.c.l.b16 %v2378
    %v2443 = vunpack.c.l.b16 %v2379
    %v2444 = vunpack.c.l.b16 %v2380
    %v2445 = vunpack.c.l.b16 %v2381
    %v2446 = vunpack.c.l.b16 %v2382
    %v2447 = vunpack.c.l.b16 %v2383
    %v2448 = vunpack.c.l.b16 %v2384
    %v2449 = vunpack.c.l.b16 %v2385
    %v2450 = vunpack.c.l.b16 %v2386
    %v2451 = vunpack.c.l.b16 %v2387
    %v2452 = vunpack.c.l.b16 %v2388
    %v2453 = vunpack.c.l.b16 %v2389
    %v2454 = vunpack.c.l.b16 %v2390
    %v2455 = vunpack.c.l.b16 %v2391
    %v2456 = vunpack.c.l.b16 %v2392
    %v2457 = vunpack.c.l.b16 %v2393
    %v2458 = vunpack.c.l.b16 %v2394
    %v2459 = vunpack.c.l.b16 %v2395
    %v2460 = vunpack.c.l.b16 %v2396
    %v2461 = vunpack.c.l.b16 %v2397
    %v2462 = vunpack.c.l.b16 %v2398
    %v2463 = vunpack.c.l.b16 %v2399
    %v2464 = vunpack.c.l.b16 %v2400
    %v2465 = vunpack.c.l.b16 %v2401
    %v2466 = vpack.c.b16 %v2435, %v2434
    %v2467 = vpack.c.b16 %v2437, %v2436
    %v2468 = vpack.c.b16 %v2439, %v2438
    %v2469 = vpack.c.b16 %v2441, %v2440
    %v2470 = vpack.c.b16 %v2443, %v2442
    %v2471 = vpack.c.b16 %v2445, %v2444
    %v2472 = vpack.c.b16 %v2447, %v2446
    %v2473 = vpack.c.b16 %v2449, %v2448
    %v2474 = vpack.c.b16 %v2451, %v2450
    %v2475 = vpack.c.b16 %v2453, %v2452
    %v2476 = vpack.c.b16 %v2455, %v2454
    %v2477 = vpack.c.b16 %v2457, %v2456
    %v2478 = vpack.c.b16 %v2459, %v2458
    %v2479 = vpack.c.b16 %v2461, %v2460
    %v2480 = vpack.c.b16 %v2463, %v2462
    %v2481 = vpack.c.b16 %v2465, %v2464
    %2498 = vmatprep.subr.bf16.mxu0 0
    %2499 = vmatpush1.bf16.msra.mxu0 %v2466
    %2500 = vmatprep.subr.bf16.mxu0 0
    %2501 = vmatpush1.bf16.msra.mxu0 %v2467
    %2502 = vmatprep.subr.bf16.mxu0 0
    %2503 = vmatpush1.bf16.msra.mxu0 %v2468
    %2504 = vmatprep.subr.bf16.mxu0 0
    %2505 = vmatpush1.bf16.msra.mxu0 %v2469
    %2506 = vmatprep.subr.bf16.mxu0 0
    %2507 = vmatpush1.bf16.msra.mxu0 %v2470
    %2508 = vmatprep.subr.bf16.mxu0 0
    %2509 = vmatpush1.bf16.msra.mxu0 %v2471
    %2510 = vmatprep.subr.bf16.mxu0 0
    %2511 = vmatpush1.bf16.msra.mxu0 %v2472
    %2512 = vmatprep.subr.bf16.mxu0 0
    %2513 = vmatpush1.bf16.msra.mxu0 %v2473
    %2514 = vmatprep.subr.bf16.mxu0 0
    %2515 = vmatpush1.bf16.msra.mxu0 %v2474
    %2516 = vmatprep.subr.bf16.mxu0 0
    %2517 = vmatpush1.bf16.msra.mxu0 %v2475
    %2518 = vmatprep.subr.bf16.mxu0 0
    %2519 = vmatpush1.bf16.msra.mxu0 %v2476
    %2520 = vmatprep.subr.bf16.mxu0 0
    %2521 = vmatpush1.bf16.msra.mxu0 %v2477
    %2522 = vmatprep.subr.bf16.mxu0 0
    %2523 = vmatpush1.bf16.msra.mxu0 %v2478
    %2524 = vmatprep.subr.bf16.mxu0 0
    %2525 = vmatpush1.bf16.msra.mxu0 %v2479
    %2526 = vmatprep.subr.bf16.mxu0 0
    %2527 = vmatpush1.bf16.msra.mxu0 %v2480
    %2528 = vmatprep.subr.bf16.mxu0 0
    %2529 = vmatpush1.bf16.msra.mxu0 %v2481
    %2530 = vmatprep.mubr.bf16.mxu0 %v2368
    %2531 = vmatmul.mubr.bf16.gmra.mrb[0].mxu0 %v2367
    %v2532 = vpop.f32.mrb[0].mxu0
    %v2533 = vadd.f32 %v2369, %v2532
    %v2534 = vpop.f32.mrb[0].mxu0
    %v2535 = vpop.f32.mrb[0].mxu0
    %v2536 = vadd.f32 %v2369, %v2535
    %v2537 = vpop.f32.mrb[0].mxu0
    %2538 = vdwg.mxu0
    %v2539 = vmax.f32 %v2533, 0.0
    %v2540 = vmax.f32 %v2536, 0.0
    %v2541 = vpack.c.bf16 %v2540, %v2539
    %s2542 = scalar_lea.vmem [#allocation11], 3
    %v2543 = vld [vmem:[%s2542] ss:$8 sm:$0x3]
    %v2544 = vld [vmem:[%s4] sm:$0xff]
    %v2545 = vld [vmem:[%s4 + $0x8] sm:$0xff]
    %v2546 = vld [vmem:[%s4 + $0x10] sm:$0xff]
    %v2547 = vld [vmem:[%s4 + $0x18] sm:$0xff]
    %v2548 = vld [vmem:[%s4 + $0x20] sm:$0xff]
    %v2549 = vld [vmem:[%s4 + $0x28] sm:$0xff]
    %v2550 = vld [vmem:[%s4 + $0x30] sm:$0xff]
    %v2551 = vld [vmem:[%s4 + $0x38] sm:$0xff]
    %v2552 = vld [vmem:[%s4 + $0x40] sm:$0xff]
    %v2553 = vld [vmem:[%s4 + $0x48] sm:$0xff]
    %v2554 = vld [vmem:[%s4 + $0x50] sm:$0xff]
    %v2555 = vld [vmem:[%s4 + $0x58] sm:$0xff]
    %v2556 = vld [vmem:[%s4 + $0x60] sm:$0xff]
    %v2557 = vld [vmem:[%s4 + $0x68] sm:$0xff]
    %v2558 = vld [vmem:[%s4 + $0x70] sm:$0xff]
    %v2559 = vld [vmem:[%s4 + $0x78] sm:$0xff]
    %v2561 = vlaneseq
    %v2562 = vshrl.u32 %v2561, 7
    %v2563 = vsub.s32 0, %v2562
    %v2564 = vrot.slane %v2543, %v2563
    %v2565 = vlaneseq
    %v2566 = vshrl.u32 %v2565, 7
    %v2567 = vsub.s32 1, %v2566
    %v2568 = vrot.slane %v2543, %v2567
    %v2587 = vunpack.c.l.b16 %v2544
    %v2588 = vunpack.c.h.b16 %v2544
    %v2589 = vunpack.c.l.b16 %v2545
    %v2590 = vunpack.c.h.b16 %v2545
    %v2591 = vunpack.c.l.b16 %v2546
    %v2592 = vunpack.c.h.b16 %v2546
    %v2593 = vunpack.c.l.b16 %v2547
    %v2594 = vunpack.c.h.b16 %v2547
    %v2595 = vunpack.c.l.b16 %v2548
    %v2596 = vunpack.c.h.b16 %v2548
    %v2597 = vunpack.c.l.b16 %v2549
    %v2598 = vunpack.c.h.b16 %v2549
    %v2599 = vunpack.c.l.b16 %v2550
    %v2600 = vunpack.c.h.b16 %v2550
    %v2601 = vunpack.c.l.b16 %v2551
    %v2602 = vunpack.c.h.b16 %v2551
    %v2603 = vunpack.c.l.b16 %v2552
    %v2604 = vunpack.c.h.b16 %v2552
    %v2605 = vunpack.c.l.b16 %v2553
    %v2606 = vunpack.c.h.b16 %v2553
    %v2607 = vunpack.c.l.b16 %v2554
    %v2608 = vunpack.c.h.b16 %v2554
    %v2609 = vunpack.c.l.b16 %v2555
    %v2610 = vunpack.c.h.b16 %v2555
    %v2611 = vunpack.c.l.b16 %v2556
    %v2612 = vunpack.c.h.b16 %v2556
    %v2613 = vunpack.c.l.b16 %v2557
    %v2614 = vunpack.c.h.b16 %v2557
    %v2615 = vunpack.c.l.b16 %v2558
    %v2616 = vunpack.c.h.b16 %v2558
    %v2617 = vunpack.c.l.b16 %v2559
    %v2618 = vunpack.c.h.b16 %v2559
    %v2619 = vpack.c.b16 %v2589, %v2587
    %v2620 = vpack.c.b16 %v2590, %v2588
    %v2621 = vpack.c.b16 %v2593, %v2591
    %v2622 = vpack.c.b16 %v2594, %v2592
    %v2623 = vpack.c.b16 %v2597, %v2595
    %v2624 = vpack.c.b16 %v2598, %v2596
    %v2625 = vpack.c.b16 %v2601, %v2599
    %v2626 = vpack.c.b16 %v2602, %v2600
    %v2627 = vpack.c.b16 %v2605, %v2603
    %v2628 = vpack.c.b16 %v2606, %v2604
    %v2629 = vpack.c.b16 %v2609, %v2607
    %v2630 = vpack.c.b16 %v2610, %v2608
    %v2631 = vpack.c.b16 %v2613, %v2611
    %v2632 = vpack.c.b16 %v2614, %v2612
    %v2633 = vpack.c.b16 %v2617, %v2615
    %v2634 = vpack.c.b16 %v2618, %v2616
    %2651 = vmatprep.subr.bf16.mxu0 %v2620
    %2652 = vmatpush1.bf16.msra.mxu0 %v2619
    %2653 = vmatprep.subr.bf16.mxu0 %v2622
    %2654 = vmatpush1.bf16.msra.mxu0 %v2621
    %2655 = vmatprep.subr.bf16.mxu0 %v2624
    %2656 = vmatpush1.bf16.msra.mxu0 %v2623
    %2657 = vmatprep.subr.bf16.mxu0 %v2626
    %2658 = vmatpush1.bf16.msra.mxu0 %v2625
    %2659 = vmatprep.subr.bf16.mxu0 %v2628
    %2660 = vmatpush1.bf16.msra.mxu0 %v2627
    %2661 = vmatprep.subr.bf16.mxu0 %v2630
    %2662 = vmatpush1.bf16.msra.mxu0 %v2629
    %2663 = vmatprep.subr.bf16.mxu0 %v2632
    %2664 = vmatpush1.bf16.msra.mxu0 %v2631
    %2665 = vmatprep.subr.bf16.mxu0 %v2634
    %2666 = vmatpush1.bf16.msra.mxu0 %v2633
    %2667 = vmatprep.subr.bf16.mxu0 0
    %2668 = vmatpush1.bf16.msra.mxu0 0
    %2669 = vmatprep.subr.bf16.mxu0 0
    %2670 = vmatpush1.bf16.msra.mxu0 0
    %2671 = vmatprep.subr.bf16.mxu0 0
    %2672 = vmatpush1.bf16.msra.mxu0 0
    %2673 = vmatprep.subr.bf16.mxu0 0
    %2674 = vmatpush1.bf16.msra.mxu0 0
    %2675 = vmatprep.subr.bf16.mxu0 0
    %2676 = vmatpush1.bf16.msra.mxu0 0
    %2677 = vmatprep.subr.bf16.mxu0 0
    %2678 = vmatpush1.bf16.msra.mxu0 0
    %2679 = vmatprep.subr.bf16.mxu0 0
    %2680 = vmatpush1.bf16.msra.mxu0 0
    %2681 = vmatprep.subr.bf16.mxu0 0
    %2682 = vmatpush1.bf16.msra.mxu0 0
    %2683 = vmatprep.mubr.bf16.mxu0 0
    %2684 = vmatmul.mubr.bf16.gmra.mrb[0].mxu0 %v2541
    %v2685 = vpop.f32.mrb[0].mxu0
    %v2686 = vadd.f32 %v2564, %v2685
    %v2687 = vpop.f32.mrb[0].mxu0
    %v2688 = vadd.f32 %v2568, %v2687
    %v2689 = vpop.f32.mrb[0].mxu0
    %v2690 = vadd.f32 %v2564, %v2689
    %v2691 = vpop.f32.mrb[0].mxu0
    %v2692 = vadd.f32 %v2568, %v2691
    %2693 = vdwg.mxu0
    %v2694 = vmax.f32 %v2686, 0.0
    %v2695 = vmax.f32 %v2688, 0.0
    %v2696 = vmax.f32 %v2690, 0.0
    %v2697 = vmax.f32 %v2692, 0.0
    %v2698 = vpack.c.bf16 %v2696, %v2694
    %v2699 = vpack.c.bf16 %v2697, %v2695
    %s2700 = scalar_lea.vmem [#allocation11], 4
    %v2701 = vld [vmem:[%s2700] ss:$8 sm:$0xf]
    %v2702 = vld [vmem:[#allocation7] sm:$0xff]
    %v2703 = vld [vmem:[#allocation7 + $0x8] sm:$0xff]
    %v2704 = vld [vmem:[#allocation7 + $0x10] sm:$0xff]
    %v2705 = vld [vmem:[#allocation7 + $0x18] sm:$0xff]
    %v2706 = vld [vmem:[#allocation7 + $0x20] sm:$0xff]
    %v2707 = vld [vmem:[#allocation7 + $0x28] sm:$0xff]
    %v2708 = vld [vmem:[#allocation7 + $0x30] sm:$0xff]
    %v2709 = vld [vmem:[#allocation7 + $0x38] sm:$0xff]
    %v2710 = vld [vmem:[#allocation7 + $0x40] sm:$0xff]
    %v2711 = vld [vmem:[#allocation7 + $0x48] sm:$0xff]
    %v2712 = vld [vmem:[#allocation7 + $0x50] sm:$0xff]
    %v2713 = vld [vmem:[#allocation7 + $0x58] sm:$0xff]
    %v2714 = vld [vmem:[#allocation7 + $0x60] sm:$0xff]
    %v2715 = vld [vmem:[#allocation7 + $0x68] sm:$0xff]
    %v2716 = vld [vmem:[#allocation7 + $0x70] sm:$0xff]
    %v2717 = vld [vmem:[#allocation7 + $0x78] sm:$0xff]
    %v2718 = vld [vmem:[#allocation7 + $0x80] sm:$0xff]
    %v2719 = vld [vmem:[#allocation7 + $0x88] sm:$0xff]
    %v2720 = vld [vmem:[#allocation7 + $0x90] sm:$0xff]
    %v2721 = vld [vmem:[#allocation7 + $0x98] sm:$0xff]
    %v2722 = vld [vmem:[#allocation7 + $0xa0] sm:$0xff]
    %v2723 = vld [vmem:[#allocation7 + $0xa8] sm:$0xff]
    %v2724 = vld [vmem:[#allocation7 + $0xb0] sm:$0xff]
    %v2725 = vld [vmem:[#allocation7 + $0xb8] sm:$0xff]
    %v2726 = vld [vmem:[#allocation7 + $0xc0] sm:$0xff]
    %v2727 = vld [vmem:[#allocation7 + $0xc8] sm:$0xff]
    %v2728 = vld [vmem:[#allocation7 + $0xd0] sm:$0xff]
    %v2729 = vld [vmem:[#allocation7 + $0xd8] sm:$0xff]
    %v2730 = vld [vmem:[#allocation7 + $0xe0] sm:$0xff]
    %v2731 = vld [vmem:[#allocation7 + $0xe8] sm:$0xff]
    %v2732 = vld [vmem:[#allocation7 + $0xf0] sm:$0xff]
    %v2733 = vld [vmem:[#allocation7 + $0xf8] sm:$0xff]
    %v2734 = vld [vmem:[#allocation7 + $0x100] sm:$0xff]
    %v2735 = vld [vmem:[#allocation7 + $0x108] sm:$0xff]
    %v2736 = vld [vmem:[#allocation7 + $0x110] sm:$0xff]
    %v2737 = vld [vmem:[#allocation7 + $0x118] sm:$0xff]
    %v2738 = vld [vmem:[#allocation7 + $0x120] sm:$0xff]
    %v2739 = vld [vmem:[#allocation7 + $0x128] sm:$0xff]
    %v2740 = vld [vmem:[#allocation7 + $0x130] sm:$0xff]
    %v2741 = vld [vmem:[#allocation7 + $0x138] sm:$0xff]
    %v2742 = vld [vmem:[#allocation7 + $0x140] sm:$0xff]
    %v2743 = vld [vmem:[#allocation7 + $0x148] sm:$0xff]
    %v2744 = vld [vmem:[#allocation7 + $0x150] sm:$0xff]
    %v2745 = vld [vmem:[#allocation7 + $0x158] sm:$0xff]
    %v2746 = vld [vmem:[#allocation7 + $0x160] sm:$0xff]
    %v2747 = vld [vmem:[#allocation7 + $0x168] sm:$0xff]
    %v2748 = vld [vmem:[#allocation7 + $0x170] sm:$0xff]
    %v2749 = vld [vmem:[#allocation7 + $0x178] sm:$0xff]
    %v2750 = vld [vmem:[#allocation7 + $0x180] sm:$0xff]
    %v2751 = vld [vmem:[#allocation7 + $0x188] sm:$0xff]
    %v2752 = vld [vmem:[#allocation7 + $0x190] sm:$0xff]
    %v2753 = vld [vmem:[#allocation7 + $0x198] sm:$0xff]
    %v2754 = vld [vmem:[#allocation7 + $0x1a0] sm:$0xff]
    %v2755 = vld [vmem:[#allocation7 + $0x1a8] sm:$0xff]
    %v2756 = vld [vmem:[#allocation7 + $0x1b0] sm:$0xff]
    %v2757 = vld [vmem:[#allocation7 + $0x1b8] sm:$0xff]
    %v2758 = vld [vmem:[#allocation7 + $0x1c0] sm:$0xff]
    %v2759 = vld [vmem:[#allocation7 + $0x1c8] sm:$0xff]
    %v2760 = vld [vmem:[#allocation7 + $0x1d0] sm:$0xff]
    %v2761 = vld [vmem:[#allocation7 + $0x1d8] sm:$0xff]
    %v2762 = vld [vmem:[#allocation7 + $0x1e0] sm:$0xff]
    %v2763 = vld [vmem:[#allocation7 + $0x1e8] sm:$0xff]
    %v2764 = vld [vmem:[#allocation7 + $0x1f0] sm:$0xff]
    %v2765 = vld [vmem:[#allocation7 + $0x1f8] sm:$0xff]
    %v2767 = vlaneseq
    %v2768 = vshrl.u32 %v2767, 7
    %v2769 = vsub.s32 0, %v2768
    %v2770 = vrot.slane %v2701, %v2769
    %v2771 = vlaneseq
    %v2772 = vshrl.u32 %v2771, 7
    %v2773 = vsub.s32 1, %v2772
    %v2774 = vrot.slane %v2701, %v2773
    %v2775 = vlaneseq
    %v2776 = vshrl.u32 %v2775, 7
    %v2777 = vsub.s32 2, %v2776
    %v2778 = vrot.slane %v2701, %v2777
    %v2779 = vlaneseq
    %v2780 = vshrl.u32 %v2779, 7
    %v2781 = vsub.s32 3, %v2780
    %v2782 = vrot.slane %v2701, %v2781
    %v2851 = vunpack.c.l.b16 %v2702
    %v2852 = vunpack.c.h.b16 %v2702
    %v2853 = vunpack.c.l.b16 %v2703
    %v2854 = vunpack.c.h.b16 %v2703
    %v2855 = vunpack.c.l.b16 %v2704
    %v2856 = vunpack.c.h.b16 %v2704
    %v2857 = vunpack.c.l.b16 %v2705
    %v2858 = vunpack.c.h.b16 %v2705
    %v2859 = vunpack.c.l.b16 %v2706
    %v2860 = vunpack.c.h.b16 %v2706
    %v2861 = vunpack.c.l.b16 %v2707
    %v2862 = vunpack.c.h.b16 %v2707
    %v2863 = vunpack.c.l.b16 %v2708
    %v2864 = vunpack.c.h.b16 %v2708
    %v2865 = vunpack.c.l.b16 %v2709
    %v2866 = vunpack.c.h.b16 %v2709
    %v2867 = vunpack.c.l.b16 %v2710
    %v2868 = vunpack.c.h.b16 %v2710
    %v2869 = vunpack.c.l.b16 %v2711
    %v2870 = vunpack.c.h.b16 %v2711
    %v2871 = vunpack.c.l.b16 %v2712
    %v2872 = vunpack.c.h.b16 %v2712
    %v2873 = vunpack.c.l.b16 %v2713
    %v2874 = vunpack.c.h.b16 %v2713
    %v2875 = vunpack.c.l.b16 %v2714
    %v2876 = vunpack.c.h.b16 %v2714
    %v2877 = vunpack.c.l.b16 %v2715
    %v2878 = vunpack.c.h.b16 %v2715
    %v2879 = vunpack.c.l.b16 %v2716
    %v2880 = vunpack.c.h.b16 %v2716
    %v2881 = vunpack.c.l.b16 %v2717
    %v2882 = vunpack.c.h.b16 %v2717
    %v2883 = vunpack.c.l.b16 %v2718
    %v2884 = vunpack.c.h.b16 %v2718
    %v2885 = vunpack.c.l.b16 %v2719
    %v2886 = vunpack.c.h.b16 %v2719
    %v2887 = vunpack.c.l.b16 %v2720
    %v2888 = vunpack.c.h.b16 %v2720
    %v2889 = vunpack.c.l.b16 %v2721
    %v2890 = vunpack.c.h.b16 %v2721
    %v2891 = vunpack.c.l.b16 %v2722
    %v2892 = vunpack.c.h.b16 %v2722
    %v2893 = vunpack.c.l.b16 %v2723
    %v2894 = vunpack.c.h.b16 %v2723
    %v2895 = vunpack.c.l.b16 %v2724
    %v2896 = vunpack.c.h.b16 %v2724
    %v2897 = vunpack.c.l.b16 %v2725
    %v2898 = vunpack.c.h.b16 %v2725
    %v2899 = vunpack.c.l.b16 %v2726
    %v2900 = vunpack.c.h.b16 %v2726
    %v2901 = vunpack.c.l.b16 %v2727
    %v2902 = vunpack.c.h.b16 %v2727
    %v2903 = vunpack.c.l.b16 %v2728
    %v2904 = vunpack.c.h.b16 %v2728
    %v2905 = vunpack.c.l.b16 %v2729
    %v2906 = vunpack.c.h.b16 %v2729
    %v2907 = vunpack.c.l.b16 %v2730
    %v2908 = vunpack.c.h.b16 %v2730
    %v2909 = vunpack.c.l.b16 %v2731
    %v2910 = vunpack.c.h.b16 %v2731
    %v2911 = vunpack.c.l.b16 %v2732
    %v2912 = vunpack.c.h.b16 %v2732
    %v2913 = vunpack.c.l.b16 %v2733
    %v2914 = vunpack.c.h.b16 %v2733
    %v2915 = vunpack.c.l.b16 %v2734
    %v2916 = vunpack.c.h.b16 %v2734
    %v2917 = vunpack.c.l.b16 %v2735
    %v2918 = vunpack.c.h.b16 %v2735
    %v2919 = vunpack.c.l.b16 %v2736
    %v2920 = vunpack.c.h.b16 %v2736
    %v2921 = vunpack.c.l.b16 %v2737
    %v2922 = vunpack.c.h.b16 %v2737
    %v2923 = vunpack.c.l.b16 %v2738
    %v2924 = vunpack.c.h.b16 %v2738
    %v2925 = vunpack.c.l.b16 %v2739
    %v2926 = vunpack.c.h.b16 %v2739
    %v2927 = vunpack.c.l.b16 %v2740
    %v2928 = vunpack.c.h.b16 %v2740
    %v2929 = vunpack.c.l.b16 %v2741
    %v2930 = vunpack.c.h.b16 %v2741
    %v2931 = vunpack.c.l.b16 %v2742
    %v2932 = vunpack.c.h.b16 %v2742
    %v2933 = vunpack.c.l.b16 %v2743
    %v2934 = vunpack.c.h.b16 %v2743
    %v2935 = vunpack.c.l.b16 %v2744
    %v2936 = vunpack.c.h.b16 %v2744
    %v2937 = vunpack.c.l.b16 %v2745
    %v2938 = vunpack.c.h.b16 %v2745
    %v2939 = vunpack.c.l.b16 %v2746
    %v2940 = vunpack.c.h.b16 %v2746
    %v2941 = vunpack.c.l.b16 %v2747
    %v2942 = vunpack.c.h.b16 %v2747
    %v2943 = vunpack.c.l.b16 %v2748
    %v2944 = vunpack.c.h.b16 %v2748
    %v2945 = vunpack.c.l.b16 %v2749
    %v2946 = vunpack.c.h.b16 %v2749
    %v2947 = vunpack.c.l.b16 %v2750
    %v2948 = vunpack.c.h.b16 %v2750
    %v2949 = vunpack.c.l.b16 %v2751
    %v2950 = vunpack.c.h.b16 %v2751
    %v2951 = vunpack.c.l.b16 %v2752
    %v2952 = vunpack.c.h.b16 %v2752
    %v2953 = vunpack.c.l.b16 %v2753
    %v2954 = vunpack.c.h.b16 %v2753
    %v2955 = vunpack.c.l.b16 %v2754
    %v2956 = vunpack.c.h.b16 %v2754
    %v2957 = vunpack.c.l.b16 %v2755
    %v2958 = vunpack.c.h.b16 %v2755
    %v2959 = vunpack.c.l.b16 %v2756
    %v2960 = vunpack.c.h.b16 %v2756
    %v2961 = vunpack.c.l.b16 %v2757
    %v2962 = vunpack.c.h.b16 %v2757
    %v2963 = vunpack.c.l.b16 %v2758
    %v2964 = vunpack.c.h.b16 %v2758
    %v2965 = vunpack.c.l.b16 %v2759
    %v2966 = vunpack.c.h.b16 %v2759
    %v2967 = vunpack.c.l.b16 %v2760
    %v2968 = vunpack.c.h.b16 %v2760
    %v2969 = vunpack.c.l.b16 %v2761
    %v2970 = vunpack.c.h.b16 %v2761
    %v2971 = vunpack.c.l.b16 %v2762
    %v2972 = vunpack.c.h.b16 %v2762
    %v2973 = vunpack.c.l.b16 %v2763
    %v2974 = vunpack.c.h.b16 %v2763
    %v2975 = vunpack.c.l.b16 %v2764
    %v2976 = vunpack.c.h.b16 %v2764
    %v2977 = vunpack.c.l.b16 %v2765
    %v2978 = vunpack.c.h.b16 %v2765
    %v2979 = vpack.c.b16 %v2855, %v2851
    %v2980 = vpack.c.b16 %v2856, %v2852
    %v2981 = vpack.c.b16 %v2857, %v2853
    %v2982 = vpack.c.b16 %v2858, %v2854
    %v2983 = vpack.c.b16 %v2863, %v2859
    %v2984 = vpack.c.b16 %v2864, %v2860
    %v2985 = vpack.c.b16 %v2865, %v2861
    %v2986 = vpack.c.b16 %v2866, %v2862
    %v2987 = vpack.c.b16 %v2871, %v2867
    %v2988 = vpack.c.b16 %v2872, %v2868
    %v2989 = vpack.c.b16 %v2873, %v2869
    %v2990 = vpack.c.b16 %v2874, %v2870
    %v2991 = vpack.c.b16 %v2879, %v2875
    %v2992 = vpack.c.b16 %v2880, %v2876
    %v2993 = vpack.c.b16 %v2881, %v2877
    %v2994 = vpack.c.b16 %v2882, %v2878
    %v2995 = vpack.c.b16 %v2887, %v2883
    %v2996 = vpack.c.b16 %v2888, %v2884
    %v2997 = vpack.c.b16 %v2889, %v2885
    %v2998 = vpack.c.b16 %v2890, %v2886
    %v2999 = vpack.c.b16 %v2895, %v2891
    %v3000 = vpack.c.b16 %v2896, %v2892
    %v3001 = vpack.c.b16 %v2897, %v2893
    %v3002 = vpack.c.b16 %v2898, %v2894
    %v3003 = vpack.c.b16 %v2903, %v2899
    %v3004 = vpack.c.b16 %v2904, %v2900
    %v3005 = vpack.c.b16 %v2905, %v2901
    %v3006 = vpack.c.b16 %v2906, %v2902
    %v3007 = vpack.c.b16 %v2911, %v2907
    %v3008 = vpack.c.b16 %v2912, %v2908
    %v3009 = vpack.c.b16 %v2913, %v2909
    %v3010 = vpack.c.b16 %v2914, %v2910
    %v3011 = vpack.c.b16 %v2919, %v2915
    %v3012 = vpack.c.b16 %v2920, %v2916
    %v3013 = vpack.c.b16 %v2921, %v2917
    %v3014 = vpack.c.b16 %v2922, %v2918
    %v3015 = vpack.c.b16 %v2927, %v2923
    %v3016 = vpack.c.b16 %v2928, %v2924
    %v3017 = vpack.c.b16 %v2929, %v2925
    %v3018 = vpack.c.b16 %v2930, %v2926
    %v3019 = vpack.c.b16 %v2935, %v2931
    %v3020 = vpack.c.b16 %v2936, %v2932
    %v3021 = vpack.c.b16 %v2937, %v2933
    %v3022 = vpack.c.b16 %v2938, %v2934
    %v3023 = vpack.c.b16 %v2943, %v2939
    %v3024 = vpack.c.b16 %v2944, %v2940
    %v3025 = vpack.c.b16 %v2945, %v2941
    %v3026 = vpack.c.b16 %v2946, %v2942
    %v3027 = vpack.c.b16 %v2951, %v2947
    %v3028 = vpack.c.b16 %v2952, %v2948
    %v3029 = vpack.c.b16 %v2953, %v2949
    %v3030 = vpack.c.b16 %v2954, %v2950
    %v3031 = vpack.c.b16 %v2959, %v2955
    %v3032 = vpack.c.b16 %v2960, %v2956
    %v3033 = vpack.c.b16 %v2961, %v2957
    %v3034 = vpack.c.b16 %v2962, %v2958
    %v3035 = vpack.c.b16 %v2967, %v2963
    %v3036 = vpack.c.b16 %v2968, %v2964
    %v3037 = vpack.c.b16 %v2969, %v2965
    %v3038 = vpack.c.b16 %v2970, %v2966
    %v3039 = vpack.c.b16 %v2975, %v2971
    %v3040 = vpack.c.b16 %v2976, %v2972
    %v3041 = vpack.c.b16 %v2977, %v2973
    %v3042 = vpack.c.b16 %v2978, %v2974
    %3107 = vmatprep.subr.bf16.mxu0 %v2980
    %3108 = vmatpush1.bf16.msra.mxu0 %v2979
    %3109 = vmatprep.subr.bf16.mxu0 %v2984
    %3110 = vmatpush1.bf16.msra.mxu0 %v2983
    %3111 = vmatprep.subr.bf16.mxu0 %v2988
    %3112 = vmatpush1.bf16.msra.mxu0 %v2987
    %3113 = vmatprep.subr.bf16.mxu0 %v2992
    %3114 = vmatpush1.bf16.msra.mxu0 %v2991
    %3115 = vmatprep.subr.bf16.mxu0 %v2996
    %3116 = vmatpush1.bf16.msra.mxu0 %v2995
    %3117 = vmatprep.subr.bf16.mxu0 %v3000
    %3118 = vmatpush1.bf16.msra.mxu0 %v2999
    %3119 = vmatprep.subr.bf16.mxu0 %v3004
    %3120 = vmatpush1.bf16.msra.mxu0 %v3003
    %3121 = vmatprep.subr.bf16.mxu0 %v3008
    %3122 = vmatpush1.bf16.msra.mxu0 %v3007
    %3123 = vmatprep.subr.bf16.mxu0 %v3012
    %3124 = vmatpush1.bf16.msra.mxu0 %v3011
    %3125 = vmatprep.subr.bf16.mxu0 %v3016
    %3126 = vmatpush1.bf16.msra.mxu0 %v3015
    %3127 = vmatprep.subr.bf16.mxu0 %v3020
    %3128 = vmatpush1.bf16.msra.mxu0 %v3019
    %3129 = vmatprep.subr.bf16.mxu0 %v3024
    %3130 = vmatpush1.bf16.msra.mxu0 %v3023
    %3131 = vmatprep.subr.bf16.mxu0 %v3028
    %3132 = vmatpush1.bf16.msra.mxu0 %v3027
    %3133 = vmatprep.subr.bf16.mxu0 %v3032
    %3134 = vmatpush1.bf16.msra.mxu0 %v3031
    %3135 = vmatprep.subr.bf16.mxu0 %v3036
    %3136 = vmatpush1.bf16.msra.mxu0 %v3035
    %3137 = vmatprep.subr.bf16.mxu0 %v3040
    %3138 = vmatpush1.bf16.msra.mxu0 %v3039
    %3139 = vmatprep.mubr.bf16.mxu0 %v2699
    %3140 = vmatmul.mubr.bf16.gmra.mrb[0].mxu0 %v2698
    %v3141 = vpop.f32.mrb[0].mxu0
    %v3142 = vadd.f32 %v2770, %v3141
    %v3143 = vpop.f32.mrb[0].mxu0
    %v3144 = vadd.f32 %v2774, %v3143
    %v3145 = vpop.f32.mrb[0].mxu0
    %v3146 = vadd.f32 %v2770, %v3145
    %v3147 = vpop.f32.mrb[0].mxu0
    %v3148 = vadd.f32 %v2774, %v3147
    %3149 = vdwg.mxu0
    %3150 = vmatprep.subr.bf16.mxu0 %v2982
    %3151 = vmatpush1.bf16.msra.mxu0 %v2981
    %3152 = vmatprep.subr.bf16.mxu0 %v2986
    %3153 = vmatpush1.bf16.msra.mxu0 %v2985
    %3154 = vmatprep.subr.bf16.mxu0 %v2990
    %3155 = vmatpush1.bf16.msra.mxu0 %v2989
    %3156 = vmatprep.subr.bf16.mxu0 %v2994
    %3157 = vmatpush1.bf16.msra.mxu0 %v2993
    %3158 = vmatprep.subr.bf16.mxu0 %v2998
    %3159 = vmatpush1.bf16.msra.mxu0 %v2997
    %3160 = vmatprep.subr.bf16.mxu0 %v3002
    %3161 = vmatpush1.bf16.msra.mxu0 %v3001
    %3162 = vmatprep.subr.bf16.mxu0 %v3006
    %3163 = vmatpush1.bf16.msra.mxu0 %v3005
    %3164 = vmatprep.subr.bf16.mxu0 %v3010
    %3165 = vmatpush1.bf16.msra.mxu0 %v3009
    %3166 = vmatprep.subr.bf16.mxu0 %v3014
    %3167 = vmatpush1.bf16.msra.mxu0 %v3013
    %3168 = vmatprep.subr.bf16.mxu0 %v3018
    %3169 = vmatpush1.bf16.msra.mxu0 %v3017
    %3170 = vmatprep.subr.bf16.mxu0 %v3022
    %3171 = vmatpush1.bf16.msra.mxu0 %v3021
    %3172 = vmatprep.subr.bf16.mxu0 %v3026
    %3173 = vmatpush1.bf16.msra.mxu0 %v3025
    %3174 = vmatprep.subr.bf16.mxu0 %v3030
    %3175 = vmatpush1.bf16.msra.mxu0 %v3029
    %3176 = vmatprep.subr.bf16.mxu0 %v3034
    %3177 = vmatpush1.bf16.msra.mxu0 %v3033
    %3178 = vmatprep.subr.bf16.mxu0 %v3038
    %3179 = vmatpush1.bf16.msra.mxu0 %v3037
    %3180 = vmatprep.subr.bf16.mxu0 %v3042
    %3181 = vmatpush1.bf16.msra.mxu0 %v3041
    %3182 = vmatprep.mubr.bf16.mxu0 %v2699
    %3183 = vmatmul.mubr.bf16.gmra.mrb[0].mxu0 %v2698
    %v3184 = vpop.f32.mrb[0].mxu0
    %v3185 = vadd.f32 %v2778, %v3184
    %v3186 = vpop.f32.mrb[0].mxu0
    %v3187 = vadd.f32 %v2782, %v3186
    %v3188 = vpop.f32.mrb[0].mxu0
    %v3189 = vadd.f32 %v2778, %v3188
    %v3190 = vpop.f32.mrb[0].mxu0
    %v3191 = vadd.f32 %v2782, %v3190
    %3192 = vdwg.mxu0
    %v3193 = vmax.f32 %v3142, 0.0
    %v3194 = vmax.f32 %v3144, 0.0
    %v3195 = vmax.f32 %v3185, 0.0
    %v3196 = vmax.f32 %v3187, 0.0
    %v3197 = vmax.f32 %v3146, 0.0
    %v3198 = vmax.f32 %v3148, 0.0
    %v3199 = vmax.f32 %v3189, 0.0
    %v3200 = vmax.f32 %v3191, 0.0
    %v3201 = vpack.c.bf16 %v3197, %v3193
    %v3202 = vpack.c.bf16 %v3198, %v3194
    %v3203 = vpack.c.bf16 %v3199, %v3195
    %v3204 = vpack.c.bf16 %v3200, %v3196
    %s3205 = scalar_lea.vmem [#allocation11], 5
    %v3206 = vld [vmem:[%s3205] ss:$8 sm:$0xf]
    %v3207 = vld [vmem:[%s3205] ss:$8 sm:$0xf0]
    %v3208 = vor.u32 %v3206, %v3207
    %v3209 = vld [vmem:[#allocation8] sm:$0xff]
    %v3210 = vld [vmem:[#allocation8 + $0x8] sm:$0xff]
    %v3211 = vld [vmem:[#allocation8 + $0x10] sm:$0xff]
    %v3212 = vld [vmem:[#allocation8 + $0x18] sm:$0xf]
    %v3213 = vld [vmem:[#allocation8 + $0x1c] sm:$0xff]
    %v3214 = vld [vmem:[#allocation8 + $0x24] sm:$0xff]
    %v3215 = vld [vmem:[#allocation8 + $0x2c] sm:$0xff]
    %v3216 = vld [vmem:[#allocation8 + $0x34] sm:$0xf]
    %v3217 = vld [vmem:[#allocation8 + $0x38] sm:$0xff]
    %v3218 = vld [vmem:[#allocation8 + $0x40] sm:$0xff]
    %v3219 = vld [vmem:[#allocation8 + $0x48] sm:$0xff]
    %v3220 = vld [vmem:[#allocation8 + $0x50] sm:$0xf]
    %v3221 = vld [vmem:[#allocation8 + $0x54] sm:$0xff]
    %v3222 = vld [vmem:[#allocation8 + $0x5c] sm:$0xff]
    %v3223 = vld [vmem:[#allocation8 + $0x64] sm:$0xff]
    %v3224 = vld [vmem:[#allocation8 + $0x6c] sm:$0xf]
    %v3225 = vld [vmem:[#allocation8 + $0x70] sm:$0xff]
    %v3226 = vld [vmem:[#allocation8 + $0x78] sm:$0xff]
    %v3227 = vld [vmem:[#allocation8 + $0x80] sm:$0xff]
    %v3228 = vld [vmem:[#allocation8 + $0x88] sm:$0xf]
    %v3229 = vld [vmem:[#allocation8 + $0x8c] sm:$0xff]
    %v3230 = vld [vmem:[#allocation8 + $0x94] sm:$0xff]
    %v3231 = vld [vmem:[#allocation8 + $0x9c] sm:$0xff]
    %v3232 = vld [vmem:[#allocation8 + $0xa4] sm:$0xf]
    %v3233 = vld [vmem:[#allocation8 + $0xa8] sm:$0xff]
    %v3234 = vld [vmem:[#allocation8 + $0xb0] sm:$0xff]
    %v3235 = vld [vmem:[#allocation8 + $0xb8] sm:$0xff]
    %v3236 = vld [vmem:[#allocation8 + $0xc0] sm:$0xf]
    %v3237 = vld [vmem:[#allocation8 + $0xc4] sm:$0xff]
    %v3238 = vld [vmem:[#allocation8 + $0xcc] sm:$0xff]
    %v3239 = vld [vmem:[#allocation8 + $0xd4] sm:$0xff]
    %v3240 = vld [vmem:[#allocation8 + $0xdc] sm:$0xf]
    %v3241 = vld [vmem:[#allocation8 + $0xe0] sm:$0xff]
    %v3242 = vld [vmem:[#allocation8 + $0xe8] sm:$0xff]
    %v3243 = vld [vmem:[#allocation8 + $0xf0] sm:$0xff]
    %v3244 = vld [vmem:[#allocation8 + $0xf8] sm:$0xf]
    %v3245 = vld [vmem:[#allocation8 + $0xfc] sm:$0xff]
    %v3246 = vld [vmem:[#allocation8 + $0x104] sm:$0xff]
    %v3247 = vld [vmem:[#allocation8 + $0x10c] sm:$0xff]
    %v3248 = vld [vmem:[#allocation8 + $0x114] sm:$0xf]
    %v3249 = vld [vmem:[#allocation8 + $0x118] sm:$0xff]
    %v3250 = vld [vmem:[#allocation8 + $0x120] sm:$0xff]
    %v3251 = vld [vmem:[#allocation8 + $0x128] sm:$0xff]
    %v3252 = vld [vmem:[#allocation8 + $0x130] sm:$0xf]
    %v3253 = vld [vmem:[#allocation8 + $0x134] sm:$0xff]
    %v3254 = vld [vmem:[#allocation8 + $0x13c] sm:$0xff]
    %v3255 = vld [vmem:[#allocation8 + $0x144] sm:$0xff]
    %v3256 = vld [vmem:[#allocation8 + $0x14c] sm:$0xf]
    %v3257 = vld [vmem:[#allocation8 + $0x150] sm:$0xff]
    %v3258 = vld [vmem:[#allocation8 + $0x158] sm:$0xff]
    %v3259 = vld [vmem:[#allocation8 + $0x160] sm:$0xff]
    %v3260 = vld [vmem:[#allocation8 + $0x168] sm:$0xf]
    %v3261 = vld [vmem:[#allocation8 + $0x16c] sm:$0xff]
    %v3262 = vld [vmem:[#allocation8 + $0x174] sm:$0xff]
    %v3263 = vld [vmem:[#allocation8 + $0x17c] sm:$0xff]
    %v3264 = vld [vmem:[#allocation8 + $0x184] sm:$0xf]
    %v3265 = vld [vmem:[#allocation8 + $0x188] sm:$0xff]
    %v3266 = vld [vmem:[#allocation8 + $0x190] sm:$0xff]
    %v3267 = vld [vmem:[#allocation8 + $0x198] sm:$0xff]
    %v3268 = vld [vmem:[#allocation8 + $0x1a0] sm:$0xf]
    %v3269 = vld [vmem:[#allocation8 + $0x1a4] sm:$0xff]
    %v3270 = vld [vmem:[#allocation8 + $0x1ac] sm:$0xff]
    %v3271 = vld [vmem:[#allocation8 + $0x1b4] sm:$0xff]
    %v3272 = vld [vmem:[#allocation8 + $0x1bc] sm:$0xf]
    %v3273 = vld [vmem:[#allocation8 + $0x1c0] sm:$0xff]
    %v3274 = vld [vmem:[#allocation8 + $0x1c8] sm:$0xff]
    %v3275 = vld [vmem:[#allocation8 + $0x1d0] sm:$0xff]
    %v3276 = vld [vmem:[#allocation8 + $0x1d8] sm:$0xf]
    %v3277 = vld [vmem:[#allocation8 + $0x1dc] sm:$0xff]
    %v3278 = vld [vmem:[#allocation8 + $0x1e4] sm:$0xff]
    %v3279 = vld [vmem:[#allocation8 + $0x1ec] sm:$0xff]
    %v3280 = vld [vmem:[#allocation8 + $0x1f4] sm:$0xf]
    %v3281 = vld [vmem:[#allocation8 + $0x1f8] sm:$0xff]
    %v3282 = vld [vmem:[#allocation8 + $0x200] sm:$0xff]
    %v3283 = vld [vmem:[#allocation8 + $0x208] sm:$0xff]
    %v3284 = vld [vmem:[#allocation8 + $0x210] sm:$0xf]
    %v3285 = vld [vmem:[#allocation8 + $0x214] sm:$0xff]
    %v3286 = vld [vmem:[#allocation8 + $0x21c] sm:$0xff]
    %v3287 = vld [vmem:[#allocation8 + $0x224] sm:$0xff]
    %v3288 = vld [vmem:[#allocation8 + $0x22c] sm:$0xf]
    %v3289 = vld [vmem:[#allocation8 + $0x230] sm:$0xff]
    %v3290 = vld [vmem:[#allocation8 + $0x238] sm:$0xff]
    %v3291 = vld [vmem:[#allocation8 + $0x240] sm:$0xff]
    %v3292 = vld [vmem:[#allocation8 + $0x248] sm:$0xf]
    %v3293 = vld [vmem:[#allocation8 + $0x24c] sm:$0xff]
    %v3294 = vld [vmem:[#allocation8 + $0x254] sm:$0xff]
    %v3295 = vld [vmem:[#allocation8 + $0x25c] sm:$0xff]
    %v3296 = vld [vmem:[#allocation8 + $0x264] sm:$0xf]
    %v3297 = vld [vmem:[#allocation8 + $0x268] sm:$0xff]
    %v3298 = vld [vmem:[#allocation8 + $0x270] sm:$0xff]
    %v3299 = vld [vmem:[#allocation8 + $0x278] sm:$0xff]
    %v3300 = vld [vmem:[#allocation8 + $0x280] sm:$0xf]
    %v3301 = vld [vmem:[#allocation8 + $0x284] sm:$0xff]
    %v3302 = vld [vmem:[#allocation8 + $0x28c] sm:$0xff]
    %v3303 = vld [vmem:[#allocation8 + $0x294] sm:$0xff]
    %v3304 = vld [vmem:[#allocation8 + $0x29c] sm:$0xf]
    %v3305 = vld [vmem:[#allocation8 + $0x2a0] sm:$0xff]
    %v3306 = vld [vmem:[#allocation8 + $0x2a8] sm:$0xff]
    %v3307 = vld [vmem:[#allocation8 + $0x2b0] sm:$0xff]
    %v3308 = vld [vmem:[#allocation8 + $0x2b8] sm:$0xf]
    %v3309 = vld [vmem:[#allocation8 + $0x2bc] sm:$0xff]
    %v3310 = vld [vmem:[#allocation8 + $0x2c4] sm:$0xff]
    %v3311 = vld [vmem:[#allocation8 + $0x2cc] sm:$0xff]
    %v3312 = vld [vmem:[#allocation8 + $0x2d4] sm:$0xf]
    %v3313 = vld [vmem:[#allocation8 + $0x2d8] sm:$0xff]
    %v3314 = vld [vmem:[#allocation8 + $0x2e0] sm:$0xff]
    %v3315 = vld [vmem:[#allocation8 + $0x2e8] sm:$0xff]
    %v3316 = vld [vmem:[#allocation8 + $0x2f0] sm:$0xf]
    %v3317 = vld [vmem:[#allocation8 + $0x2f4] sm:$0xff]
    %v3318 = vld [vmem:[#allocation8 + $0x2fc] sm:$0xff]
    %v3319 = vld [vmem:[#allocation8 + $0x304] sm:$0xff]
    %v3320 = vld [vmem:[#allocation8 + $0x30c] sm:$0xf]
    %v3321 = vld [vmem:[#allocation8 + $0x310] sm:$0xff]
    %v3322 = vld [vmem:[#allocation8 + $0x318] sm:$0xff]
    %v3323 = vld [vmem:[#allocation8 + $0x320] sm:$0xff]
    %v3324 = vld [vmem:[#allocation8 + $0x328] sm:$0xf]
    %v3325 = vld [vmem:[#allocation8 + $0x32c] sm:$0xff]
    %v3326 = vld [vmem:[#allocation8 + $0x334] sm:$0xff]
    %v3327 = vld [vmem:[#allocation8 + $0x33c] sm:$0xff]
    %v3328 = vld [vmem:[#allocation8 + $0x344] sm:$0xf]
    %v3329 = vld [vmem:[#allocation8 + $0x348] sm:$0xff]
    %v3330 = vld [vmem:[#allocation8 + $0x350] sm:$0xff]
    %v3331 = vld [vmem:[#allocation8 + $0x358] sm:$0xff]
    %v3332 = vld [vmem:[#allocation8 + $0x360] sm:$0xf]
    %v3333 = vld [vmem:[#allocation8 + $0x364] sm:$0xff]
    %v3334 = vld [vmem:[#allocation8 + $0x36c] sm:$0xff]
    %v3335 = vld [vmem:[#allocation8 + $0x374] sm:$0xff]
    %v3336 = vld [vmem:[#allocation8 + $0x37c] sm:$0xf]
    %v3337 = vld [vmem:[#allocation8 + $0x380] sm:$0xff]
    %v3338 = vld [vmem:[#allocation8 + $0x388] sm:$0xff]
    %v3339 = vld [vmem:[#allocation8 + $0x390] sm:$0xff]
    %v3340 = vld [vmem:[#allocation8 + $0x398] sm:$0xf]
    %v3341 = vld [vmem:[#allocation8 + $0x39c] sm:$0xff]
    %v3342 = vld [vmem:[#allocation8 + $0x3a4] sm:$0xff]
    %v3343 = vld [vmem:[#allocation8 + $0x3ac] sm:$0xff]
    %v3344 = vld [vmem:[#allocation8 + $0x3b4] sm:$0xf]
    %v3345 = vld [vmem:[#allocation8 + $0x3b8] sm:$0xff]
    %v3346 = vld [vmem:[#allocation8 + $0x3c0] sm:$0xff]
    %v3347 = vld [vmem:[#allocation8 + $0x3c8] sm:$0xff]
    %v3348 = vld [vmem:[#allocation8 + $0x3d0] sm:$0xf]
    %v3349 = vld [vmem:[#allocation8 + $0x3d4] sm:$0xff]
    %v3350 = vld [vmem:[#allocation8 + $0x3dc] sm:$0xff]
    %v3351 = vld [vmem:[#allocation8 + $0x3e4] sm:$0xff]
    %v3352 = vld [vmem:[#allocation8 + $0x3ec] sm:$0xf]
    %v3353 = vld [vmem:[#allocation8 + $0x3f0] sm:$0xff]
    %v3354 = vld [vmem:[#allocation8 + $0x3f8] sm:$0xff]
    %v3355 = vld [vmem:[#allocation8 + $0x400] sm:$0xff]
    %v3356 = vld [vmem:[#allocation8 + $0x408] sm:$0xf]
    %v3357 = vld [vmem:[#allocation8 + $0x40c] sm:$0xff]
    %v3358 = vld [vmem:[#allocation8 + $0x414] sm:$0xff]
    %v3359 = vld [vmem:[#allocation8 + $0x41c] sm:$0xff]
    %v3360 = vld [vmem:[#allocation8 + $0x424] sm:$0xf]
    %v3361 = vld [vmem:[#allocation8 + $0x428] sm:$0xff]
    %v3362 = vld [vmem:[#allocation8 + $0x430] sm:$0xff]
    %v3363 = vld [vmem:[#allocation8 + $0x438] sm:$0xff]
    %v3364 = vld [vmem:[#allocation8 + $0x440] sm:$0xf]
    %v3365 = vld [vmem:[#allocation8 + $0x444] sm:$0xff]
    %v3366 = vld [vmem:[#allocation8 + $0x44c] sm:$0xff]
    %v3367 = vld [vmem:[#allocation8 + $0x454] sm:$0xff]
    %v3368 = vld [vmem:[#allocation8 + $0x45c] sm:$0xf]
    %v3369 = vld [vmem:[#allocation8 + $0x460] sm:$0xff]
    %v3370 = vld [vmem:[#allocation8 + $0x468] sm:$0xff]
    %v3371 = vld [vmem:[#allocation8 + $0x470] sm:$0xff]
    %v3372 = vld [vmem:[#allocation8 + $0x478] sm:$0xf]
    %v3373 = vld [vmem:[#allocation8 + $0x47c] sm:$0xff]
    %v3374 = vld [vmem:[#allocation8 + $0x484] sm:$0xff]
    %v3375 = vld [vmem:[#allocation8 + $0x48c] sm:$0xff]
    %v3376 = vld [vmem:[#allocation8 + $0x494] sm:$0xf]
    %v3377 = vld [vmem:[#allocation8 + $0x498] sm:$0xff]
    %v3378 = vld [vmem:[#allocation8 + $0x4a0] sm:$0xff]
    %v3379 = vld [vmem:[#allocation8 + $0x4a8] sm:$0xff]
    %v3380 = vld [vmem:[#allocation8 + $0x4b0] sm:$0xf]
    %v3381 = vld [vmem:[#allocation8 + $0x4b4] sm:$0xff]
    %v3382 = vld [vmem:[#allocation8 + $0x4bc] sm:$0xff]
    %v3383 = vld [vmem:[#allocation8 + $0x4c4] sm:$0xff]
    %v3384 = vld [vmem:[#allocation8 + $0x4cc] sm:$0xf]
    %v3385 = vld [vmem:[#allocation8 + $0x4d0] sm:$0xff]
    %v3386 = vld [vmem:[#allocation8 + $0x4d8] sm:$0xff]
    %v3387 = vld [vmem:[#allocation8 + $0x4e0] sm:$0xff]
    %v3388 = vld [vmem:[#allocation8 + $0x4e8] sm:$0xf]
    %v3389 = vld [vmem:[#allocation8 + $0x4ec] sm:$0xff]
    %v3390 = vld [vmem:[#allocation8 + $0x4f4] sm:$0xff]
    %v3391 = vld [vmem:[#allocation8 + $0x4fc] sm:$0xff]
    %v3392 = vld [vmem:[#allocation8 + $0x504] sm:$0xf]
    %v3393 = vld [vmem:[#allocation8 + $0x508] sm:$0xff]
    %v3394 = vld [vmem:[#allocation8 + $0x510] sm:$0xff]
    %v3395 = vld [vmem:[#allocation8 + $0x518] sm:$0xff]
    %v3396 = vld [vmem:[#allocation8 + $0x520] sm:$0xf]
    %v3397 = vld [vmem:[#allocation8 + $0x524] sm:$0xff]
    %v3398 = vld [vmem:[#allocation8 + $0x52c] sm:$0xff]
    %v3399 = vld [vmem:[#allocation8 + $0x534] sm:$0xff]
    %v3400 = vld [vmem:[#allocation8 + $0x53c] sm:$0xf]
    %v3401 = vld [vmem:[#allocation8 + $0x540] sm:$0xff]
    %v3402 = vld [vmem:[#allocation8 + $0x548] sm:$0xff]
    %v3403 = vld [vmem:[#allocation8 + $0x550] sm:$0xff]
    %v3404 = vld [vmem:[#allocation8 + $0x558] sm:$0xf]
    %v3405 = vld [vmem:[#allocation8 + $0x55c] sm:$0xff]
    %v3406 = vld [vmem:[#allocation8 + $0x564] sm:$0xff]
    %v3407 = vld [vmem:[#allocation8 + $0x56c] sm:$0xff]
    %v3408 = vld [vmem:[#allocation8 + $0x574] sm:$0xf]
    %v3409 = vld [vmem:[#allocation8 + $0x578] sm:$0xff]
    %v3410 = vld [vmem:[#allocation8 + $0x580] sm:$0xff]
    %v3411 = vld [vmem:[#allocation8 + $0x588] sm:$0xff]
    %v3412 = vld [vmem:[#allocation8 + $0x590] sm:$0xf]
    %v3413 = vld [vmem:[#allocation8 + $0x594] sm:$0xff]
    %v3414 = vld [vmem:[#allocation8 + $0x59c] sm:$0xff]
    %v3415 = vld [vmem:[#allocation8 + $0x5a4] sm:$0xff]
    %v3416 = vld [vmem:[#allocation8 + $0x5ac] sm:$0xf]
    %v3417 = vld [vmem:[#allocation8 + $0x5b0] sm:$0xff]
    %v3418 = vld [vmem:[#allocation8 + $0x5b8] sm:$0xff]
    %v3419 = vld [vmem:[#allocation8 + $0x5c0] sm:$0xff]
    %v3420 = vld [vmem:[#allocation8 + $0x5c8] sm:$0xf]
    %v3421 = vld [vmem:[#allocation8 + $0x5cc] sm:$0xff]
    %v3422 = vld [vmem:[#allocation8 + $0x5d4] sm:$0xff]
    %v3423 = vld [vmem:[#allocation8 + $0x5dc] sm:$0xff]
    %v3424 = vld [vmem:[#allocation8 + $0x5e4] sm:$0xf]
    %v3425 = vld [vmem:[#allocation8 + $0x5e8] sm:$0xff]
    %v3426 = vld [vmem:[#allocation8 + $0x5f0] sm:$0xff]
    %v3427 = vld [vmem:[#allocation8 + $0x5f8] sm:$0xff]
    %v3428 = vld [vmem:[#allocation8 + $0x600] sm:$0xf]
    %v3429 = vld [vmem:[#allocation8 + $0x604] sm:$0xff]
    %v3430 = vld [vmem:[#allocation8 + $0x60c] sm:$0xff]
    %v3431 = vld [vmem:[#allocation8 + $0x614] sm:$0xff]
    %v3432 = vld [vmem:[#allocation8 + $0x61c] sm:$0xf]
    %v3433 = vld [vmem:[#allocation8 + $0x620] sm:$0xff]
    %v3434 = vld [vmem:[#allocation8 + $0x628] sm:$0xff]
    %v3435 = vld [vmem:[#allocation8 + $0x630] sm:$0xff]
    %v3436 = vld [vmem:[#allocation8 + $0x638] sm:$0xf]
    %v3437 = vld [vmem:[#allocation8 + $0x63c] sm:$0xff]
    %v3438 = vld [vmem:[#allocation8 + $0x644] sm:$0xff]
    %v3439 = vld [vmem:[#allocation8 + $0x64c] sm:$0xff]
    %v3440 = vld [vmem:[#allocation8 + $0x654] sm:$0xf]
    %v3441 = vld [vmem:[#allocation8 + $0x658] sm:$0xff]
    %v3442 = vld [vmem:[#allocation8 + $0x660] sm:$0xff]
    %v3443 = vld [vmem:[#allocation8 + $0x668] sm:$0xff]
    %v3444 = vld [vmem:[#allocation8 + $0x670] sm:$0xf]
    %v3445 = vld [vmem:[#allocation8 + $0x674] sm:$0xff]
    %v3446 = vld [vmem:[#allocation8 + $0x67c] sm:$0xff]
    %v3447 = vld [vmem:[#allocation8 + $0x684] sm:$0xff]
    %v3448 = vld [vmem:[#allocation8 + $0x68c] sm:$0xf]
    %v3449 = vld [vmem:[#allocation8 + $0x690] sm:$0xff]
    %v3450 = vld [vmem:[#allocation8 + $0x698] sm:$0xff]
    %v3451 = vld [vmem:[#allocation8 + $0x6a0] sm:$0xff]
    %v3452 = vld [vmem:[#allocation8 + $0x6a8] sm:$0xf]
    %v3453 = vld [vmem:[#allocation8 + $0x6ac] sm:$0xff]
    %v3454 = vld [vmem:[#allocation8 + $0x6b4] sm:$0xff]
    %v3455 = vld [vmem:[#allocation8 + $0x6bc] sm:$0xff]
    %v3456 = vld [vmem:[#allocation8 + $0x6c4] sm:$0xf]
    %v3457 = vld [vmem:[#allocation8 + $0x6c8] sm:$0xff]
    %v3458 = vld [vmem:[#allocation8 + $0x6d0] sm:$0xff]
    %v3459 = vld [vmem:[#allocation8 + $0x6d8] sm:$0xff]
    %v3460 = vld [vmem:[#allocation8 + $0x6e0] sm:$0xf]
    %v3461 = vld [vmem:[#allocation8 + $0x6e4] sm:$0xff]
    %v3462 = vld [vmem:[#allocation8 + $0x6ec] sm:$0xff]
    %v3463 = vld [vmem:[#allocation8 + $0x6f4] sm:$0xff]
    %v3464 = vld [vmem:[#allocation8 + $0x6fc] sm:$0xf]
    %v3466 = vlaneseq
    %v3467 = vshrl.u32 %v3466, 7
    %v3468 = vsub.s32 0, %v3467
    %v3469 = vrot.slane %v3208, %v3468
    %v3470 = vlaneseq
    %v3471 = vshrl.u32 %v3470, 7
    %v3472 = vsub.s32 1, %v3471
    %v3473 = vrot.slane %v3208, %v3472
    %v3474 = vlaneseq
    %v3475 = vshrl.u32 %v3474, 7
    %v3476 = vsub.s32 2, %v3475
    %v3477 = vrot.slane %v3208, %v3476
    %v3478 = vlaneseq
    %v3479 = vshrl.u32 %v3478, 7
    %v3480 = vsub.s32 3, %v3479
    %v3481 = vrot.slane %v3208, %v3480
    %v3482 = vlaneseq
    %v3483 = vshrl.u32 %v3482, 7
    %v3484 = vsub.s32 4, %v3483
    %v3485 = vrot.slane %v3208, %v3484
    %v3486 = vlaneseq
    %v3487 = vshrl.u32 %v3486, 7
    %v3488 = vsub.s32 5, %v3487
    %v3489 = vrot.slane %v3208, %v3488
    %v3490 = vlaneseq
    %v3491 = vshrl.u32 %v3490, 7
    %v3492 = vsub.s32 6, %v3491
    %v3493 = vrot.slane %v3208, %v3492
    %v3757 = vunpack.c.l.b16 %v3209
    %v3758 = vunpack.c.h.b16 %v3209
    %v3759 = vunpack.c.l.b16 %v3210
    %v3760 = vunpack.c.h.b16 %v3210
    %v3761 = vunpack.c.l.b16 %v3211
    %v3762 = vunpack.c.h.b16 %v3211
    %v3763 = vunpack.c.l.b16 %v3212
    %v3764 = vunpack.c.l.b16 %v3213
    %v3765 = vunpack.c.h.b16 %v3213
    %v3766 = vunpack.c.l.b16 %v3214
    %v3767 = vunpack.c.h.b16 %v3214
    %v3768 = vunpack.c.l.b16 %v3215
    %v3769 = vunpack.c.h.b16 %v3215
    %v3770 = vunpack.c.l.b16 %v3216
    %v3771 = vunpack.c.l.b16 %v3217
    %v3772 = vunpack.c.h.b16 %v3217
    %v3773 = vunpack.c.l.b16 %v3218
    %v3774 = vunpack.c.h.b16 %v3218
    %v3775 = vunpack.c.l.b16 %v3219
    %v3776 = vunpack.c.h.b16 %v3219
    %v3777 = vunpack.c.l.b16 %v3220
    %v3778 = vunpack.c.l.b16 %v3221
    %v3779 = vunpack.c.h.b16 %v3221
    %v3780 = vunpack.c.l.b16 %v3222
    %v3781 = vunpack.c.h.b16 %v3222
    %v3782 = vunpack.c.l.b16 %v3223
    %v3783 = vunpack.c.h.b16 %v3223
    %v3784 = vunpack.c.l.b16 %v3224
    %v3785 = vunpack.c.l.b16 %v3225
    %v3786 = vunpack.c.h.b16 %v3225
    %v3787 = vunpack.c.l.b16 %v3226
    %v3788 = vunpack.c.h.b16 %v3226
    %v3789 = vunpack.c.l.b16 %v3227
    %v3790 = vunpack.c.h.b16 %v3227
    %v3791 = vunpack.c.l.b16 %v3228
    %v3792 = vunpack.c.l.b16 %v3229
    %v3793 = vunpack.c.h.b16 %v3229
    %v3794 = vunpack.c.l.b16 %v3230
    %v3795 = vunpack.c.h.b16 %v3230
    %v3796 = vunpack.c.l.b16 %v3231
    %v3797 = vunpack.c.h.b16 %v3231
    %v3798 = vunpack.c.l.b16 %v3232
    %v3799 = vunpack.c.l.b16 %v3233
    %v3800 = vunpack.c.h.b16 %v3233
    %v3801 = vunpack.c.l.b16 %v3234
    %v3802 = vunpack.c.h.b16 %v3234
    %v3803 = vunpack.c.l.b16 %v3235
    %v3804 = vunpack.c.h.b16 %v3235
    %v3805 = vunpack.c.l.b16 %v3236
    %v3806 = vunpack.c.l.b16 %v3237
    %v3807 = vunpack.c.h.b16 %v3237
    %v3808 = vunpack.c.l.b16 %v3238
    %v3809 = vunpack.c.h.b16 %v3238
    %v3810 = vunpack.c.l.b16 %v3239
    %v3811 = vunpack.c.h.b16 %v3239
    %v3812 = vunpack.c.l.b16 %v3240
    %v3813 = vunpack.c.l.b16 %v3241
    %v3814 = vunpack.c.h.b16 %v3241
    %v3815 = vunpack.c.l.b16 %v3242
    %v3816 = vunpack.c.h.b16 %v3242
    %v3817 = vunpack.c.l.b16 %v3243
    %v3818 = vunpack.c.h.b16 %v3243
    %v3819 = vunpack.c.l.b16 %v3244
    %v3820 = vunpack.c.l.b16 %v3245
    %v3821 = vunpack.c.h.b16 %v3245
    %v3822 = vunpack.c.l.b16 %v3246
    %v3823 = vunpack.c.h.b16 %v3246
    %v3824 = vunpack.c.l.b16 %v3247
    %v3825 = vunpack.c.h.b16 %v3247
    %v3826 = vunpack.c.l.b16 %v3248
    %v3827 = vunpack.c.l.b16 %v3249
    %v3828 = vunpack.c.h.b16 %v3249
    %v3829 = vunpack.c.l.b16 %v3250
    %v3830 = vunpack.c.h.b16 %v3250
    %v3831 = vunpack.c.l.b16 %v3251
    %v3832 = vunpack.c.h.b16 %v3251
    %v3833 = vunpack.c.l.b16 %v3252
    %v3834 = vunpack.c.l.b16 %v3253
    %v3835 = vunpack.c.h.b16 %v3253
    %v3836 = vunpack.c.l.b16 %v3254
    %v3837 = vunpack.c.h.b16 %v3254
    %v3838 = vunpack.c.l.b16 %v3255
    %v3839 = vunpack.c.h.b16 %v3255
    %v3840 = vunpack.c.l.b16 %v3256
    %v3841 = vunpack.c.l.b16 %v3257
    %v3842 = vunpack.c.h.b16 %v3257
    %v3843 = vunpack.c.l.b16 %v3258
    %v3844 = vunpack.c.h.b16 %v3258
    %v3845 = vunpack.c.l.b16 %v3259
    %v3846 = vunpack.c.h.b16 %v3259
    %v3847 = vunpack.c.l.b16 %v3260
    %v3848 = vunpack.c.l.b16 %v3261
    %v3849 = vunpack.c.h.b16 %v3261
    %v3850 = vunpack.c.l.b16 %v3262
    %v3851 = vunpack.c.h.b16 %v3262
    %v3852 = vunpack.c.l.b16 %v3263
    %v3853 = vunpack.c.h.b16 %v3263
    %v3854 = vunpack.c.l.b16 %v3264
    %v3855 = vunpack.c.l.b16 %v3265
    %v3856 = vunpack.c.h.b16 %v3265
    %v3857 = vunpack.c.l.b16 %v3266
    %v3858 = vunpack.c.h.b16 %v3266
    %v3859 = vunpack.c.l.b16 %v3267
    %v3860 = vunpack.c.h.b16 %v3267
    %v3861 = vunpack.c.l.b16 %v3268
    %v3862 = vunpack.c.l.b16 %v3269
    %v3863 = vunpack.c.h.b16 %v3269
    %v3864 = vunpack.c.l.b16 %v3270
    %v3865 = vunpack.c.h.b16 %v3270
    %v3866 = vunpack.c.l.b16 %v3271
    %v3867 = vunpack.c.h.b16 %v3271
    %v3868 = vunpack.c.l.b16 %v3272
    %v3869 = vunpack.c.l.b16 %v3273
    %v3870 = vunpack.c.h.b16 %v3273
    %v3871 = vunpack.c.l.b16 %v3274
    %v3872 = vunpack.c.h.b16 %v3274
    %v3873 = vunpack.c.l.b16 %v3275
    %v3874 = vunpack.c.h.b16 %v3275
    %v3875 = vunpack.c.l.b16 %v3276
    %v3876 = vunpack.c.l.b16 %v3277
    %v3877 = vunpack.c.h.b16 %v3277
    %v3878 = vunpack.c.l.b16 %v3278
    %v3879 = vunpack.c.h.b16 %v3278
    %v3880 = vunpack.c.l.b16 %v3279
    %v3881 = vunpack.c.h.b16 %v3279
    %v3882 = vunpack.c.l.b16 %v3280
    %v3883 = vunpack.c.l.b16 %v3281
    %v3884 = vunpack.c.h.b16 %v3281
    %v3885 = vunpack.c.l.b16 %v3282
    %v3886 = vunpack.c.h.b16 %v3282
    %v3887 = vunpack.c.l.b16 %v3283
    %v3888 = vunpack.c.h.b16 %v3283
    %v3889 = vunpack.c.l.b16 %v3284
    %v3890 = vunpack.c.l.b16 %v3285
    %v3891 = vunpack.c.h.b16 %v3285
    %v3892 = vunpack.c.l.b16 %v3286
    %v3893 = vunpack.c.h.b16 %v3286
    %v3894 = vunpack.c.l.b16 %v3287
    %v3895 = vunpack.c.h.b16 %v3287
    %v3896 = vunpack.c.l.b16 %v3288
    %v3897 = vunpack.c.l.b16 %v3289
    %v3898 = vunpack.c.h.b16 %v3289
    %v3899 = vunpack.c.l.b16 %v3290
    %v3900 = vunpack.c.h.b16 %v3290
    %v3901 = vunpack.c.l.b16 %v3291
    %v3902 = vunpack.c.h.b16 %v3291
    %v3903 = vunpack.c.l.b16 %v3292
    %v3904 = vunpack.c.l.b16 %v3293
    %v3905 = vunpack.c.h.b16 %v3293
    %v3906 = vunpack.c.l.b16 %v3294
    %v3907 = vunpack.c.h.b16 %v3294
    %v3908 = vunpack.c.l.b16 %v3295
    %v3909 = vunpack.c.h.b16 %v3295
    %v3910 = vunpack.c.l.b16 %v3296
    %v3911 = vunpack.c.l.b16 %v3297
    %v3912 = vunpack.c.h.b16 %v3297
    %v3913 = vunpack.c.l.b16 %v3298
    %v3914 = vunpack.c.h.b16 %v3298
    %v3915 = vunpack.c.l.b16 %v3299
    %v3916 = vunpack.c.h.b16 %v3299
    %v3917 = vunpack.c.l.b16 %v3300
    %v3918 = vunpack.c.l.b16 %v3301
    %v3919 = vunpack.c.h.b16 %v3301
    %v3920 = vunpack.c.l.b16 %v3302
    %v3921 = vunpack.c.h.b16 %v3302
    %v3922 = vunpack.c.l.b16 %v3303
    %v3923 = vunpack.c.h.b16 %v3303
    %v3924 = vunpack.c.l.b16 %v3304
    %v3925 = vunpack.c.l.b16 %v3305
    %v3926 = vunpack.c.h.b16 %v3305
    %v3927 = vunpack.c.l.b16 %v3306
    %v3928 = vunpack.c.h.b16 %v3306
    %v3929 = vunpack.c.l.b16 %v3307
    %v3930 = vunpack.c.h.b16 %v3307
    %v3931 = vunpack.c.l.b16 %v3308
    %v3932 = vunpack.c.l.b16 %v3309
    %v3933 = vunpack.c.h.b16 %v3309
    %v3934 = vunpack.c.l.b16 %v3310
    %v3935 = vunpack.c.h.b16 %v3310
    %v3936 = vunpack.c.l.b16 %v3311
    %v3937 = vunpack.c.h.b16 %v3311
    %v3938 = vunpack.c.l.b16 %v3312
    %v3939 = vunpack.c.l.b16 %v3313
    %v3940 = vunpack.c.h.b16 %v3313
    %v3941 = vunpack.c.l.b16 %v3314
    %v3942 = vunpack.c.h.b16 %v3314
    %v3943 = vunpack.c.l.b16 %v3315
    %v3944 = vunpack.c.h.b16 %v3315
    %v3945 = vunpack.c.l.b16 %v3316
    %v3946 = vunpack.c.l.b16 %v3317
    %v3947 = vunpack.c.h.b16 %v3317
    %v3948 = vunpack.c.l.b16 %v3318
    %v3949 = vunpack.c.h.b16 %v3318
    %v3950 = vunpack.c.l.b16 %v3319
    %v3951 = vunpack.c.h.b16 %v3319
    %v3952 = vunpack.c.l.b16 %v3320
    %v3953 = vunpack.c.l.b16 %v3321
    %v3954 = vunpack.c.h.b16 %v3321
    %v3955 = vunpack.c.l.b16 %v3322
    %v3956 = vunpack.c.h.b16 %v3322
    %v3957 = vunpack.c.l.b16 %v3323
    %v3958 = vunpack.c.h.b16 %v3323
    %v3959 = vunpack.c.l.b16 %v3324
    %v3960 = vunpack.c.l.b16 %v3325
    %v3961 = vunpack.c.h.b16 %v3325
    %v3962 = vunpack.c.l.b16 %v3326
    %v3963 = vunpack.c.h.b16 %v3326
    %v3964 = vunpack.c.l.b16 %v3327
    %v3965 = vunpack.c.h.b16 %v3327
    %v3966 = vunpack.c.l.b16 %v3328
    %v3967 = vunpack.c.l.b16 %v3329
    %v3968 = vunpack.c.h.b16 %v3329
    %v3969 = vunpack.c.l.b16 %v3330
    %v3970 = vunpack.c.h.b16 %v3330
    %v3971 = vunpack.c.l.b16 %v3331
    %v3972 = vunpack.c.h.b16 %v3331
    %v3973 = vunpack.c.l.b16 %v3332
    %v3974 = vunpack.c.l.b16 %v3333
    %v3975 = vunpack.c.h.b16 %v3333
    %v3976 = vunpack.c.l.b16 %v3334
    %v3977 = vunpack.c.h.b16 %v3334
    %v3978 = vunpack.c.l.b16 %v3335
    %v3979 = vunpack.c.h.b16 %v3335
    %v3980 = vunpack.c.l.b16 %v3336
    %v3981 = vunpack.c.l.b16 %v3337
    %v3982 = vunpack.c.h.b16 %v3337
    %v3983 = vunpack.c.l.b16 %v3338
    %v3984 = vunpack.c.h.b16 %v3338
    %v3985 = vunpack.c.l.b16 %v3339
    %v3986 = vunpack.c.h.b16 %v3339
    %v3987 = vunpack.c.l.b16 %v3340
    %v3988 = vunpack.c.l.b16 %v3341
    %v3989 = vunpack.c.h.b16 %v3341
    %v3990 = vunpack.c.l.b16 %v3342
    %v3991 = vunpack.c.h.b16 %v3342
    %v3992 = vunpack.c.l.b16 %v3343
    %v3993 = vunpack.c.h.b16 %v3343
    %v3994 = vunpack.c.l.b16 %v3344
    %v3995 = vunpack.c.l.b16 %v3345
    %v3996 = vunpack.c.h.b16 %v3345
    %v3997 = vunpack.c.l.b16 %v3346
    %v3998 = vunpack.c.h.b16 %v3346
    %v3999 = vunpack.c.l.b16 %v3347
    %v4000 = vunpack.c.h.b16 %v3347
    %v4001 = vunpack.c.l.b16 %v3348
    %v4002 = vunpack.c.l.b16 %v3349
    %v4003 = vunpack.c.h.b16 %v3349
    %v4004 = vunpack.c.l.b16 %v3350
    %v4005 = vunpack.c.h.b16 %v3350
    %v4006 = vunpack.c.l.b16 %v3351
    %v4007 = vunpack.c.h.b16 %v3351
    %v4008 = vunpack.c.l.b16 %v3352
    %v4009 = vunpack.c.l.b16 %v3353
    %v4010 = vunpack.c.h.b16 %v3353
    %v4011 = vunpack.c.l.b16 %v3354
    %v4012 = vunpack.c.h.b16 %v3354
    %v4013 = vunpack.c.l.b16 %v3355
    %v4014 = vunpack.c.h.b16 %v3355
    %v4015 = vunpack.c.l.b16 %v3356
    %v4016 = vunpack.c.l.b16 %v3357
    %v4017 = vunpack.c.h.b16 %v3357
    %v4018 = vunpack.c.l.b16 %v3358
    %v4019 = vunpack.c.h.b16 %v3358
    %v4020 = vunpack.c.l.b16 %v3359
    %v4021 = vunpack.c.h.b16 %v3359
    %v4022 = vunpack.c.l.b16 %v3360
    %v4023 = vunpack.c.l.b16 %v3361
    %v4024 = vunpack.c.h.b16 %v3361
    %v4025 = vunpack.c.l.b16 %v3362
    %v4026 = vunpack.c.h.b16 %v3362
    %v4027 = vunpack.c.l.b16 %v3363
    %v4028 = vunpack.c.h.b16 %v3363
    %v4029 = vunpack.c.l.b16 %v3364
    %v4030 = vunpack.c.l.b16 %v3365
    %v4031 = vunpack.c.h.b16 %v3365
    %v4032 = vunpack.c.l.b16 %v3366
    %v4033 = vunpack.c.h.b16 %v3366
    %v4034 = vunpack.c.l.b16 %v3367
    %v4035 = vunpack.c.h.b16 %v3367
    %v4036 = vunpack.c.l.b16 %v3368
    %v4037 = vunpack.c.l.b16 %v3369
    %v4038 = vunpack.c.h.b16 %v3369
    %v4039 = vunpack.c.l.b16 %v3370
    %v4040 = vunpack.c.h.b16 %v3370
    %v4041 = vunpack.c.l.b16 %v3371
    %v4042 = vunpack.c.h.b16 %v3371
    %v4043 = vunpack.c.l.b16 %v3372
    %v4044 = vunpack.c.l.b16 %v3373
    %v4045 = vunpack.c.h.b16 %v3373
    %v4046 = vunpack.c.l.b16 %v3374
    %v4047 = vunpack.c.h.b16 %v3374
    %v4048 = vunpack.c.l.b16 %v3375
    %v4049 = vunpack.c.h.b16 %v3375
    %v4050 = vunpack.c.l.b16 %v3376
    %v4051 = vunpack.c.l.b16 %v3377
    %v4052 = vunpack.c.h.b16 %v3377
    %v4053 = vunpack.c.l.b16 %v3378
    %v4054 = vunpack.c.h.b16 %v3378
    %v4055 = vunpack.c.l.b16 %v3379
    %v4056 = vunpack.c.h.b16 %v3379
    %v4057 = vunpack.c.l.b16 %v3380
    %v4058 = vunpack.c.l.b16 %v3381
    %v4059 = vunpack.c.h.b16 %v3381
    %v4060 = vunpack.c.l.b16 %v3382
    %v4061 = vunpack.c.h.b16 %v3382
    %v4062 = vunpack.c.l.b16 %v3383
    %v4063 = vunpack.c.h.b16 %v3383
    %v4064 = vunpack.c.l.b16 %v3384
    %v4065 = vunpack.c.l.b16 %v3385
    %v4066 = vunpack.c.h.b16 %v3385
    %v4067 = vunpack.c.l.b16 %v3386
    %v4068 = vunpack.c.h.b16 %v3386
    %v4069 = vunpack.c.l.b16 %v3387
    %v4070 = vunpack.c.h.b16 %v3387
    %v4071 = vunpack.c.l.b16 %v3388
    %v4072 = vunpack.c.l.b16 %v3389
    %v4073 = vunpack.c.h.b16 %v3389
    %v4074 = vunpack.c.l.b16 %v3390
    %v4075 = vunpack.c.h.b16 %v3390
    %v4076 = vunpack.c.l.b16 %v3391
    %v4077 = vunpack.c.h.b16 %v3391
    %v4078 = vunpack.c.l.b16 %v3392
    %v4079 = vunpack.c.l.b16 %v3393
    %v4080 = vunpack.c.h.b16 %v3393
    %v4081 = vunpack.c.l.b16 %v3394
    %v4082 = vunpack.c.h.b16 %v3394
    %v4083 = vunpack.c.l.b16 %v3395
    %v4084 = vunpack.c.h.b16 %v3395
    %v4085 = vunpack.c.l.b16 %v3396
    %v4086 = vunpack.c.l.b16 %v3397
    %v4087 = vunpack.c.h.b16 %v3397
    %v4088 = vunpack.c.l.b16 %v3398
    %v4089 = vunpack.c.h.b16 %v3398
    %v4090 = vunpack.c.l.b16 %v3399
    %v4091 = vunpack.c.h.b16 %v3399
    %v4092 = vunpack.c.l.b16 %v3400
    %v4093 = vunpack.c.l.b16 %v3401
    %v4094 = vunpack.c.h.b16 %v3401
    %v4095 = vunpack.c.l.b16 %v3402
    %v4096 = vunpack.c.h.b16 %v3402
    %v4097 = vunpack.c.l.b16 %v3403
    %v4098 = vunpack.c.h.b16 %v3403
    %v4099 = vunpack.c.l.b16 %v3404
    %v4100 = vunpack.c.l.b16 %v3405
    %v4101 = vunpack.c.h.b16 %v3405
    %v4102 = vunpack.c.l.b16 %v3406
    %v4103 = vunpack.c.h.b16 %v3406
    %v4104 = vunpack.c.l.b16 %v3407
    %v4105 = vunpack.c.h.b16 %v3407
    %v4106 = vunpack.c.l.b16 %v3408
    %v4107 = vunpack.c.l.b16 %v3409
    %v4108 = vunpack.c.h.b16 %v3409
    %v4109 = vunpack.c.l.b16 %v3410
    %v4110 = vunpack.c.h.b16 %v3410
    %v4111 = vunpack.c.l.b16 %v3411
    %v4112 = vunpack.c.h.b16 %v3411
    %v4113 = vunpack.c.l.b16 %v3412
    %v4114 = vunpack.c.l.b16 %v3413
    %v4115 = vunpack.c.h.b16 %v3413
    %v4116 = vunpack.c.l.b16 %v3414
    %v4117 = vunpack.c.h.b16 %v3414
    %v4118 = vunpack.c.l.b16 %v3415
    %v4119 = vunpack.c.h.b16 %v3415
    %v4120 = vunpack.c.l.b16 %v3416
    %v4121 = vunpack.c.l.b16 %v3417
    %v4122 = vunpack.c.h.b16 %v3417
    %v4123 = vunpack.c.l.b16 %v3418
    %v4124 = vunpack.c.h.b16 %v3418
    %v4125 = vunpack.c.l.b16 %v3419
    %v4126 = vunpack.c.h.b16 %v3419
    %v4127 = vunpack.c.l.b16 %v3420
    %v4128 = vunpack.c.l.b16 %v3421
    %v4129 = vunpack.c.h.b16 %v3421
    %v4130 = vunpack.c.l.b16 %v3422
    %v4131 = vunpack.c.h.b16 %v3422
    %v4132 = vunpack.c.l.b16 %v3423
    %v4133 = vunpack.c.h.b16 %v3423
    %v4134 = vunpack.c.l.b16 %v3424
    %v4135 = vunpack.c.l.b16 %v3425
    %v4136 = vunpack.c.h.b16 %v3425
    %v4137 = vunpack.c.l.b16 %v3426
    %v4138 = vunpack.c.h.b16 %v3426
    %v4139 = vunpack.c.l.b16 %v3427
    %v4140 = vunpack.c.h.b16 %v3427
    %v4141 = vunpack.c.l.b16 %v3428
    %v4142 = vunpack.c.l.b16 %v3429
    %v4143 = vunpack.c.h.b16 %v3429
    %v4144 = vunpack.c.l.b16 %v3430
    %v4145 = vunpack.c.h.b16 %v3430
    %v4146 = vunpack.c.l.b16 %v3431
    %v4147 = vunpack.c.h.b16 %v3431
    %v4148 = vunpack.c.l.b16 %v3432
    %v4149 = vunpack.c.l.b16 %v3433
    %v4150 = vunpack.c.h.b16 %v3433
    %v4151 = vunpack.c.l.b16 %v3434
    %v4152 = vunpack.c.h.b16 %v3434
    %v4153 = vunpack.c.l.b16 %v3435
    %v4154 = vunpack.c.h.b16 %v3435
    %v4155 = vunpack.c.l.b16 %v3436
    %v4156 = vunpack.c.l.b16 %v3437
    %v4157 = vunpack.c.h.b16 %v3437
    %v4158 = vunpack.c.l.b16 %v3438
    %v4159 = vunpack.c.h.b16 %v3438
    %v4160 = vunpack.c.l.b16 %v3439
    %v4161 = vunpack.c.h.b16 %v3439
    %v4162 = vunpack.c.l.b16 %v3440
    %v4163 = vunpack.c.l.b16 %v3441
    %v4164 = vunpack.c.h.b16 %v3441
    %v4165 = vunpack.c.l.b16 %v3442
    %v4166 = vunpack.c.h.b16 %v3442
    %v4167 = vunpack.c.l.b16 %v3443
    %v4168 = vunpack.c.h.b16 %v3443
    %v4169 = vunpack.c.l.b16 %v3444
    %v4170 = vunpack.c.l.b16 %v3445
    %v4171 = vunpack.c.h.b16 %v3445
    %v4172 = vunpack.c.l.b16 %v3446
    %v4173 = vunpack.c.h.b16 %v3446
    %v4174 = vunpack.c.l.b16 %v3447
    %v4175 = vunpack.c.h.b16 %v3447
    %v4176 = vunpack.c.l.b16 %v3448
    %v4177 = vunpack.c.l.b16 %v3449
    %v4178 = vunpack.c.h.b16 %v3449
    %v4179 = vunpack.c.l.b16 %v3450
    %v4180 = vunpack.c.h.b16 %v3450
    %v4181 = vunpack.c.l.b16 %v3451
    %v4182 = vunpack.c.h.b16 %v3451
    %v4183 = vunpack.c.l.b16 %v3452
    %v4184 = vunpack.c.l.b16 %v3453
    %v4185 = vunpack.c.h.b16 %v3453
    %v4186 = vunpack.c.l.b16 %v3454
    %v4187 = vunpack.c.h.b16 %v3454
    %v4188 = vunpack.c.l.b16 %v3455
    %v4189 = vunpack.c.h.b16 %v3455
    %v4190 = vunpack.c.l.b16 %v3456
    %v4191 = vunpack.c.l.b16 %v3457
    %v4192 = vunpack.c.h.b16 %v3457
    %v4193 = vunpack.c.l.b16 %v3458
    %v4194 = vunpack.c.h.b16 %v3458
    %v4195 = vunpack.c.l.b16 %v3459
    %v4196 = vunpack.c.h.b16 %v3459
    %v4197 = vunpack.c.l.b16 %v3460
    %v4198 = vunpack.c.l.b16 %v3461
    %v4199 = vunpack.c.h.b16 %v3461
    %v4200 = vunpack.c.l.b16 %v3462
    %v4201 = vunpack.c.h.b16 %v3462
    %v4202 = vunpack.c.l.b16 %v3463
    %v4203 = vunpack.c.h.b16 %v3463
    %v4204 = vunpack.c.l.b16 %v3464
    %v4205 = vpack.c.b16 %v3764, %v3757
    %v4206 = vpack.c.b16 %v3765, %v3758
    %v4207 = vpack.c.b16 %v3766, %v3759
    %v4208 = vpack.c.b16 %v3767, %v3760
    %v4209 = vpack.c.b16 %v3768, %v3761
    %v4210 = vpack.c.b16 %v3769, %v3762
    %v4211 = vpack.c.b16 %v3770, %v3763
    %v4212 = vpack.c.b16 %v3778, %v3771
    %v4213 = vpack.c.b16 %v3779, %v3772
    %v4214 = vpack.c.b16 %v3780, %v3773
    %v4215 = vpack.c.b16 %v3781, %v3774
    %v4216 = vpack.c.b16 %v3782, %v3775
    %v4217 = vpack.c.b16 %v3783, %v3776
    %v4218 = vpack.c.b16 %v3784, %v3777
    %v4219 = vpack.c.b16 %v3792, %v3785
    %v4220 = vpack.c.b16 %v3793, %v3786
    %v4221 = vpack.c.b16 %v3794, %v3787
    %v4222 = vpack.c.b16 %v3795, %v3788
    %v4223 = vpack.c.b16 %v3796, %v3789
    %v4224 = vpack.c.b16 %v3797, %v3790
    %v4225 = vpack.c.b16 %v3798, %v3791
    %v4226 = vpack.c.b16 %v3806, %v3799
    %v4227 = vpack.c.b16 %v3807, %v3800
    %v4228 = vpack.c.b16 %v3808, %v3801
    %v4229 = vpack.c.b16 %v3809, %v3802
    %v4230 = vpack.c.b16 %v3810, %v3803
    %v4231 = vpack.c.b16 %v3811, %v3804
    %v4232 = vpack.c.b16 %v3812, %v3805
    %v4233 = vpack.c.b16 %v3820, %v3813
    %v4234 = vpack.c.b16 %v3821, %v3814
    %v4235 = vpack.c.b16 %v3822, %v3815
    %v4236 = vpack.c.b16 %v3823, %v3816
    %v4237 = vpack.c.b16 %v3824, %v3817
    %v4238 = vpack.c.b16 %v3825, %v3818
    %v4239 = vpack.c.b16 %v3826, %v3819
    %v4240 = vpack.c.b16 %v3834, %v3827
    %v4241 = vpack.c.b16 %v3835, %v3828
    %v4242 = vpack.c.b16 %v3836, %v3829
    %v4243 = vpack.c.b16 %v3837, %v3830
    %v4244 = vpack.c.b16 %v3838, %v3831
    %v4245 = vpack.c.b16 %v3839, %v3832
    %v4246 = vpack.c.b16 %v3840, %v3833
    %v4247 = vpack.c.b16 %v3848, %v3841
    %v4248 = vpack.c.b16 %v3849, %v3842
    %v4249 = vpack.c.b16 %v3850, %v3843
    %v4250 = vpack.c.b16 %v3851, %v3844
    %v4251 = vpack.c.b16 %v3852, %v3845
    %v4252 = vpack.c.b16 %v3853, %v3846
    %v4253 = vpack.c.b16 %v3854, %v3847
    %v4254 = vpack.c.b16 %v3862, %v3855
    %v4255 = vpack.c.b16 %v3863, %v3856
    %v4256 = vpack.c.b16 %v3864, %v3857
    %v4257 = vpack.c.b16 %v3865, %v3858
    %v4258 = vpack.c.b16 %v3866, %v3859
    %v4259 = vpack.c.b16 %v3867, %v3860
    %v4260 = vpack.c.b16 %v3868, %v3861
    %v4261 = vpack.c.b16 %v3876, %v3869
    %v4262 = vpack.c.b16 %v3877, %v3870
    %v4263 = vpack.c.b16 %v3878, %v3871
    %v4264 = vpack.c.b16 %v3879, %v3872
    %v4265 = vpack.c.b16 %v3880, %v3873
    %v4266 = vpack.c.b16 %v3881, %v3874
    %v4267 = vpack.c.b16 %v3882, %v3875
    %v4268 = vpack.c.b16 %v3890, %v3883
    %v4269 = vpack.c.b16 %v3891, %v3884
    %v4270 = vpack.c.b16 %v3892, %v3885
    %v4271 = vpack.c.b16 %v3893, %v3886
    %v4272 = vpack.c.b16 %v3894, %v3887
    %v4273 = vpack.c.b16 %v3895, %v3888
    %v4274 = vpack.c.b16 %v3896, %v3889
    %v4275 = vpack.c.b16 %v3904, %v3897
    %v4276 = vpack.c.b16 %v3905, %v3898
    %v4277 = vpack.c.b16 %v3906, %v3899
    %v4278 = vpack.c.b16 %v3907, %v3900
    %v4279 = vpack.c.b16 %v3908, %v3901
    %v4280 = vpack.c.b16 %v3909, %v3902
    %v4281 = vpack.c.b16 %v3910, %v3903
    %v4282 = vpack.c.b16 %v3918, %v3911
    %v4283 = vpack.c.b16 %v3919, %v3912
    %v4284 = vpack.c.b16 %v3920, %v3913
    %v4285 = vpack.c.b16 %v3921, %v3914
    %v4286 = vpack.c.b16 %v3922, %v3915
    %v4287 = vpack.c.b16 %v3923, %v3916
    %v4288 = vpack.c.b16 %v3924, %v3917
    %v4289 = vpack.c.b16 %v3932, %v3925
    %v4290 = vpack.c.b16 %v3933, %v3926
    %v4291 = vpack.c.b16 %v3934, %v3927
    %v4292 = vpack.c.b16 %v3935, %v3928
    %v4293 = vpack.c.b16 %v3936, %v3929
    %v4294 = vpack.c.b16 %v3937, %v3930
    %v4295 = vpack.c.b16 %v3938, %v3931
    %v4296 = vpack.c.b16 %v3946, %v3939
    %v4297 = vpack.c.b16 %v3947, %v3940
    %v4298 = vpack.c.b16 %v3948, %v3941
    %v4299 = vpack.c.b16 %v3949, %v3942
    %v4300 = vpack.c.b16 %v3950, %v3943
    %v4301 = vpack.c.b16 %v3951, %v3944
    %v4302 = vpack.c.b16 %v3952, %v3945
    %v4303 = vpack.c.b16 %v3960, %v3953
    %v4304 = vpack.c.b16 %v3961, %v3954
    %v4305 = vpack.c.b16 %v3962, %v3955
    %v4306 = vpack.c.b16 %v3963, %v3956
    %v4307 = vpack.c.b16 %v3964, %v3957
    %v4308 = vpack.c.b16 %v3965, %v3958
    %v4309 = vpack.c.b16 %v3966, %v3959
    %v4310 = vpack.c.b16 %v3974, %v3967
    %v4311 = vpack.c.b16 %v3975, %v3968
    %v4312 = vpack.c.b16 %v3976, %v3969
    %v4313 = vpack.c.b16 %v3977, %v3970
    %v4314 = vpack.c.b16 %v3978, %v3971
    %v4315 = vpack.c.b16 %v3979, %v3972
    %v4316 = vpack.c.b16 %v3980, %v3973
    %v4317 = vpack.c.b16 %v3988, %v3981
    %v4318 = vpack.c.b16 %v3989, %v3982
    %v4319 = vpack.c.b16 %v3990, %v3983
    %v4320 = vpack.c.b16 %v3991, %v3984
    %v4321 = vpack.c.b16 %v3992, %v3985
    %v4322 = vpack.c.b16 %v3993, %v3986
    %v4323 = vpack.c.b16 %v3994, %v3987
    %v4324 = vpack.c.b16 %v4002, %v3995
    %v4325 = vpack.c.b16 %v4003, %v3996
    %v4326 = vpack.c.b16 %v4004, %v3997
    %v4327 = vpack.c.b16 %v4005, %v3998
    %v4328 = vpack.c.b16 %v4006, %v3999
    %v4329 = vpack.c.b16 %v4007, %v4000
    %v4330 = vpack.c.b16 %v4008, %v4001
    %v4331 = vpack.c.b16 %v4016, %v4009
    %v4332 = vpack.c.b16 %v4017, %v4010
    %v4333 = vpack.c.b16 %v4018, %v4011
    %v4334 = vpack.c.b16 %v4019, %v4012
    %v4335 = vpack.c.b16 %v4020, %v4013
    %v4336 = vpack.c.b16 %v4021, %v4014
    %v4337 = vpack.c.b16 %v4022, %v4015
    %v4338 = vpack.c.b16 %v4030, %v4023
    %v4339 = vpack.c.b16 %v4031, %v4024
    %v4340 = vpack.c.b16 %v4032, %v4025
    %v4341 = vpack.c.b16 %v4033, %v4026
    %v4342 = vpack.c.b16 %v4034, %v4027
    %v4343 = vpack.c.b16 %v4035, %v4028
    %v4344 = vpack.c.b16 %v4036, %v4029
    %v4345 = vpack.c.b16 %v4044, %v4037
    %v4346 = vpack.c.b16 %v4045, %v4038
    %v4347 = vpack.c.b16 %v4046, %v4039
    %v4348 = vpack.c.b16 %v4047, %v4040
    %v4349 = vpack.c.b16 %v4048, %v4041
    %v4350 = vpack.c.b16 %v4049, %v4042
    %v4351 = vpack.c.b16 %v4050, %v4043
    %v4352 = vpack.c.b16 %v4058, %v4051
    %v4353 = vpack.c.b16 %v4059, %v4052
    %v4354 = vpack.c.b16 %v4060, %v4053
    %v4355 = vpack.c.b16 %v4061, %v4054
    %v4356 = vpack.c.b16 %v4062, %v4055
    %v4357 = vpack.c.b16 %v4063, %v4056
    %v4358 = vpack.c.b16 %v4064, %v4057
    %v4359 = vpack.c.b16 %v4072, %v4065
    %v4360 = vpack.c.b16 %v4073, %v4066
    %v4361 = vpack.c.b16 %v4074, %v4067
    %v4362 = vpack.c.b16 %v4075, %v4068
    %v4363 = vpack.c.b16 %v4076, %v4069
    %v4364 = vpack.c.b16 %v4077, %v4070
    %v4365 = vpack.c.b16 %v4078, %v4071
    %v4366 = vpack.c.b16 %v4086, %v4079
    %v4367 = vpack.c.b16 %v4087, %v4080
    %v4368 = vpack.c.b16 %v4088, %v4081
    %v4369 = vpack.c.b16 %v4089, %v4082
    %v4370 = vpack.c.b16 %v4090, %v4083
    %v4371 = vpack.c.b16 %v4091, %v4084
    %v4372 = vpack.c.b16 %v4092, %v4085
    %v4373 = vpack.c.b16 %v4100, %v4093
    %v4374 = vpack.c.b16 %v4101, %v4094
    %v4375 = vpack.c.b16 %v4102, %v4095
    %v4376 = vpack.c.b16 %v4103, %v4096
    %v4377 = vpack.c.b16 %v4104, %v4097
    %v4378 = vpack.c.b16 %v4105, %v4098
    %v4379 = vpack.c.b16 %v4106, %v4099
    %v4380 = vpack.c.b16 %v4114, %v4107
    %v4381 = vpack.c.b16 %v4115, %v4108
    %v4382 = vpack.c.b16 %v4116, %v4109
    %v4383 = vpack.c.b16 %v4117, %v4110
    %v4384 = vpack.c.b16 %v4118, %v4111
    %v4385 = vpack.c.b16 %v4119, %v4112
    %v4386 = vpack.c.b16 %v4120, %v4113
    %v4387 = vpack.c.b16 %v4128, %v4121
    %v4388 = vpack.c.b16 %v4129, %v4122
    %v4389 = vpack.c.b16 %v4130, %v4123
    %v4390 = vpack.c.b16 %v4131, %v4124
    %v4391 = vpack.c.b16 %v4132, %v4125
    %v4392 = vpack.c.b16 %v4133, %v4126
    %v4393 = vpack.c.b16 %v4134, %v4127
    %v4394 = vpack.c.b16 %v4142, %v4135
    %v4395 = vpack.c.b16 %v4143, %v4136
    %v4396 = vpack.c.b16 %v4144, %v4137
    %v4397 = vpack.c.b16 %v4145, %v4138
    %v4398 = vpack.c.b16 %v4146, %v4139
    %v4399 = vpack.c.b16 %v4147, %v4140
    %v4400 = vpack.c.b16 %v4148, %v4141
    %v4401 = vpack.c.b16 %v4156, %v4149
    %v4402 = vpack.c.b16 %v4157, %v4150
    %v4403 = vpack.c.b16 %v4158, %v4151
    %v4404 = vpack.c.b16 %v4159, %v4152
    %v4405 = vpack.c.b16 %v4160, %v4153
    %v4406 = vpack.c.b16 %v4161, %v4154
    %v4407 = vpack.c.b16 %v4162, %v4155
    %v4408 = vpack.c.b16 %v4170, %v4163
    %v4409 = vpack.c.b16 %v4171, %v4164
    %v4410 = vpack.c.b16 %v4172, %v4165
    %v4411 = vpack.c.b16 %v4173, %v4166
    %v4412 = vpack.c.b16 %v4174, %v4167
    %v4413 = vpack.c.b16 %v4175, %v4168
    %v4414 = vpack.c.b16 %v4176, %v4169
    %v4415 = vpack.c.b16 %v4184, %v4177
    %v4416 = vpack.c.b16 %v4185, %v4178
    %v4417 = vpack.c.b16 %v4186, %v4179
    %v4418 = vpack.c.b16 %v4187, %v4180
    %v4419 = vpack.c.b16 %v4188, %v4181
    %v4420 = vpack.c.b16 %v4189, %v4182
    %v4421 = vpack.c.b16 %v4190, %v4183
    %v4422 = vpack.c.b16 %v4198, %v4191
    %v4423 = vpack.c.b16 %v4199, %v4192
    %v4424 = vpack.c.b16 %v4200, %v4193
    %v4425 = vpack.c.b16 %v4201, %v4194
    %v4426 = vpack.c.b16 %v4202, %v4195
    %v4427 = vpack.c.b16 %v4203, %v4196
    %v4428 = vpack.c.b16 %v4204, %v4197
    %4653 = vmatprep.subr.bf16.mxu0 %v4206
    %4654 = vmatpush1.bf16.msra.mxu0 %v4205
    %4655 = vmatprep.subr.bf16.mxu0 %v4213
    %4656 = vmatpush1.bf16.msra.mxu0 %v4212
    %4657 = vmatprep.subr.bf16.mxu0 %v4220
    %4658 = vmatpush1.bf16.msra.mxu0 %v4219
    %4659 = vmatprep.subr.bf16.mxu0 %v4227
    %4660 = vmatpush1.bf16.msra.mxu0 %v4226
    %4661 = vmatprep.subr.bf16.mxu0 %v4234
    %4662 = vmatpush1.bf16.msra.mxu0 %v4233
    %4663 = vmatprep.subr.bf16.mxu0 %v4241
    %4664 = vmatpush1.bf16.msra.mxu0 %v4240
    %4665 = vmatprep.subr.bf16.mxu0 %v4248
    %4666 = vmatpush1.bf16.msra.mxu0 %v4247
    %4667 = vmatprep.subr.bf16.mxu0 %v4255
    %4668 = vmatpush1.bf16.msra.mxu0 %v4254
    %4669 = vmatprep.subr.bf16.mxu0 %v4262
    %4670 = vmatpush1.bf16.msra.mxu0 %v4261
    %4671 = vmatprep.subr.bf16.mxu0 %v4269
    %4672 = vmatpush1.bf16.msra.mxu0 %v4268
    %4673 = vmatprep.subr.bf16.mxu0 %v4276
    %4674 = vmatpush1.bf16.msra.mxu0 %v4275
    %4675 = vmatprep.subr.bf16.mxu0 %v4283
    %4676 = vmatpush1.bf16.msra.mxu0 %v4282
    %4677 = vmatprep.subr.bf16.mxu0 %v4290
    %4678 = vmatpush1.bf16.msra.mxu0 %v4289
    %4679 = vmatprep.subr.bf16.mxu0 %v4297
    %4680 = vmatpush1.bf16.msra.mxu0 %v4296
    %4681 = vmatprep.subr.bf16.mxu0 %v4304
    %4682 = vmatpush1.bf16.msra.mxu0 %v4303
    %4683 = vmatprep.subr.bf16.mxu0 %v4311
    %4684 = vmatpush1.bf16.msra.mxu0 %v4310
    %4685 = vmatprep.mubr.bf16.mxu0 %v3202
    %4686 = vmatmul.mubr.bf16.gmra.mrb[0].mxu0 %v3201
    %v4687 = vpop.f32.mrb[0].mxu0
    %v4688 = vadd.f32 %v3469, %v4687
    %v4689 = vpop.f32.mrb[0].mxu0
    %v4690 = vadd.f32 %v3473, %v4689
    %v4691 = vpop.f32.mrb[0].mxu0
    %v4692 = vadd.f32 %v3469, %v4691
    %v4693 = vpop.f32.mrb[0].mxu0
    %v4694 = vadd.f32 %v3473, %v4693
    %4695 = vdwg.mxu0
    %4696 = vmatprep.subr.bf16.mxu0 %v4318
    %4697 = vmatpush1.bf16.msra.mxu0 %v4317
    %4698 = vmatprep.subr.bf16.mxu0 %v4325
    %4699 = vmatpush1.bf16.msra.mxu0 %v4324
    %4700 = vmatprep.subr.bf16.mxu0 %v4332
    %4701 = vmatpush1.bf16.msra.mxu0 %v4331
    %4702 = vmatprep.subr.bf16.mxu0 %v4339
    %4703 = vmatpush1.bf16.msra.mxu0 %v4338
    %4704 = vmatprep.subr.bf16.mxu0 %v4346
    %4705 = vmatpush1.bf16.msra.mxu0 %v4345
    %4706 = vmatprep.subr.bf16.mxu0 %v4353
    %4707 = vmatpush1.bf16.msra.mxu0 %v4352
    %4708 = vmatprep.subr.bf16.mxu0 %v4360
    %4709 = vmatpush1.bf16.msra.mxu0 %v4359
    %4710 = vmatprep.subr.bf16.mxu0 %v4367
    %4711 = vmatpush1.bf16.msra.mxu0 %v4366
    %4712 = vmatprep.subr.bf16.mxu0 %v4374
    %4713 = vmatpush1.bf16.msra.mxu0 %v4373
    %4714 = vmatprep.subr.bf16.mxu0 %v4381
    %4715 = vmatpush1.bf16.msra.mxu0 %v4380
    %4716 = vmatprep.subr.bf16.mxu0 %v4388
    %4717 = vmatpush1.bf16.msra.mxu0 %v4387
    %4718 = vmatprep.subr.bf16.mxu0 %v4395
    %4719 = vmatpush1.bf16.msra.mxu0 %v4394
    %4720 = vmatprep.subr.bf16.mxu0 %v4402
    %4721 = vmatpush1.bf16.msra.mxu0 %v4401
    %4722 = vmatprep.subr.bf16.mxu0 %v4409
    %4723 = vmatpush1.bf16.msra.mxu0 %v4408
    %4724 = vmatprep.subr.bf16.mxu0 %v4416
    %4725 = vmatpush1.bf16.msra.mxu0 %v4415
    %4726 = vmatprep.subr.bf16.mxu0 %v4423
    %4727 = vmatpush1.bf16.msra.mxu0 %v4422
    %4728 = vmatprep.mubr.bf16.mxu0 %v3204
    %4729 = vmatmul.mubr.bf16.gmra.mrb[0].mxu0 %v3203
    %v4730 = vpop.f32.mrb[0].mxu0
    %v4731 = vadd.f32 %v4688, %v4730
    %v4732 = vpop.f32.mrb[0].mxu0
    %v4733 = vadd.f32 %v4690, %v4732
    %v4734 = vpop.f32.mrb[0].mxu0
    %v4735 = vadd.f32 %v4692, %v4734
    %v4736 = vpop.f32.mrb[0].mxu0
    %v4737 = vadd.f32 %v4694, %v4736
    %4738 = vdwg.mxu0
    %4739 = vmatprep.subr.bf16.mxu0 %v4208
    %4740 = vmatpush1.bf16.msra.mxu0 %v4207
    %4741 = vmatprep.subr.bf16.mxu0 %v4215
    %4742 = vmatpush1.bf16.msra.mxu0 %v4214
    %4743 = vmatprep.subr.bf16.mxu0 %v4222
    %4744 = vmatpush1.bf16.msra.mxu0 %v4221
    %4745 = vmatprep.subr.bf16.mxu0 %v4229
    %4746 = vmatpush1.bf16.msra.mxu0 %v4228
    %4747 = vmatprep.subr.bf16.mxu0 %v4236
    %4748 = vmatpush1.bf16.msra.mxu0 %v4235
    %4749 = vmatprep.subr.bf16.mxu0 %v4243
    %4750 = vmatpush1.bf16.msra.mxu0 %v4242
    %4751 = vmatprep.subr.bf16.mxu0 %v4250
    %4752 = vmatpush1.bf16.msra.mxu0 %v4249
    %4753 = vmatprep.subr.bf16.mxu0 %v4257
    %4754 = vmatpush1.bf16.msra.mxu0 %v4256
    %4755 = vmatprep.subr.bf16.mxu0 %v4264
    %4756 = vmatpush1.bf16.msra.mxu0 %v4263
    %4757 = vmatprep.subr.bf16.mxu0 %v4271
    %4758 = vmatpush1.bf16.msra.mxu0 %v4270
    %4759 = vmatprep.subr.bf16.mxu0 %v4278
    %4760 = vmatpush1.bf16.msra.mxu0 %v4277
    %4761 = vmatprep.subr.bf16.mxu0 %v4285
    %4762 = vmatpush1.bf16.msra.mxu0 %v4284
    %4763 = vmatprep.subr.bf16.mxu0 %v4292
    %4764 = vmatpush1.bf16.msra.mxu0 %v4291
    %4765 = vmatprep.subr.bf16.mxu0 %v4299
    %4766 = vmatpush1.bf16.msra.mxu0 %v4298
    %4767 = vmatprep.subr.bf16.mxu0 %v4306
    %4768 = vmatpush1.bf16.msra.mxu0 %v4305
    %4769 = vmatprep.subr.bf16.mxu0 %v4313
    %4770 = vmatpush1.bf16.msra.mxu0 %v4312
    %4771 = vmatprep.mubr.bf16.mxu0 %v3202
    %4772 = vmatmul.mubr.bf16.gmra.mrb[0].mxu0 %v3201
    %v4773 = vpop.f32.mrb[0].mxu0
    %v4774 = vadd.f32 %v3477, %v4773
    %v4775 = vpop.f32.mrb[0].mxu0
    %v4776 = vadd.f32 %v3481, %v4775
    %v4777 = vpop.f32.mrb[0].mxu0
    %v4778 = vadd.f32 %v3477, %v4777
    %v4779 = vpop.f32.mrb[0].mxu0
    %v4780 = vadd.f32 %v3481, %v4779
    %4781 = vdwg.mxu0
    %4782 = vmatprep.subr.bf16.mxu0 %v4320
    %4783 = vmatpush1.bf16.msra.mxu0 %v4319
    %4784 = vmatprep.subr.bf16.mxu0 %v4327
    %4785 = vmatpush1.bf16.msra.mxu0 %v4326
    %4786 = vmatprep.subr.bf16.mxu0 %v4334
    %4787 = vmatpush1.bf16.msra.mxu0 %v4333
    %4788 = vmatprep.subr.bf16.mxu0 %v4341
    %4789 = vmatpush1.bf16.msra.mxu0 %v4340
    %4790 = vmatprep.subr.bf16.mxu0 %v4348
    %4791 = vmatpush1.bf16.msra.mxu0 %v4347
    %4792 = vmatprep.subr.bf16.mxu0 %v4355
    %4793 = vmatpush1.bf16.msra.mxu0 %v4354
    %4794 = vmatprep.subr.bf16.mxu0 %v4362
    %4795 = vmatpush1.bf16.msra.mxu0 %v4361
    %4796 = vmatprep.subr.bf16.mxu0 %v4369
    %4797 = vmatpush1.bf16.msra.mxu0 %v4368
    %4798 = vmatprep.subr.bf16.mxu0 %v4376
    %4799 = vmatpush1.bf16.msra.mxu0 %v4375
    %4800 = vmatprep.subr.bf16.mxu0 %v4383
    %4801 = vmatpush1.bf16.msra.mxu0 %v4382
    %4802 = vmatprep.subr.bf16.mxu0 %v4390
    %4803 = vmatpush1.bf16.msra.mxu0 %v4389
    %4804 = vmatprep.subr.bf16.mxu0 %v4397
    %4805 = vmatpush1.bf16.msra.mxu0 %v4396
    %4806 = vmatprep.subr.bf16.mxu0 %v4404
    %4807 = vmatpush1.bf16.msra.mxu0 %v4403
    %4808 = vmatprep.subr.bf16.mxu0 %v4411
    %4809 = vmatpush1.bf16.msra.mxu0 %v4410
    %4810 = vmatprep.subr.bf16.mxu0 %v4418
    %4811 = vmatpush1.bf16.msra.mxu0 %v4417
    %4812 = vmatprep.subr.bf16.mxu0 %v4425
    %4813 = vmatpush1.bf16.msra.mxu0 %v4424
    %4814 = vmatprep.mubr.bf16.mxu0 %v3204
    %4815 = vmatmul.mubr.bf16.gmra.mrb[0].mxu0 %v3203
    %v4816 = vpop.f32.mrb[0].mxu0
    %v4817 = vadd.f32 %v4774, %v4816
    %v4818 = vpop.f32.mrb[0].mxu0
    %v4819 = vadd.f32 %v4776, %v4818
    %v4820 = vpop.f32.mrb[0].mxu0
    %v4821 = vadd.f32 %v4778, %v4820
    %v4822 = vpop.f32.mrb[0].mxu0
    %v4823 = vadd.f32 %v4780, %v4822
    %4824 = vdwg.mxu0
    %4825 = vmatprep.subr.bf16.mxu0 %v4210
    %4826 = vmatpush1.bf16.msra.mxu0 %v4209
    %4827 = vmatprep.subr.bf16.mxu0 %v4217
    %4828 = vmatpush1.bf16.msra.mxu0 %v4216
    %4829 = vmatprep.subr.bf16.mxu0 %v4224
    %4830 = vmatpush1.bf16.msra.mxu0 %v4223
    %4831 = vmatprep.subr.bf16.mxu0 %v4231
    %4832 = vmatpush1.bf16.msra.mxu0 %v4230
    %4833 = vmatprep.subr.bf16.mxu0 %v4238
    %4834 = vmatpush1.bf16.msra.mxu0 %v4237
    %4835 = vmatprep.subr.bf16.mxu0 %v4245
    %4836 = vmatpush1.bf16.msra.mxu0 %v4244
    %4837 = vmatprep.subr.bf16.mxu0 %v4252
    %4838 = vmatpush1.bf16.msra.mxu0 %v4251
    %4839 = vmatprep.subr.bf16.mxu0 %v4259
    %4840 = vmatpush1.bf16.msra.mxu0 %v4258
    %4841 = vmatprep.subr.bf16.mxu0 %v4266
    %4842 = vmatpush1.bf16.msra.mxu0 %v4265
    %4843 = vmatprep.subr.bf16.mxu0 %v4273
    %4844 = vmatpush1.bf16.msra.mxu0 %v4272
    %4845 = vmatprep.subr.bf16.mxu0 %v4280
    %4846 = vmatpush1.bf16.msra.mxu0 %v4279
    %4847 = vmatprep.subr.bf16.mxu0 %v4287
    %4848 = vmatpush1.bf16.msra.mxu0 %v4286
    %4849 = vmatprep.subr.bf16.mxu0 %v4294
    %4850 = vmatpush1.bf16.msra.mxu0 %v4293
    %4851 = vmatprep.subr.bf16.mxu0 %v4301
    %4852 = vmatpush1.bf16.msra.mxu0 %v4300
    %4853 = vmatprep.subr.bf16.mxu0 %v4308
    %4854 = vmatpush1.bf16.msra.mxu0 %v4307
    %4855 = vmatprep.subr.bf16.mxu0 %v4315
    %4856 = vmatpush1.bf16.msra.mxu0 %v4314
    %4857 = vmatprep.mubr.bf16.mxu0 %v3202
    %4858 = vmatmul.mubr.bf16.gmra.mrb[0].mxu0 %v3201
    %v4859 = vpop.f32.mrb[0].mxu0
    %v4860 = vadd.f32 %v3485, %v4859
    %v4861 = vpop.f32.mrb[0].mxu0
    %v4862 = vadd.f32 %v3489, %v4861
    %v4863 = vpop.f32.mrb[0].mxu0
    %v4864 = vadd.f32 %v3485, %v4863
    %v4865 = vpop.f32.mrb[0].mxu0
    %v4866 = vadd.f32 %v3489, %v4865
    %4867 = vdwg.mxu0
    %4868 = vmatprep.subr.bf16.mxu0 %v4322
    %4869 = vmatpush1.bf16.msra.mxu0 %v4321
    %4870 = vmatprep.subr.bf16.mxu0 %v4329
    %4871 = vmatpush1.bf16.msra.mxu0 %v4328
    %4872 = vmatprep.subr.bf16.mxu0 %v4336
    %4873 = vmatpush1.bf16.msra.mxu0 %v4335
    %4874 = vmatprep.subr.bf16.mxu0 %v4343
    %4875 = vmatpush1.bf16.msra.mxu0 %v4342
    %4876 = vmatprep.subr.bf16.mxu0 %v4350
    %4877 = vmatpush1.bf16.msra.mxu0 %v4349
    %4878 = vmatprep.subr.bf16.mxu0 %v4357
    %4879 = vmatpush1.bf16.msra.mxu0 %v4356
    %4880 = vmatprep.subr.bf16.mxu0 %v4364
    %4881 = vmatpush1.bf16.msra.mxu0 %v4363
    %4882 = vmatprep.subr.bf16.mxu0 %v4371
    %4883 = vmatpush1.bf16.msra.mxu0 %v4370
    %4884 = vmatprep.subr.bf16.mxu0 %v4378
    %4885 = vmatpush1.bf16.msra.mxu0 %v4377
    %4886 = vmatprep.subr.bf16.mxu0 %v4385
    %4887 = vmatpush1.bf16.msra.mxu0 %v4384
    %4888 = vmatprep.subr.bf16.mxu0 %v4392
    %4889 = vmatpush1.bf16.msra.mxu0 %v4391
    %4890 = vmatprep.subr.bf16.mxu0 %v4399
    %4891 = vmatpush1.bf16.msra.mxu0 %v4398
    %4892 = vmatprep.subr.bf16.mxu0 %v4406
    %4893 = vmatpush1.bf16.msra.mxu0 %v4405
    %4894 = vmatprep.subr.bf16.mxu0 %v4413
    %4895 = vmatpush1.bf16.msra.mxu0 %v4412
    %4896 = vmatprep.subr.bf16.mxu0 %v4420
    %4897 = vmatpush1.bf16.msra.mxu0 %v4419
    %4898 = vmatprep.subr.bf16.mxu0 %v4427
    %4899 = vmatpush1.bf16.msra.mxu0 %v4426
    %4900 = vmatprep.mubr.bf16.mxu0 %v3204
    %4901 = vmatmul.mubr.bf16.gmra.mrb[0].mxu0 %v3203
    %v4902 = vpop.f32.mrb[0].mxu0
    %v4903 = vadd.f32 %v4860, %v4902
    %v4904 = vpop.f32.mrb[0].mxu0
    %v4905 = vadd.f32 %v4862, %v4904
    %v4906 = vpop.f32.mrb[0].mxu0
    %v4907 = vadd.f32 %v4864, %v4906
    %v4908 = vpop.f32.mrb[0].mxu0
    %v4909 = vadd.f32 %v4866, %v4908
    %4910 = vdwg.mxu0
    %4911 = vmatprep.subr.bf16.mxu0 0
    %4912 = vmatpush1.bf16.msra.mxu0 %v4211
    %4913 = vmatprep.subr.bf16.mxu0 0
    %4914 = vmatpush1.bf16.msra.mxu0 %v4218
    %4915 = vmatprep.subr.bf16.mxu0 0
    %4916 = vmatpush1.bf16.msra.mxu0 %v4225
    %4917 = vmatprep.subr.bf16.mxu0 0
    %4918 = vmatpush1.bf16.msra.mxu0 %v4232
    %4919 = vmatprep.subr.bf16.mxu0 0
    %4920 = vmatpush1.bf16.msra.mxu0 %v4239
    %4921 = vmatprep.subr.bf16.mxu0 0
    %4922 = vmatpush1.bf16.msra.mxu0 %v4246
    %4923 = vmatprep.subr.bf16.mxu0 0
    %4924 = vmatpush1.bf16.msra.mxu0 %v4253
    %4925 = vmatprep.subr.bf16.mxu0 0
    %4926 = vmatpush1.bf16.msra.mxu0 %v4260
    %4927 = vmatprep.subr.bf16.mxu0 0
    %4928 = vmatpush1.bf16.msra.mxu0 %v4267
    %4929 = vmatprep.subr.bf16.mxu0 0
    %4930 = vmatpush1.bf16.msra.mxu0 %v4274
    %4931 = vmatprep.subr.bf16.mxu0 0
    %4932 = vmatpush1.bf16.msra.mxu0 %v4281
    %4933 = vmatprep.subr.bf16.mxu0 0
    %4934 = vmatpush1.bf16.msra.mxu0 %v4288
    %4935 = vmatprep.subr.bf16.mxu0 0
    %4936 = vmatpush1.bf16.msra.mxu0 %v4295
    %4937 = vmatprep.subr.bf16.mxu0 0
    %4938 = vmatpush1.bf16.msra.mxu0 %v4302
    %4939 = vmatprep.subr.bf16.mxu0 0
    %4940 = vmatpush1.bf16.msra.mxu0 %v4309
    %4941 = vmatprep.subr.bf16.mxu0 0
    %4942 = vmatpush1.bf16.msra.mxu0 %v4316
    %4943 = vmatprep.mubr.bf16.mxu0 %v3202
    %4944 = vmatmul.mubr.bf16.gmra.mrb[0].mxu0 %v3201
    %v4945 = vpop.f32.mrb[0].mxu0
    %v4946 = vadd.f32 %v3493, %v4945
    %v4947 = vpop.f32.mrb[0].mxu0
    %v4948 = vpop.f32.mrb[0].mxu0
    %v4949 = vadd.f32 %v3493, %v4948
    %v4950 = vpop.f32.mrb[0].mxu0
    %4951 = vdwg.mxu0
    %4952 = vmatprep.subr.bf16.mxu0 0
    %4953 = vmatpush1.bf16.msra.mxu0 %v4323
    %4954 = vmatprep.subr.bf16.mxu0 0
    %4955 = vmatpush1.bf16.msra.mxu0 %v4330
    %4956 = vmatprep.subr.bf16.mxu0 0
    %4957 = vmatpush1.bf16.msra.mxu0 %v4337
    %4958 = vmatprep.subr.bf16.mxu0 0
    %4959 = vmatpush1.bf16.msra.mxu0 %v4344
    %4960 = vmatprep.subr.bf16.mxu0 0
    %4961 = vmatpush1.bf16.msra.mxu0 %v4351
    %4962 = vmatprep.subr.bf16.mxu0 0
    %4963 = vmatpush1.bf16.msra.mxu0 %v4358
    %4964 = vmatprep.subr.bf16.mxu0 0
    %4965 = vmatpush1.bf16.msra.mxu0 %v4365
    %4966 = vmatprep.subr.bf16.mxu0 0
    %4967 = vmatpush1.bf16.msra.mxu0 %v4372
    %4968 = vmatprep.subr.bf16.mxu0 0
    %4969 = vmatpush1.bf16.msra.mxu0 %v4379
    %4970 = vmatprep.subr.bf16.mxu0 0
    %4971 = vmatpush1.bf16.msra.mxu0 %v4386
    %4972 = vmatprep.subr.bf16.mxu0 0
    %4973 = vmatpush1.bf16.msra.mxu0 %v4393
    %4974 = vmatprep.subr.bf16.mxu0 0
    %4975 = vmatpush1.bf16.msra.mxu0 %v4400
    %4976 = vmatprep.subr.bf16.mxu0 0
    %4977 = vmatpush1.bf16.msra.mxu0 %v4407
    %4978 = vmatprep.subr.bf16.mxu0 0
    %4979 = vmatpush1.bf16.msra.mxu0 %v4414
    %4980 = vmatprep.subr.bf16.mxu0 0
    %4981 = vmatpush1.bf16.msra.mxu0 %v4421
    %4982 = vmatprep.subr.bf16.mxu0 0
    %4983 = vmatpush1.bf16.msra.mxu0 %v4428
    %4984 = vmatprep.mubr.bf16.mxu0 %v3204
    %4985 = vmatmul.mubr.bf16.gmra.mrb[0].mxu0 %v3203
    %v4986 = vpop.f32.mrb[0].mxu0
    %v4987 = vadd.f32 %v4946, %v4986
    %v4988 = vpop.f32.mrb[0].mxu0
    %v4989 = vpop.f32.mrb[0].mxu0
    %v4990 = vadd.f32 %v4949, %v4989
    %v4991 = vpop.f32.mrb[0].mxu0
    %4992 = vdwg.mxu0
    %v4993 = vmax.f32 %v4731, 0.0
    %v4994 = vmax.f32 %v4733, 0.0
    %v4995 = vmax.f32 %v4817, 0.0
    %v4996 = vmax.f32 %v4819, 0.0
    %v4997 = vmax.f32 %v4903, 0.0
    %v4998 = vmax.f32 %v4905, 0.0
    %v4999 = vmax.f32 %v4987, 0.0
    %v5000 = vmax.f32 %v4735, 0.0
    %v5001 = vmax.f32 %v4737, 0.0
    %v5002 = vmax.f32 %v4821, 0.0
    %v5003 = vmax.f32 %v4823, 0.0
    %v5004 = vmax.f32 %v4907, 0.0
    %v5005 = vmax.f32 %v4909, 0.0
    %v5006 = vmax.f32 %v4990, 0.0
    %v5007 = vpack.c.bf16 %v5000, %v4993
    %v5008 = vpack.c.bf16 %v5001, %v4994
    %v5009 = vpack.c.bf16 %v5002, %v4995
    %v5010 = vpack.c.bf16 %v5003, %v4996
    %v5011 = vpack.c.bf16 %v5004, %v4997
    %v5012 = vpack.c.bf16 %v5005, %v4998
    %v5013 = vpack.c.bf16 %v5006, %v4999
    %v5014 = vld [vmem:[#allocation11 + $0x6] ss:$0 sm:$0xff]
    %v5015 = vld [vmem:[#allocation10] sm:$0xf]
    %v5016 = vld [vmem:[#allocation10 + $0x4] sm:$0xf]
    %v5017 = vld [vmem:[#allocation10 + $0x8] sm:$0xf]
    %v5018 = vld [vmem:[#allocation10 + $0xc] sm:$0xf]
    %v5019 = vld [vmem:[#allocation10 + $0x10] sm:$0xf]
    %v5020 = vld [vmem:[#allocation10 + $0x14] sm:$0xf]
    %v5021 = vld [vmem:[#allocation10 + $0x18] sm:$0xf]
    %v5022 = vld [vmem:[#allocation10 + $0x1c] sm:$0xf]
    %v5023 = vld [vmem:[#allocation10 + $0x20] sm:$0xf]
    %v5024 = vld [vmem:[#allocation10 + $0x24] sm:$0xf]
    %v5025 = vld [vmem:[#allocation10 + $0x28] sm:$0xf]
    %v5026 = vld [vmem:[#allocation10 + $0x2c] sm:$0xf]
    %v5027 = vld [vmem:[#allocation10 + $0x30] sm:$0xf]
    %v5028 = vld [vmem:[#allocation10 + $0x34] sm:$0xf]
    %v5029 = vld [vmem:[#allocation10 + $0x38] sm:$0xf]
    %v5030 = vld [vmem:[#allocation10 + $0x3c] sm:$0xf]
    %v5031 = vld [vmem:[#allocation10 + $0x40] sm:$0xf]
    %v5032 = vld [vmem:[#allocation10 + $0x44] sm:$0xf]
    %v5033 = vld [vmem:[#allocation10 + $0x48] sm:$0xf]
    %v5034 = vld [vmem:[#allocation10 + $0x4c] sm:$0xf]
    %v5035 = vld [vmem:[#allocation10 + $0x50] sm:$0xf]
    %v5036 = vld [vmem:[#allocation10 + $0x54] sm:$0xf]
    %v5037 = vld [vmem:[#allocation10 + $0x58] sm:$0xf]
    %v5038 = vld [vmem:[#allocation10 + $0x5c] sm:$0xf]
    %v5039 = vld [vmem:[#allocation10 + $0x60] sm:$0xf]
    %v5040 = vld [vmem:[#allocation10 + $0x64] sm:$0xf]
    %v5041 = vld [vmem:[#allocation10 + $0x68] sm:$0xf]
    %v5042 = vld [vmem:[#allocation10 + $0x6c] sm:$0xf]
    %v5043 = vld [vmem:[#allocation10 + $0x70] sm:$0xf]
    %v5044 = vld [vmem:[#allocation10 + $0x74] sm:$0xf]
    %v5045 = vld [vmem:[#allocation10 + $0x78] sm:$0xf]
    %v5046 = vld [vmem:[#allocation10 + $0x7c] sm:$0xf]
    %v5047 = vld [vmem:[#allocation10 + $0x80] sm:$0xf]
    %v5048 = vld [vmem:[#allocation10 + $0x84] sm:$0xf]
    %v5049 = vld [vmem:[#allocation10 + $0x88] sm:$0xf]
    %v5050 = vld [vmem:[#allocation10 + $0x8c] sm:$0xf]
    %v5051 = vld [vmem:[#allocation10 + $0x90] sm:$0xf]
    %v5052 = vld [vmem:[#allocation10 + $0x94] sm:$0xf]
    %v5053 = vld [vmem:[#allocation10 + $0x98] sm:$0xf]
    %v5054 = vld [vmem:[#allocation10 + $0x9c] sm:$0xf]
    %v5055 = vld [vmem:[#allocation10 + $0xa0] sm:$0xf]
    %v5056 = vld [vmem:[#allocation10 + $0xa4] sm:$0xf]
    %v5057 = vld [vmem:[#allocation10 + $0xa8] sm:$0xf]
    %v5058 = vld [vmem:[#allocation10 + $0xac] sm:$0xf]
    %v5059 = vld [vmem:[#allocation10 + $0xb0] sm:$0xf]
    %v5060 = vld [vmem:[#allocation10 + $0xb4] sm:$0xf]
    %v5061 = vld [vmem:[#allocation10 + $0xb8] sm:$0xf]
    %v5062 = vld [vmem:[#allocation10 + $0xbc] sm:$0xf]
    %v5063 = vld [vmem:[#allocation10 + $0xc0] sm:$0xf]
    %v5064 = vld [vmem:[#allocation10 + $0xc4] sm:$0xf]
    %v5065 = vld [vmem:[#allocation10 + $0xc8] sm:$0xf]
    %v5066 = vld [vmem:[#allocation10 + $0xcc] sm:$0xf]
    %v5067 = vld [vmem:[#allocation10 + $0xd0] sm:$0xf]
    %v5068 = vld [vmem:[#allocation10 + $0xd4] sm:$0xf]
    %v5069 = vld [vmem:[#allocation10 + $0xd8] sm:$0xf]
    %v5070 = vld [vmem:[#allocation10 + $0xdc] sm:$0xf]
    %v5071 = vld [vmem:[#allocation10 + $0xe0] sm:$0xf]
    %v5072 = vld [vmem:[#allocation10 + $0xe4] sm:$0xf]
    %v5073 = vld [vmem:[#allocation10 + $0xe8] sm:$0xf]
    %v5074 = vld [vmem:[#allocation10 + $0xec] sm:$0xf]
    %v5075 = vld [vmem:[#allocation10 + $0xf0] sm:$0xf]
    %v5076 = vld [vmem:[#allocation10 + $0xf4] sm:$0xf]
    %v5077 = vld [vmem:[#allocation10 + $0xf8] sm:$0xf]
    %v5078 = vld [vmem:[#allocation10 + $0xfc] sm:$0xf]
    %v5079 = vld [vmem:[#allocation10 + $0x100] sm:$0xf]
    %v5080 = vld [vmem:[#allocation10 + $0x104] sm:$0xf]
    %v5081 = vld [vmem:[#allocation10 + $0x108] sm:$0xf]
    %v5082 = vld [vmem:[#allocation10 + $0x10c] sm:$0xf]
    %v5083 = vld [vmem:[#allocation10 + $0x110] sm:$0xf]
    %v5084 = vld [vmem:[#allocation10 + $0x114] sm:$0xf]
    %v5085 = vld [vmem:[#allocation10 + $0x118] sm:$0xf]
    %v5086 = vld [vmem:[#allocation10 + $0x11c] sm:$0xf]
    %v5087 = vld [vmem:[#allocation10 + $0x120] sm:$0xf]
    %v5088 = vld [vmem:[#allocation10 + $0x124] sm:$0xf]
    %v5089 = vld [vmem:[#allocation10 + $0x128] sm:$0xf]
    %v5090 = vld [vmem:[#allocation10 + $0x12c] sm:$0xf]
    %v5091 = vld [vmem:[#allocation10 + $0x130] sm:$0xf]
    %v5092 = vld [vmem:[#allocation10 + $0x134] sm:$0xf]
    %v5093 = vld [vmem:[#allocation10 + $0x138] sm:$0xf]
    %v5094 = vld [vmem:[#allocation10 + $0x13c] sm:$0xf]
    %v5095 = vld [vmem:[#allocation10 + $0x140] sm:$0xf]
    %v5096 = vld [vmem:[#allocation10 + $0x144] sm:$0xf]
    %v5097 = vld [vmem:[#allocation10 + $0x148] sm:$0xf]
    %v5098 = vld [vmem:[#allocation10 + $0x14c] sm:$0xf]
    %v5099 = vld [vmem:[#allocation10 + $0x150] sm:$0xf]
    %v5100 = vld [vmem:[#allocation10 + $0x154] sm:$0xf]
    %v5101 = vld [vmem:[#allocation10 + $0x158] sm:$0xf]
    %v5102 = vld [vmem:[#allocation10 + $0x15c] sm:$0xf]
    %v5103 = vld [vmem:[#allocation10 + $0x160] sm:$0xf]
    %v5104 = vld [vmem:[#allocation10 + $0x164] sm:$0xf]
    %v5105 = vld [vmem:[#allocation10 + $0x168] sm:$0xf]
    %v5106 = vld [vmem:[#allocation10 + $0x16c] sm:$0xf]
    %v5107 = vld [vmem:[#allocation10 + $0x170] sm:$0xf]
    %v5108 = vld [vmem:[#allocation10 + $0x174] sm:$0xf]
    %v5109 = vld [vmem:[#allocation10 + $0x178] sm:$0xf]
    %v5110 = vld [vmem:[#allocation10 + $0x17c] sm:$0xf]
    %v5111 = vld [vmem:[#allocation10 + $0x180] sm:$0xf]
    %v5112 = vld [vmem:[#allocation10 + $0x184] sm:$0xf]
    %v5113 = vld [vmem:[#allocation10 + $0x188] sm:$0xf]
    %v5114 = vld [vmem:[#allocation10 + $0x18c] sm:$0xf]
    %v5115 = vld [vmem:[#allocation10 + $0x190] sm:$0xf]
    %v5116 = vld [vmem:[#allocation10 + $0x194] sm:$0xf]
    %v5117 = vld [vmem:[#allocation10 + $0x198] sm:$0xf]
    %v5118 = vld [vmem:[#allocation10 + $0x19c] sm:$0xf]
    %v5119 = vld [vmem:[#allocation10 + $0x1a0] sm:$0xf]
    %v5120 = vld [vmem:[#allocation10 + $0x1a4] sm:$0xf]
    %v5121 = vld [vmem:[#allocation10 + $0x1a8] sm:$0xf]
    %v5122 = vld [vmem:[#allocation10 + $0x1ac] sm:$0xf]
    %v5123 = vld [vmem:[#allocation10 + $0x1b0] sm:$0xf]
    %v5124 = vld [vmem:[#allocation10 + $0x1b4] sm:$0xf]
    %v5125 = vld [vmem:[#allocation10 + $0x1b8] sm:$0xf]
    %v5126 = vld [vmem:[#allocation10 + $0x1bc] sm:$0xf]
    %v5239 = vunpack.c.l.b16 %v5015
    %v5240 = vunpack.c.l.b16 %v5016
    %v5241 = vunpack.c.l.b16 %v5017
    %v5242 = vunpack.c.l.b16 %v5018
    %v5243 = vunpack.c.l.b16 %v5019
    %v5244 = vunpack.c.l.b16 %v5020
    %v5245 = vunpack.c.l.b16 %v5021
    %v5246 = vunpack.c.l.b16 %v5022
    %v5247 = vunpack.c.l.b16 %v5023
    %v5248 = vunpack.c.l.b16 %v5024
    %v5249 = vunpack.c.l.b16 %v5025
    %v5250 = vunpack.c.l.b16 %v5026
    %v5251 = vunpack.c.l.b16 %v5027
    %v5252 = vunpack.c.l.b16 %v5028
    %v5253 = vunpack.c.l.b16 %v5029
    %v5254 = vunpack.c.l.b16 %v5030
    %v5255 = vunpack.c.l.b16 %v5031
    %v5256 = vunpack.c.l.b16 %v5032
    %v5257 = vunpack.c.l.b16 %v5033
    %v5258 = vunpack.c.l.b16 %v5034
    %v5259 = vunpack.c.l.b16 %v5035
    %v5260 = vunpack.c.l.b16 %v5036
    %v5261 = vunpack.c.l.b16 %v5037
    %v5262 = vunpack.c.l.b16 %v5038
    %v5263 = vunpack.c.l.b16 %v5039
    %v5264 = vunpack.c.l.b16 %v5040
    %v5265 = vunpack.c.l.b16 %v5041
    %v5266 = vunpack.c.l.b16 %v5042
    %v5267 = vunpack.c.l.b16 %v5043
    %v5268 = vunpack.c.l.b16 %v5044
    %v5269 = vunpack.c.l.b16 %v5045
    %v5270 = vunpack.c.l.b16 %v5046
    %v5271 = vunpack.c.l.b16 %v5047
    %v5272 = vunpack.c.l.b16 %v5048
    %v5273 = vunpack.c.l.b16 %v5049
    %v5274 = vunpack.c.l.b16 %v5050
    %v5275 = vunpack.c.l.b16 %v5051
    %v5276 = vunpack.c.l.b16 %v5052
    %v5277 = vunpack.c.l.b16 %v5053
    %v5278 = vunpack.c.l.b16 %v5054
    %v5279 = vunpack.c.l.b16 %v5055
    %v5280 = vunpack.c.l.b16 %v5056
    %v5281 = vunpack.c.l.b16 %v5057
    %v5282 = vunpack.c.l.b16 %v5058
    %v5283 = vunpack.c.l.b16 %v5059
    %v5284 = vunpack.c.l.b16 %v5060
    %v5285 = vunpack.c.l.b16 %v5061
    %v5286 = vunpack.c.l.b16 %v5062
    %v5287 = vunpack.c.l.b16 %v5063
    %v5288 = vunpack.c.l.b16 %v5064
    %v5289 = vunpack.c.l.b16 %v5065
    %v5290 = vunpack.c.l.b16 %v5066
    %v5291 = vunpack.c.l.b16 %v5067
    %v5292 = vunpack.c.l.b16 %v5068
    %v5293 = vunpack.c.l.b16 %v5069
    %v5294 = vunpack.c.l.b16 %v5070
    %v5295 = vunpack.c.l.b16 %v5071
    %v5296 = vunpack.c.l.b16 %v5072
    %v5297 = vunpack.c.l.b16 %v5073
    %v5298 = vunpack.c.l.b16 %v5074
    %v5299 = vunpack.c.l.b16 %v5075
    %v5300 = vunpack.c.l.b16 %v5076
    %v5301 = vunpack.c.l.b16 %v5077
    %v5302 = vunpack.c.l.b16 %v5078
    %v5303 = vunpack.c.l.b16 %v5079
    %v5304 = vunpack.c.l.b16 %v5080
    %v5305 = vunpack.c.l.b16 %v5081
    %v5306 = vunpack.c.l.b16 %v5082
    %v5307 = vunpack.c.l.b16 %v5083
    %v5308 = vunpack.c.l.b16 %v5084
    %v5309 = vunpack.c.l.b16 %v5085
    %v5310 = vunpack.c.l.b16 %v5086
    %v5311 = vunpack.c.l.b16 %v5087
    %v5312 = vunpack.c.l.b16 %v5088
    %v5313 = vunpack.c.l.b16 %v5089
    %v5314 = vunpack.c.l.b16 %v5090
    %v5315 = vunpack.c.l.b16 %v5091
    %v5316 = vunpack.c.l.b16 %v5092
    %v5317 = vunpack.c.l.b16 %v5093
    %v5318 = vunpack.c.l.b16 %v5094
    %v5319 = vunpack.c.l.b16 %v5095
    %v5320 = vunpack.c.l.b16 %v5096
    %v5321 = vunpack.c.l.b16 %v5097
    %v5322 = vunpack.c.l.b16 %v5098
    %v5323 = vunpack.c.l.b16 %v5099
    %v5324 = vunpack.c.l.b16 %v5100
    %v5325 = vunpack.c.l.b16 %v5101
    %v5326 = vunpack.c.l.b16 %v5102
    %v5327 = vunpack.c.l.b16 %v5103
    %v5328 = vunpack.c.l.b16 %v5104
    %v5329 = vunpack.c.l.b16 %v5105
    %v5330 = vunpack.c.l.b16 %v5106
    %v5331 = vunpack.c.l.b16 %v5107
    %v5332 = vunpack.c.l.b16 %v5108
    %v5333 = vunpack.c.l.b16 %v5109
    %v5334 = vunpack.c.l.b16 %v5110
    %v5335 = vunpack.c.l.b16 %v5111
    %v5336 = vunpack.c.l.b16 %v5112
    %v5337 = vunpack.c.l.b16 %v5113
    %v5338 = vunpack.c.l.b16 %v5114
    %v5339 = vunpack.c.l.b16 %v5115
    %v5340 = vunpack.c.l.b16 %v5116
    %v5341 = vunpack.c.l.b16 %v5117
    %v5342 = vunpack.c.l.b16 %v5118
    %v5343 = vunpack.c.l.b16 %v5119
    %v5344 = vunpack.c.l.b16 %v5120
    %v5345 = vunpack.c.l.b16 %v5121
    %v5346 = vunpack.c.l.b16 %v5122
    %v5347 = vunpack.c.l.b16 %v5123
    %v5348 = vunpack.c.l.b16 %v5124
    %v5349 = vunpack.c.l.b16 %v5125
    %v5350 = vunpack.c.l.b16 %v5126
    %v5351 = vpack.c.b16 %v5240, %v5239
    %v5352 = vpack.c.b16 %v5242, %v5241
    %v5353 = vpack.c.b16 %v5244, %v5243
    %v5354 = vpack.c.b16 %v5246, %v5245
    %v5355 = vpack.c.b16 %v5248, %v5247
    %v5356 = vpack.c.b16 %v5250, %v5249
    %v5357 = vpack.c.b16 %v5252, %v5251
    %v5358 = vpack.c.b16 %v5254, %v5253
    %v5359 = vpack.c.b16 %v5256, %v5255
    %v5360 = vpack.c.b16 %v5258, %v5257
    %v5361 = vpack.c.b16 %v5260, %v5259
    %v5362 = vpack.c.b16 %v5262, %v5261
    %v5363 = vpack.c.b16 %v5264, %v5263
    %v5364 = vpack.c.b16 %v5266, %v5265
    %v5365 = vpack.c.b16 %v5268, %v5267
    %v5366 = vpack.c.b16 %v5270, %v5269
    %v5367 = vpack.c.b16 %v5272, %v5271
    %v5368 = vpack.c.b16 %v5274, %v5273
    %v5369 = vpack.c.b16 %v5276, %v5275
    %v5370 = vpack.c.b16 %v5278, %v5277
    %v5371 = vpack.c.b16 %v5280, %v5279
    %v5372 = vpack.c.b16 %v5282, %v5281
    %v5373 = vpack.c.b16 %v5284, %v5283
    %v5374 = vpack.c.b16 %v5286, %v5285
    %v5375 = vpack.c.b16 %v5288, %v5287
    %v5376 = vpack.c.b16 %v5290, %v5289
    %v5377 = vpack.c.b16 %v5292, %v5291
    %v5378 = vpack.c.b16 %v5294, %v5293
    %v5379 = vpack.c.b16 %v5296, %v5295
    %v5380 = vpack.c.b16 %v5298, %v5297
    %v5381 = vpack.c.b16 %v5300, %v5299
    %v5382 = vpack.c.b16 %v5302, %v5301
    %v5383 = vpack.c.b16 %v5304, %v5303
    %v5384 = vpack.c.b16 %v5306, %v5305
    %v5385 = vpack.c.b16 %v5308, %v5307
    %v5386 = vpack.c.b16 %v5310, %v5309
    %v5387 = vpack.c.b16 %v5312, %v5311
    %v5388 = vpack.c.b16 %v5314, %v5313
    %v5389 = vpack.c.b16 %v5316, %v5315
    %v5390 = vpack.c.b16 %v5318, %v5317
    %v5391 = vpack.c.b16 %v5320, %v5319
    %v5392 = vpack.c.b16 %v5322, %v5321
    %v5393 = vpack.c.b16 %v5324, %v5323
    %v5394 = vpack.c.b16 %v5326, %v5325
    %v5395 = vpack.c.b16 %v5328, %v5327
    %v5396 = vpack.c.b16 %v5330, %v5329
    %v5397 = vpack.c.b16 %v5332, %v5331
    %v5398 = vpack.c.b16 %v5334, %v5333
    %v5399 = vpack.c.b16 %v5336, %v5335
    %v5400 = vpack.c.b16 %v5338, %v5337
    %v5401 = vpack.c.b16 %v5340, %v5339
    %v5402 = vpack.c.b16 %v5342, %v5341
    %v5403 = vpack.c.b16 %v5344, %v5343
    %v5404 = vpack.c.b16 %v5346, %v5345
    %v5405 = vpack.c.b16 %v5348, %v5347
    %v5406 = vpack.c.b16 %v5350, %v5349
    %5463 = vmatprep.subr.bf16.mxu0 0
    %5464 = vmatpush1.bf16.msra.mxu0 %v5351
    %5465 = vmatprep.subr.bf16.mxu0 0
    %5466 = vmatpush1.bf16.msra.mxu0 %v5352
    %5467 = vmatprep.subr.bf16.mxu0 0
    %5468 = vmatpush1.bf16.msra.mxu0 %v5353
    %5469 = vmatprep.subr.bf16.mxu0 0
    %5470 = vmatpush1.bf16.msra.mxu0 %v5354
    %5471 = vmatprep.subr.bf16.mxu0 0
    %5472 = vmatpush1.bf16.msra.mxu0 %v5355
    %5473 = vmatprep.subr.bf16.mxu0 0
    %5474 = vmatpush1.bf16.msra.mxu0 %v5356
    %5475 = vmatprep.subr.bf16.mxu0 0
    %5476 = vmatpush1.bf16.msra.mxu0 %v5357
    %5477 = vmatprep.subr.bf16.mxu0 0
    %5478 = vmatpush1.bf16.msra.mxu0 %v5358
    %5479 = vmatprep.subr.bf16.mxu0 0
    %5480 = vmatpush1.bf16.msra.mxu0 %v5359
    %5481 = vmatprep.subr.bf16.mxu0 0
    %5482 = vmatpush1.bf16.msra.mxu0 %v5360
    %5483 = vmatprep.subr.bf16.mxu0 0
    %5484 = vmatpush1.bf16.msra.mxu0 %v5361
    %5485 = vmatprep.subr.bf16.mxu0 0
    %5486 = vmatpush1.bf16.msra.mxu0 %v5362
    %5487 = vmatprep.subr.bf16.mxu0 0
    %5488 = vmatpush1.bf16.msra.mxu0 %v5363
    %5489 = vmatprep.subr.bf16.mxu0 0
    %5490 = vmatpush1.bf16.msra.mxu0 %v5364
    %5491 = vmatprep.subr.bf16.mxu0 0
    %5492 = vmatpush1.bf16.msra.mxu0 %v5365
    %5493 = vmatprep.subr.bf16.mxu0 0
    %5494 = vmatpush1.bf16.msra.mxu0 %v5366
    %5495 = vmatprep.mubr.bf16.mxu0 %v5008
    %5496 = vmatmul.mubr.bf16.gmra.mrb[0].mxu0 %v5007
    %v5497 = vpop.f32.mrb[0].mxu0
    %v5498 = vadd.f32 %v5014, %v5497
    %v5499 = vpop.f32.mrb[0].mxu0
    %v5500 = vpop.f32.mrb[0].mxu0
    %v5501 = vadd.f32 %v5014, %v5500
    %v5502 = vpop.f32.mrb[0].mxu0
    %5503 = vdwg.mxu0
    %5504 = vmatprep.subr.bf16.mxu0 0
    %5505 = vmatpush1.bf16.msra.mxu0 %v5367
    %5506 = vmatprep.subr.bf16.mxu0 0
    %5507 = vmatpush1.bf16.msra.mxu0 %v5368
    %5508 = vmatprep.subr.bf16.mxu0 0
    %5509 = vmatpush1.bf16.msra.mxu0 %v5369
    %5510 = vmatprep.subr.bf16.mxu0 0
    %5511 = vmatpush1.bf16.msra.mxu0 %v5370
    %5512 = vmatprep.subr.bf16.mxu0 0
    %5513 = vmatpush1.bf16.msra.mxu0 %v5371
    %5514 = vmatprep.subr.bf16.mxu0 0
    %5515 = vmatpush1.bf16.msra.mxu0 %v5372
    %5516 = vmatprep.subr.bf16.mxu0 0
    %5517 = vmatpush1.bf16.msra.mxu0 %v5373
    %5518 = vmatprep.subr.bf16.mxu0 0
    %5519 = vmatpush1.bf16.msra.mxu0 %v5374
    %5520 = vmatprep.subr.bf16.mxu0 0
    %5521 = vmatpush1.bf16.msra.mxu0 %v5375
    %5522 = vmatprep.subr.bf16.mxu0 0
    %5523 = vmatpush1.bf16.msra.mxu0 %v5376
    %5524 = vmatprep.subr.bf16.mxu0 0
    %5525 = vmatpush1.bf16.msra.mxu0 %v5377
    %5526 = vmatprep.subr.bf16.mxu0 0
    %5527 = vmatpush1.bf16.msra.mxu0 %v5378
    %5528 = vmatprep.subr.bf16.mxu0 0
    %5529 = vmatpush1.bf16.msra.mxu0 %v5379
    %5530 = vmatprep.subr.bf16.mxu0 0
    %5531 = vmatpush1.bf16.msra.mxu0 %v5380
    %5532 = vmatprep.subr.bf16.mxu0 0
    %5533 = vmatpush1.bf16.msra.mxu0 %v5381
    %5534 = vmatprep.subr.bf16.mxu0 0
    %5535 = vmatpush1.bf16.msra.mxu0 %v5382
    %5536 = vmatprep.mubr.bf16.mxu0 %v5010
    %5537 = vmatmul.mubr.bf16.gmra.mrb[0].mxu0 %v5009
    %v5538 = vpop.f32.mrb[0].mxu0
    %v5539 = vadd.f32 %v5498, %v5538
    %v5540 = vpop.f32.mrb[0].mxu0
    %v5541 = vpop.f32.mrb[0].mxu0
    %v5542 = vadd.f32 %v5501, %v5541
    %v5543 = vpop.f32.mrb[0].mxu0
    %5544 = vdwg.mxu0
    %5545 = vmatprep.subr.bf16.mxu0 0
    %5546 = vmatpush1.bf16.msra.mxu0 %v5383
    %5547 = vmatprep.subr.bf16.mxu0 0
    %5548 = vmatpush1.bf16.msra.mxu0 %v5384
    %5549 = vmatprep.subr.bf16.mxu0 0
    %5550 = vmatpush1.bf16.msra.mxu0 %v5385
    %5551 = vmatprep.subr.bf16.mxu0 0
    %5552 = vmatpush1.bf16.msra.mxu0 %v5386
    %5553 = vmatprep.subr.bf16.mxu0 0
    %5554 = vmatpush1.bf16.msra.mxu0 %v5387
    %5555 = vmatprep.subr.bf16.mxu0 0
    %5556 = vmatpush1.bf16.msra.mxu0 %v5388
    %5557 = vmatprep.subr.bf16.mxu0 0
    %5558 = vmatpush1.bf16.msra.mxu0 %v5389
    %5559 = vmatprep.subr.bf16.mxu0 0
    %5560 = vmatpush1.bf16.msra.mxu0 %v5390
    %5561 = vmatprep.subr.bf16.mxu0 0
    %5562 = vmatpush1.bf16.msra.mxu0 %v5391
    %5563 = vmatprep.subr.bf16.mxu0 0
    %5564 = vmatpush1.bf16.msra.mxu0 %v5392
    %5565 = vmatprep.subr.bf16.mxu0 0
    %5566 = vmatpush1.bf16.msra.mxu0 %v5393
    %5567 = vmatprep.subr.bf16.mxu0 0
    %5568 = vmatpush1.bf16.msra.mxu0 %v5394
    %5569 = vmatprep.subr.bf16.mxu0 0
    %5570 = vmatpush1.bf16.msra.mxu0 %v5395
    %5571 = vmatprep.subr.bf16.mxu0 0
    %5572 = vmatpush1.bf16.msra.mxu0 %v5396
    %5573 = vmatprep.subr.bf16.mxu0 0
    %5574 = vmatpush1.bf16.msra.mxu0 %v5397
    %5575 = vmatprep.subr.bf16.mxu0 0
    %5576 = vmatpush1.bf16.msra.mxu0 %v5398
    %5577 = vmatprep.mubr.bf16.mxu0 %v5012
    %5578 = vmatmul.mubr.bf16.gmra.mrb[0].mxu0 %v5011
    %v5579 = vpop.f32.mrb[0].mxu0
    %v5580 = vadd.f32 %v5539, %v5579
    %v5581 = vpop.f32.mrb[0].mxu0
    %v5582 = vpop.f32.mrb[0].mxu0
    %v5583 = vadd.f32 %v5542, %v5582
    %v5584 = vpop.f32.mrb[0].mxu0
    %5585 = vdwg.mxu0
    %5586 = vmatprep.subr.bf16.mxu0 0
    %5587 = vmatpush1.bf16.msra.mxu0 %v5399
    %5588 = vmatprep.subr.bf16.mxu0 0
    %5589 = vmatpush1.bf16.msra.mxu0 %v5400
    %5590 = vmatprep.subr.bf16.mxu0 0
    %5591 = vmatpush1.bf16.msra.mxu0 %v5401
    %5592 = vmatprep.subr.bf16.mxu0 0
    %5593 = vmatpush1.bf16.msra.mxu0 %v5402
    %5594 = vmatprep.subr.bf16.mxu0 0
    %5595 = vmatpush1.bf16.msra.mxu0 %v5403
    %5596 = vmatprep.subr.bf16.mxu0 0
    %5597 = vmatpush1.bf16.msra.mxu0 %v5404
    %5598 = vmatprep.subr.bf16.mxu0 0
    %5599 = vmatpush1.bf16.msra.mxu0 %v5405
    %5600 = vmatprep.subr.bf16.mxu0 0
    %5601 = vmatpush1.bf16.msra.mxu0 %v5406
    %5602 = vmatprep.subr.bf16.mxu0 0
    %5603 = vmatpush1.bf16.msra.mxu0 0
    %5604 = vmatprep.subr.bf16.mxu0 0
    %5605 = vmatpush1.bf16.msra.mxu0 0
    %5606 = vmatprep.subr.bf16.mxu0 0
    %5607 = vmatpush1.bf16.msra.mxu0 0
    %5608 = vmatprep.subr.bf16.mxu0 0
    %5609 = vmatpush1.bf16.msra.mxu0 0
    %5610 = vmatprep.subr.bf16.mxu0 0
    %5611 = vmatpush1.bf16.msra.mxu0 0
    %5612 = vmatprep.subr.bf16.mxu0 0
    %5613 = vmatpush1.bf16.msra.mxu0 0
    %5614 = vmatprep.subr.bf16.mxu0 0
    %5615 = vmatpush1.bf16.msra.mxu0 0
    %5616 = vmatprep.subr.bf16.mxu0 0
    %5617 = vmatpush1.bf16.msra.mxu0 0
    %5618 = vmatprep.mubr.bf16.mxu0 0
    %5619 = vmatmul.mubr.bf16.gmra.mrb[0].mxu0 %v5013
    %v5620 = vpop.f32.mrb[0].mxu0
    %v5621 = vadd.f32 %v5580, %v5620
    %v5622 = vpop.f32.mrb[0].mxu0
    %v5623 = vpop.f32.mrb[0].mxu0
    %v5624 = vadd.f32 %v5583, %v5623
    %v5625 = vpop.f32.mrb[0].mxu0
    %5626 = vdwg.mxu0
    %v5627 = vlaneseq
    %v5628 = vand.u32 %v5627, 127
    %vm5629 = vcmp.lt.s32.totalorder %v5628, 10
    %v5630 = vsel %vm5629, %v5621, -1e+30
    %v5631 = vsel %vm5629, %v5624, -1e+30
    %5632 = vmax.xlane.f32.xlu0 %v5630
    %v5633 = vpop.xlane.xlu0 %5632
    %5634 = vmax.xlane.f32.xlu0 %v5631
    %v5635 = vpop.xlane.xlu0 %5634
    %v5636 = vsub.f32 %v5630, %v5633
    %v5637 = vsub.f32 %v5631, %v5635
    %v5638 = vmul.f32 %v5636, 1.442695
    %v5639 = vpow.pop %v5638
    %v5640 = vmul.f32 %v5637, 1.442695
    %v5641 = vpow.pop %v5640
    %v5642 = vsel %vm5629, %v5639, 0.0
    %v5643 = vsel %vm5629, %v5641, 0.0
    %5644 = vadd.xlane.f32.xlu0 %v5642
    %v5645 = vpop.xlane.xlu0 %5644
    %5646 = vadd.xlane.f32.xlu0 %v5643
    %v5647 = vpop.xlane.xlu0 %5646
    %v5648 = vlog2.pop %v5645
    %v5649 = vmul.f32 %v5648, 0.6931472
    %v5650 = vlog2.pop %v5647
    %v5651 = vmul.f32 %v5650, 0.6931472
    %v5652 = vsub.f32 %v5636, %v5649
    %v5653 = vsub.f32 %v5637, %v5651
    %5654 = vst [vmem:[#allocation13] sm:$0xff] %v5652
    %5655 = vst [vmem:[#allocation13 + $0x8] sm:$0xff] %v5653
    // Predicated region
    $region62: #{autoencoder_forward.1} parent=1 // pred_check
      _
    $region63: #{autoencoder_forward.1} parent=1 // pred_check_branch
      %5657 = sbr.rel (0) target = $region65
    $region64: #{autoencoder_forward.1} parent=1 // pred_region
      %s5659 = ssub.s32 256, 256
      %5660 = vsyncadd [#allocation4], %s5659
      %s5661 = sshll.u32 [#allocation13], 4
      %s5662 = int_to_ptr.vmem [resolvable:$true] %s5661
      %5667 = dma.vmem_to_hbm [thread:$0]  %s5662, 256, %s9, [#allocation4], 128, 128, 8
    $region65: #{autoencoder_forward.1} parent=1 // pred_fallthru
      _
    // Predicated region
    $region66: #{autoencoder_forward.1} parent=1 // pred_check
      _
    $region67: #{autoencoder_forward.1} parent=1 // pred_check_branch
      %5669 = sbr.rel (0) target = $region69
    $region68: #{autoencoder_forward.1} parent=1 // pred_region
      %5670 = dma.done [#allocation4], 256
    $region69: #{autoencoder_forward.1} parent=1 // pred_fallthru
      _
    %5671 = vsyncpa [#allocation3], 1
    %5672 = vsyncpa [#allocation6], 1
    %5673 = vsyncpa [#allocation9], 1
    %5674 = vsyncpa [#allocation12], 1
    %5675 = vsyncpa [#allocation4], 1

</llo_original>
